<compile_context>
chip_gen: v5e
topology: v5e:2x2
jax: 0.10.0
libtpu: 0.0.40
codegen_flags: <defaults>
</compile_context>

<pallas_src>
import functools

import jax
import jax.numpy as jnp
from jax.experimental import pallas as pl
from jax.experimental.pallas import tpu as pltpu

VMEM_LIMIT_BYTES = 48 * 1024 * 1024   # safe under v7x's 64 MiB physical VMEM
OUT_PAD = 128                         # lane-dense final-conv output width


def _compiler_params(dim_sem):
    return pltpu.CompilerParams(
        dimension_semantics=dim_sem,
        vmem_limit_bytes=VMEM_LIMIT_BYTES,
    )


# ----------------------------------------------------------------------------
# Kernel 1: fused 3x3 conv + folded BN affine + activation (no im2col)
# ----------------------------------------------------------------------------
def _conv3x3_row_kernel(x_ref, w_ref, scale_ref, bias_ref, o_ref, acc_ref, *, act):
    """Grid = (N, H, 3). For output row r, tap-row kh accumulates
       sum_kw  x_pad[n, r + kh, kw : kw + W, :] @ W[kh, kw]  into f32 scratch."""
    kh = pl.program_id(2)

    @pl.when(kh == 0)
    def _init():
        acc_ref[...] = jnp.zeros_like(acc_ref)

    w_out = o_ref.shape[2]
    x_row = x_ref[0, 0]          # (W + 2, Cin)   bf16
    w_kh = w_ref[kh]             # (3, Cin, Cout) bf16  (dynamic leading index)

    acc = acc_ref[...]
    for kw in range(3):          # static unroll over the 3 column taps
        acc += jnp.dot(x_row[kw:kw + w_out, :], w_kh[kw],
                       preferred_element_type=jnp.float32)
    acc_ref[...] = acc

    @pl.when(kh == 2)
    def _finalize():
        y = acc_ref[...] * scale_ref[...] + bias_ref[...]   # f32 epilogue
        if act == "relu":
            y = jnp.maximum(y, 0.0)
        elif act == "sigmoid":
            y = jax.nn.sigmoid(y)
        o_ref[0, 0] = y.astype(o_ref.dtype)


def conv3x3_bn_act(x, w, scale, bias, act, out_dtype=jnp.bfloat16):
    """x: (N, H, W, Cin) ; w: (3, 3, Cin, Cout) ; scale/bias: (Cout,)."""
    N, H, W, Cin = x.shape
    Cout = w.shape[-1]
    xp = jnp.pad(x, ((0, 0), (1, 1), (1, 1), (0, 0))).astype(jnp.bfloat16)
    w = w.astype(jnp.bfloat16)
    scale2 = scale.reshape(1, Cout).astype(jnp.float32)
    bias2 = bias.reshape(1, Cout).astype(jnp.float32)

    flops = 2 * N * H * W * 9 * Cin * Cout
    trans = N * H * W * Cout if act == "sigmoid" else 0
    bytes_accessed = (xp.size * 2 + w.size * 2 + 2 * Cout * 4
                      + N * H * W * Cout * jnp.dtype(out_dtype).itemsize)

    return pl.pallas_call(
        functools.partial(_conv3x3_row_kernel, act=act),
        out_shape=jax.ShapeDtypeStruct((N, H, W, Cout), out_dtype),
        grid=(N, H, 3),
        in_specs=[
            # one padded image row (+ W halo) per step, shifted by the tap row
            pl.BlockSpec((1, 1, W + 2, Cin), lambda n, r, kh: (n, r + kh, 0, 0)),
            # weights / affine: constant index_map -> stay resident in VMEM
            pl.BlockSpec((3, 3, Cin, Cout), lambda n, r, kh: (0, 0, 0, 0)),
            pl.BlockSpec((1, Cout), lambda n, r, kh: (0, 0)),
            pl.BlockSpec((1, Cout), lambda n, r, kh: (0, 0)),
        ],
        out_specs=pl.BlockSpec((1, 1, W, Cout), lambda n, r, kh: (n, r, 0, 0)),
        scratch_shapes=[pltpu.VMEM((W, Cout), jnp.float32)],
        compiler_params=_compiler_params(("parallel", "parallel", "arbitrary")),
        cost_estimate=pl.CostEstimate(flops=int(flops), transcendentals=int(trans),
                                      bytes_accessed=int(bytes_accessed)),
    )(xp, w, scale2, bias2)


# ----------------------------------------------------------------------------
# Kernel 2: fused MaxPool2d(2, 2) -- reads the input block exactly once
# ----------------------------------------------------------------------------
def _maxpool2x2_kernel(x_ref, o_ref):
    tp, wo, c = o_ref.shape[1], o_ref.shape[2], o_ref.shape[3]
    x = x_ref[0].astype(jnp.float32)                  # (2*tp, 2*wo, C)
    x = x.reshape(tp, 2, 2 * wo, c)
    x = jnp.maximum(x[:, 0], x[:, 1])                 # pool rows -> (tp, 2*wo, C)
    x = x.reshape(tp, wo, 2, c)
    y = jnp.maximum(x[:, :, 0], x[:, :, 1])           # pool cols -> (tp, wo, C)
    o_ref[0] = y.astype(o_ref.dtype)


def _pick_pool_tile(ho, max_tile=128):
    t = min(ho, max_tile)
    while ho % t:
        t -= 1
    return t


def maxpool2x2(x):
    N, H, W, C = x.shape
    assert H % 2 == 0 and W % 2 == 0, "MaxPool2d(2,2) needs even spatial dims"
    Ho, Wo = H // 2, W // 2
    tp = _pick_pool_tile(Ho)
    bytes_accessed = x.size * x.dtype.itemsize + (x.size // 4) * x.dtype.itemsize
    return pl.pallas_call(
        _maxpool2x2_kernel,
        out_shape=jax.ShapeDtypeStruct((N, Ho, Wo, C), x.dtype),
        grid=(N, Ho // tp),
        in_specs=[pl.BlockSpec((1, 2 * tp, W, C), lambda n, t: (n, t, 0, 0))],
        out_specs=pl.BlockSpec((1, tp, Wo, C), lambda n, t: (n, t, 0, 0)),
        compiler_params=_compiler_params(("parallel", "parallel")),
        cost_estimate=pl.CostEstimate(flops=int(3 * N * Ho * Wo * C),
                                      transcendentals=0,
                                      bytes_accessed=int(bytes_accessed)),
    )(x)


# ----------------------------------------------------------------------------
# Kernel 3: row-tiled fused matmul + affine + act (used for ConvTranspose2d)
# ----------------------------------------------------------------------------
def _matmul_affine_act_kernel(x_ref, w_ref, scale_ref, bias_ref, o_ref, *, act):
    y = jnp.dot(x_ref[...], w_ref[...], preferred_element_type=jnp.float32)
    y = y * scale_ref[...] + bias_ref[...]             # f32 epilogue
    if act == "relu":
        y = jnp.maximum(y, 0.0)
    elif act == "sigmoid":
        y = jax.nn.sigmoid(y)
    o_ref[...] = y.astype(o_ref.dtype)


def _pick_row_tile(m, max_tile=512):
    cap = min(max_tile, max(m // 2, 1))                # >= 2 grid steps if possible
    for t in range(cap, 0, -1):
        if m % t == 0 and t % 8 == 0:
            return t
    return m


def matmul_bn_act(x, w, scale, bias, act, out_dtype=jnp.bfloat16):
    """x: (M, K), w: (K, Nc), scale/bias: (Nc,) -> act((x @ w) * scale + bias)."""
    M, K = x.shape
    Nc = w.shape[1]
    tm = _pick_row_tile(M)
    x = x.astype(jnp.bfloat16)
    w = w.astype(jnp.bfloat16)
    scale2 = scale.reshape(1, Nc).astype(jnp.float32)
    bias2 = bias.reshape(1, Nc).astype(jnp.float32)
    flops = 2 * M * K * Nc
    trans = M * Nc if act == "sigmoid" else 0
    bytes_accessed = (M * K + K * Nc) * 2 + M * Nc * jnp.dtype(out_dtype).itemsize
    return pl.pallas_call(
        functools.partial(_matmul_affine_act_kernel, act=act),
        out_shape=jax.ShapeDtypeStruct((M, Nc), out_dtype),
        grid=(M // tm,),
        in_specs=[
            pl.BlockSpec((tm, K), lambda i: (i, 0)),
            pl.BlockSpec((K, Nc), lambda i: (0, 0)),     # resident
            pl.BlockSpec((1, Nc), lambda i: (0, 0)),
            pl.BlockSpec((1, Nc), lambda i: (0, 0)),
        ],
        out_specs=pl.BlockSpec((tm, Nc), lambda i: (i, 0)),
        compiler_params=_compiler_params(("parallel",)),
        cost_estimate=pl.CostEstimate(flops=int(flops), transcendentals=int(trans),
                                      bytes_accessed=int(bytes_accessed)),
    )(x, w, scale2, bias2)


# ----------------------------------------------------------------------------
# Parameter construction (eval-mode BatchNorm folded into scale/bias)
# ----------------------------------------------------------------------------
def _fold_bn(conv_bias, gamma, beta, mean, var, eps=1e-5):
    scale = gamma / jnp.sqrt(var + eps)
    bias = (conv_bias - mean) * scale + beta
    return scale, bias


def make_conv_bn_params(key, cin, cout, cin_pad=None, cout_pad=None,
                        with_bn=True, eps=1e-5):
    """Conv2d(3x3, padding=1) (+ folded eval-mode BN); weight as (3,3,Cin,Cout)
       optionally zero-padded on Cin/Cout for alignment / lane density."""
    cin_pad = cin if cin_pad is None else cin_pad
    cout_pad = cout if cout_pad is None else cout_pad
    ks = jax.random.split(key, 6)
    w = jax.random.normal(ks[0], (cout, cin, 3, 3), jnp.float32) * 0.1
    b = jax.random.normal(ks[1], (cout,), jnp.float32) * 0.1
    if with_bn:
        gamma = 1.0 + 0.1 * jax.random.normal(ks[2], (cout,), jnp.float32)
        beta = 0.1 * jax.random.normal(ks[3], (cout,), jnp.float32)
        mean = 0.1 * jax.random.normal(ks[4], (cout,), jnp.float32)
        var = 1.0 + 0.1 * jnp.abs(jax.random.normal(ks[5], (cout,), jnp.float32))
        scale, bias = _fold_bn(b, gamma, beta, mean, var, eps)
    else:
        scale = jnp.ones((cout,), jnp.float32)
        bias = b
    w_hwio = jnp.transpose(w, (2, 3, 1, 0))   # (kh, kw, Cin, Cout)
    w_hwio = jnp.pad(w_hwio, ((0, 0), (0, 0),
                              (0, cin_pad - cin), (0, cout_pad - cout)))
    scale = jnp.pad(scale, (0, cout_pad - cout), constant_values=1.0)
    bias = jnp.pad(bias, (0, cout_pad - cout))
    return w_hwio, scale, bias


def make_convT_bn_params(key, cin, cout, eps=1e-5):
    """ConvTranspose2d(k=2, s=2) + folded eval-mode BN.
       Weight as (Cin, 4*Cout), column order (kh, kw, cout)."""
    ks = jax.random.split(key, 6)
    w = jax.random.normal(ks[0], (cin, cout, 2, 2), jnp.float32) * 0.1  # torch layout
    b = jax.random.normal(ks[1], (cout,), jnp.float32) * 0.1
    gamma = 1.0 + 0.1 * jax.random.normal(ks[2], (cout,), jnp.float32)
    beta = 0.1 * jax.random.normal(ks[3], (cout,), jnp.float32)
    mean = 0.1 * jax.random.normal(ks[4], (cout,), jnp.float32)
    var = 1.0 + 0.1 * jnp.abs(jax.random.normal(ks[5], (cout,), jnp.float32))
    scale, bias = _fold_bn(b, gamma, beta, mean, var, eps)
    w_mat = jnp.transpose(w, (0, 2, 3, 1)).reshape(cin, 4 * cout)
    return w_mat, jnp.tile(scale, 4), jnp.tile(bias, 4)


def init_ocrnet_params(key, in_channels, out_channels):
    k1, k2, k3, k4, k5 = jax.random.split(key, 5)
    cin_pad = ((in_channels + 7) // 8) * 8   # sublane-align conv1's tiny K
    return {
        "cin_pad": cin_pad,
        "out_channels": out_channels,
        "conv1": make_conv_bn_params(k1, in_channels, 64, cin_pad=cin_pad),
        "conv2": make_conv_bn_params(k2, 64, 64),
        "conv3": make_conv_bn_params(k3, 64, 64),
        "convT": make_convT_bn_params(k4, 64, 64),
        "conv4": make_conv_bn_params(k5, 64, out_channels,
                                     cout_pad=OUT_PAD, with_bn=False),
    }


# ----------------------------------------------------------------------------
# Forward pass
# ----------------------------------------------------------------------------
def ocrnet_forward(x_nchw, params):
    x = jnp.transpose(x_nchw, (0, 2, 3, 1)).astype(jnp.float32)   # NCHW -> NHWC
    N, H, W, Cin = x.shape
    assert H % 2 == 0 and W % 2 == 0, "MaxPool2d(2,2) needs even spatial dims"

    cin_pad = params["cin_pad"]
    x = jnp.pad(x, ((0, 0), (0, 0), (0, 0), (0, cin_pad - Cin)))

    # ---- encoder: Conv3x3 + BN + ReLU, fused MaxPool2d(2,2) ----
    w1, s1, b1 = params["conv1"]
    y1 = conv3x3_bn_act(x, w1, s1, b1, "relu")        # (N, H, W, 64) bf16
    yp = maxpool2x2(y1)                               # (N, H/2, W/2, 64)

    # ---- object context: (Conv3x3 + BN + ReLU) x 2 ----
    w2, s2, b2 = params["conv2"]
    y2 = conv3x3_bn_act(yp, w2, s2, b2, "relu")
    w3, s3, b3 = params["conv3"]
    y3 = conv3x3_bn_act(y2, w3, s3, b3, "relu")

    # ---- decoder: ConvTranspose2d(k=2, s=2) + BN + ReLU ----
    wT, sT, bT = params["convT"]
    h, w = H // 2, W // 2
    yt = matmul_bn_act(y3.reshape(N * h * w, 64), wT, sT, bT, "relu")
    # (kh, kw) interleave back to NHWC.
    # TODO(synk): fold this interleave into the matmul's out BlockSpec to save
    #             one HBM round trip of the (N, H, W, 64) tensor.
    yt = yt.reshape(N, h, w, 2, 2, 64).transpose(0, 1, 3, 2, 4, 5).reshape(N, H, W, 64)

    # ---- decoder: Conv3x3 (bias, no BN) + sigmoid, lane-dense padded output ----
    w4, s4, b4 = params["conv4"]
    out = conv3x3_bn_act(yt, w4, s4, b4, "sigmoid", out_dtype=jnp.float32)
    out = out[..., :params["out_channels"]]           # drop lane padding

    return jnp.transpose(out, (0, 3, 1, 2))           # back to NCHW


# ----------------------------------------------------------------------------
if __name__ == "__main__":
    in_channels, out_channels = 4, 3
    key = jax.random.PRNGKey(0)
    k_param, k_x = jax.random.split(key)

    params = init_ocrnet_params(k_param, in_channels, out_channels)
    x = jax.random.normal(k_x, (2, in_channels, 16, 16), jnp.float32)  # NCHW

    fwd = jax.jit(lambda xx: ocrnet_forward(xx, params))
    y = jax.block_until_ready(fwd(x))

    assert y.shape == (2, out_channels, 16, 16), y.shape
    assert bool(jnp.all(jnp.isfinite(y)))
    assert bool(jnp.all((y >= 0.0) & (y <= 1.0)))  # sigmoid output range
    print("KERNEL_OK")
</pallas_src>

<mosaic_0001>
module attributes {stable_mosaic.version = 11 : i64} {
  func.func @_conv3x3_row_kernel(%arg0: i32, %arg1: i32, %arg2: i32, %arg3: memref<1x1x18x8xbf16, #tpu.memory_space<vmem>>, %arg4: memref<3x3x8x64xbf16, #tpu.memory_space<vmem>>, %arg5: memref<1x64xf32, #tpu.memory_space<vmem>>, %arg6: memref<1x64xf32, #tpu.memory_space<vmem>>, %arg7: memref<1x1x16x64xbf16, #tpu.memory_space<vmem>>, %arg8: memref<16x64xf32, #tpu.memory_space<vmem>>) attributes {dimension_semantics = [#tpu.dimension_semantics<parallel>, #tpu.dimension_semantics<parallel>, #tpu.dimension_semantics<arbitrary>], iteration_bounds = array<i64: 2, 16, 3>, scalar_prefetch = 0 : i64, scratch_operands = 1 : i64, tpu.core_type = #tpu.core_type<tc>, window_params = [{transform_indices = @transform_0, window_bounds = array<i64: 1, 1, 18, 8>}, {pipeline_mode = #tpu.pipeline_mode<synchronous>, transform_indices = @transform_1, window_bounds = array<i64: 3, 3, 8, 64>}, {pipeline_mode = #tpu.pipeline_mode<synchronous>, transform_indices = @transform_2, window_bounds = array<i64: 1, 64>}, {pipeline_mode = #tpu.pipeline_mode<synchronous>, transform_indices = @transform_3, window_bounds = array<i64: 1, 64>}, {transform_indices = @transform_4, window_bounds = array<i64: 1, 1, 16, 64>}]} {
    %c0_i32 = arith.constant 0 : i32
    %0 = arith.cmpi eq, %arg2, %c0_i32 : i32
    %1 = arith.extui %0 : i1 to i32
    %c0_i32_0 = arith.constant 0 : i32
    %2 = arith.cmpi ne, %1, %c0_i32_0 : i32
    scf.if %2 {
      %cst_14 = arith.constant 0.000000e+00 : f32
      %28 = vector.broadcast %cst_14 : f32 to vector<16x64xf32>
      %c0_15 = arith.constant 0 : index
      %c0_16 = arith.constant 0 : index
      %29 = vector.load %arg8[%c0_15, %c0_16] : memref<16x64xf32, #tpu.memory_space<vmem>>, vector<16x64xf32>
      tpu.vector_store %arg8[%c0_15, %c0_16], %28 {strides = array<i32>} : memref<16x64xf32, #tpu.memory_space<vmem>>, vector<16x64xf32>,
    } else {
    }
    %c0 = arith.constant 0 : index
    %c0_1 = arith.constant 0 : index
    %c0_2 = arith.constant 0 : index
    %c0_3 = arith.constant 0 : index
    %3 = vector.load %arg3[%c0, %c0_1, %c0_2, %c0_3] : memref<1x1x18x8xbf16, #tpu.memory_space<vmem>>, vector<1x1x18x8xbf16>
    %4 = vector.shape_cast %3 : vector<1x1x18x8xbf16> to vector<18x8xbf16>
    %5 = arith.index_cast %arg2 : i32 to index
    %c0_4 = arith.constant 0 : index
    %c0_5 = arith.constant 0 : index
    %c0_6 = arith.constant 0 : index
    %6 = vector.load %arg4[%5, %c0_4, %c0_5, %c0_6] : memref<3x3x8x64xbf16, #tpu.memory_space<vmem>>, vector<1x3x8x64xbf16>
    %7 = vector.shape_cast %6 : vector<1x3x8x64xbf16> to vector<3x8x64xbf16>
    %c0_7 = arith.constant 0 : index
    %c0_8 = arith.constant 0 : index
    %8 = vector.load %arg8[%c0_7, %c0_8] : memref<16x64xf32, #tpu.memory_space<vmem>>, vector<16x64xf32>
    %9 = vector.extract_strided_slice %4 {offsets = [0, 0], sizes = [16, 8], strides = [1, 1]} : vector<18x8xbf16> to vector<16x8xbf16>
    %10 = vector.extract_strided_slice %7 {offsets = [0, 0, 0], sizes = [1, 8, 64], strides = [1, 1, 1]} : vector<3x8x64xbf16> to vector<1x8x64xbf16>
    %11 = vector.shape_cast %10 : vector<1x8x64xbf16> to vector<8x64xbf16>
    %cst = arith.constant dense<0.000000e+00> : vector<16x64xf32>
    %12 = tpu.matmul %9, %11, %cst {dimension_numbers = #tpu.dot_dimension_numbers<[1], [0], [0], [1], [0, 0, 1, 1], [], []>} : vector<16x8xbf16>, vector<8x64xbf16>, vector<16x64xf32> -> vector<16x64xf32>
    %13 = arith.addf %8, %12 : vector<16x64xf32>
    %14 = vector.extract_strided_slice %4 {offsets = [1, 0], sizes = [16, 8], strides = [1, 1]} : vector<18x8xbf16> to vector<16x8xbf16>
    %15 = vector.extract_strided_slice %7 {offsets = [1, 0, 0], sizes = [1, 8, 64], strides = [1, 1, 1]} : vector<3x8x64xbf16> to vector<1x8x64xbf16>
    %16 = vector.shape_cast %15 : vector<1x8x64xbf16> to vector<8x64xbf16>
    %cst_9 = arith.constant dense<0.000000e+00> : vector<16x64xf32>
    %17 = tpu.matmul %14, %16, %cst_9 {dimension_numbers = #tpu.dot_dimension_numbers<[1], [0], [0], [1], [0, 0, 1, 1], [], []>} : vector<16x8xbf16>, vector<8x64xbf16>, vector<16x64xf32> -> vector<16x64xf32>
    %18 = arith.addf %13, %17 : vector<16x64xf32>
    %19 = vector.extract_strided_slice %4 {offsets = [2, 0], sizes = [16, 8], strides = [1, 1]} : vector<18x8xbf16> to vector<16x8xbf16>
    %20 = vector.extract_strided_slice %7 {offsets = [2, 0, 0], sizes = [1, 8, 64], strides = [1, 1, 1]} : vector<3x8x64xbf16> to vector<1x8x64xbf16>
    %21 = vector.shape_cast %20 : vector<1x8x64xbf16> to vector<8x64xbf16>
    %cst_10 = arith.constant dense<0.000000e+00> : vector<16x64xf32>
    %22 = tpu.matmul %19, %21, %cst_10 {dimension_numbers = #tpu.dot_dimension_numbers<[1], [0], [0], [1], [0, 0, 1, 1], [], []>} : vector<16x8xbf16>, vector<8x64xbf16>, vector<16x64xf32> -> vector<16x64xf32>
    %23 = arith.addf %18, %22 : vector<16x64xf32>
    %c0_11 = arith.constant 0 : index
    %c0_12 = arith.constant 0 : index
    %24 = vector.load %arg8[%c0_11, %c0_12] : memref<16x64xf32, #tpu.memory_space<vmem>>, vector<16x64xf32>
    tpu.vector_store %arg8[%c0_11, %c0_12], %23 {strides = array<i32>} : memref<16x64xf32, #tpu.memory_space<vmem>>, vector<16x64xf32>,
    %c2_i32 = arith.constant 2 : i32
    %25 = arith.cmpi eq, %arg2, %c2_i32 : i32
    %26 = arith.extui %25 : i1 to i32
    %c0_i32_13 = arith.constant 0 : i32
    %27 = arith.cmpi ne, %26, %c0_i32_13 : i32
    scf.if %27 {
      %c0_14 = arith.constant 0 : index
      %c0_15 = arith.constant 0 : index
      %28 = vector.load %arg8[%c0_14, %c0_15] : memref<16x64xf32, #tpu.memory_space<vmem>>, vector<16x64xf32>
      %c0_16 = arith.constant 0 : index
      %c0_17 = arith.constant 0 : index
      %29 = vector.load %arg5[%c0_16, %c0_17] : memref<1x64xf32, #tpu.memory_space<vmem>>, vector<1x64xf32>
      %30 = vector.broadcast %29 : vector<1x64xf32> to vector<16x64xf32>
      %31 = arith.mulf %28, %30 : vector<16x64xf32>
      %c0_18 = arith.constant 0 : index
      %c0_19 = arith.constant 0 : index
      %32 = vector.load %arg6[%c0_18, %c0_19] : memref<1x64xf32, #tpu.memory_space<vmem>>, vector<1x64xf32>
      %33 = vector.broadcast %32 : vector<1x64xf32> to vector<16x64xf32>
      %34 = arith.addf %31, %33 : vector<16x64xf32>
      %cst_20 = arith.constant 0.000000e+00 : f32
      %35 = vector.broadcast %cst_20 : f32 to vector<16x64xf32>
      %36 = arith.maximumf %34, %35 : vector<16x64xf32>
      %37 = arith.truncf %36 : vector<16x64xf32> to vector<16x64xbf16>
      %c0_21 = arith.constant 0 : index
      %c0_22 = arith.constant 0 : index
      %c0_23 = arith.constant 0 : index
      %c0_24 = arith.constant 0 : index
      %38 = vector.load %arg7[%c0_21, %c0_22, %c0_23, %c0_24] : memref<1x1x16x64xbf16, #tpu.memory_space<vmem>>, vector<1x1x16x64xbf16>
      %39 = vector.shape_cast %38 : vector<1x1x16x64xbf16> to vector<16x64xbf16>
      %40 = vector.shape_cast %37 : vector<16x64xbf16> to vector<1x1x16x64xbf16>
      tpu.vector_store %arg7[%c0_21, %c0_22, %c0_23, %c0_24], %40 {strides = array<i32>} : memref<1x1x16x64xbf16, #tpu.memory_space<vmem>>, vector<1x1x16x64xbf16>,
    } else {
    }
    return
  }
  func.func @transform_0(%arg0: i32, %arg1: i32, %arg2: i32) -> (i32, i32, i32, i32) {
    %0 = arith.addi %arg1, %arg2 : i32
    %c0_i32 = arith.constant 0 : i32
    %c0_i32_0 = arith.constant 0 : i32
    %c0_i32_1 = arith.constant 0 : i32
    return %arg0, %0, %c0_i32, %c0_i32_0 : i32, i32, i32, i32
  }
  func.func @transform_1(%arg0: i32, %arg1: i32, %arg2: i32) -> (i32, i32, i32, i32) {
    %c0_i32 = arith.constant 0 : i32
    %c0_i32_0 = arith.constant 0 : i32
    %c0_i32_1 = arith.constant 0 : i32
    %c0_i32_2 = arith.constant 0 : i32
    %c0_i32_3 = arith.constant 0 : i32
    return %c0_i32, %c0_i32_0, %c0_i32_1, %c0_i32_2 : i32, i32, i32, i32
  }
  func.func @transform_2(%arg0: i32, %arg1: i32, %arg2: i32) -> (i32, i32) {
    %c0_i32 = arith.constant 0 : i32
    %c0_i32_0 = arith.constant 0 : i32
    %c0_i32_1 = arith.constant 0 : i32
    return %c0_i32, %c0_i32_0 : i32, i32
  }
  func.func @transform_3(%arg0: i32, %arg1: i32, %arg2: i32) -> (i32, i32) {
    %c0_i32 = arith.constant 0 : i32
    %c0_i32_0 = arith.constant 0 : i32
    %c0_i32_1 = arith.constant 0 : i32
    return %c0_i32, %c0_i32_0 : i32, i32
  }
  func.func @transform_4(%arg0: i32, %arg1: i32, %arg2: i32) -> (i32, i32, i32, i32) {
    %c0_i32 = arith.constant 0 : i32
    %c0_i32_0 = arith.constant 0 : i32
    %c0_i32_1 = arith.constant 0 : i32
    return %arg0, %arg1, %c0_i32, %c0_i32_0 : i32, i32, i32, i32
  }
}

module attributes {stable_mosaic.version = 11 : i64} {
  func.func @_matmul_affine_act_kernel(%arg0: i32, %arg1: memref<64x64xbf16, #tpu.memory_space<vmem>>, %arg2: memref<64x256xbf16, #tpu.memory_space<vmem>>, %arg3: memref<1x256xf32, #tpu.memory_space<vmem>>, %arg4: memref<1x256xf32, #tpu.memory_space<vmem>>, %arg5: memref<64x256xbf16, #tpu.memory_space<vmem>>) attributes {dimension_semantics = [#tpu.dimension_semantics<parallel>], iteration_bounds = array<i64: 2>, scalar_prefetch = 0 : i64, scratch_operands = 0 : i64, tpu.core_type = #tpu.core_type<tc>, window_params = [{transform_indices = @transform_0, window_bounds = array<i64: 64, 64>}, {pipeline_mode = #tpu.pipeline_mode<synchronous>, transform_indices = @transform_1, window_bounds = array<i64: 64, 256>}, {pipeline_mode = #tpu.pipeline_mode<synchronous>, transform_indices = @transform_2, window_bounds = array<i64: 1, 256>}, {pipeline_mode = #tpu.pipeline_mode<synchronous>, transform_indices = @transform_3, window_bounds = array<i64: 1, 256>}, {transform_indices = @transform_4, window_bounds = array<i64: 64, 256>}]} {
    %c0 = arith.constant 0 : index
    %c0_0 = arith.constant 0 : index
    %0 = vector.load %arg1[%c0, %c0_0] : memref<64x64xbf16, #tpu.memory_space<vmem>>, vector<64x64xbf16>
    %c0_1 = arith.constant 0 : index
    %c0_2 = arith.constant 0 : index
    %1 = vector.load %arg2[%c0_1, %c0_2] : memref<64x256xbf16, #tpu.memory_space<vmem>>, vector<64x256xbf16>
    %cst = arith.constant dense<0.000000e+00> : vector<64x256xf32>
    %2 = tpu.matmul %0, %1, %cst {dimension_numbers = #tpu.dot_dimension_numbers<[1], [0], [0], [1], [0, 0, 1, 1], [], []>} : vector<64x64xbf16>, vector<64x256xbf16>, vector<64x256xf32> -> vector<64x256xf32>
    %c0_3 = arith.constant 0 : index
    %c0_4 = arith.constant 0 : index
    %3 = vector.load %arg3[%c0_3, %c0_4] : memref<1x256xf32, #tpu.memory_space<vmem>>, vector<1x256xf32>
    %4 = vector.broadcast %3 : vector<1x256xf32> to vector<64x256xf32>
    %5 = arith.mulf %2, %4 : vector<64x256xf32>
    %c0_5 = arith.constant 0 : index
    %c0_6 = arith.constant 0 : index
    %6 = vector.load %arg4[%c0_5, %c0_6] : memref<1x256xf32, #tpu.memory_space<vmem>>, vector<1x256xf32>
    %7 = vector.broadcast %6 : vector<1x256xf32> to vector<64x256xf32>
    %8 = arith.addf %5, %7 : vector<64x256xf32>
    %cst_7 = arith.constant 0.000000e+00 : f32
    %9 = vector.broadcast %cst_7 : f32 to vector<64x256xf32>
    %10 = arith.maximumf %8, %9 : vector<64x256xf32>
    %11 = arith.truncf %10 : vector<64x256xf32> to vector<64x256xbf16>
    %c0_8 = arith.constant 0 : index
    %c0_9 = arith.constant 0 : index
    %12 = vector.load %arg5[%c0_8, %c0_9] : memref<64x256xbf16, #tpu.memory_space<vmem>>, vector<64x256xbf16>
    tpu.vector_store %arg5[%c0_8, %c0_9], %11 {strides = array<i32>} : memref<64x256xbf16, #tpu.memory_space<vmem>>, vector<64x256xbf16>,
    return
  }
  func.func @transform_0(%arg0: i32) -> (i32, i32) {
    %c0_i32 = arith.constant 0 : i32
    %c0_i32_0 = arith.constant 0 : i32
    return %arg0, %c0_i32 : i32, i32
  }
  func.func @transform_1(%arg0: i32) -> (i32, i32) {
    %c0_i32 = arith.constant 0 : i32
    %c0_i32_0 = arith.constant 0 : i32
    %c0_i32_1 = arith.constant 0 : i32
    return %c0_i32, %c0_i32_0 : i32, i32
  }
  func.func @transform_2(%arg0: i32) -> (i32, i32) {
    %c0_i32 = arith.constant 0 : i32
    %c0_i32_0 = arith.constant 0 : i32
    %c0_i32_1 = arith.constant 0 : i32
    return %c0_i32, %c0_i32_0 : i32, i32
  }
  func.func @transform_3(%arg0: i32) -> (i32, i32) {
    %c0_i32 = arith.constant 0 : i32
    %c0_i32_0 = arith.constant 0 : i32
    %c0_i32_1 = arith.constant 0 : i32
    return %c0_i32, %c0_i32_0 : i32, i32
  }
  func.func @transform_4(%arg0: i32) -> (i32, i32) {
    %c0_i32 = arith.constant 0 : i32
    %c0_i32_0 = arith.constant 0 : i32
    return %arg0, %c0_i32 : i32, i32
  }
}

module attributes {stable_mosaic.version = 11 : i64} {
  func.func @_maxpool2x2_kernel(%arg0: i32, %arg1: i32, %arg2: memref<1x16x16x64xbf16, #tpu.memory_space<vmem>>, %arg3: memref<1x8x8x64xbf16, #tpu.memory_space<vmem>>) attributes {dimension_semantics = [#tpu.dimension_semantics<parallel>, #tpu.dimension_semantics<parallel>], iteration_bounds = array<i64: 2, 1>, scalar_prefetch = 0 : i64, scratch_operands = 0 : i64, tpu.core_type = #tpu.core_type<tc>, window_params = [{transform_indices = @transform_0, window_bounds = array<i64: 1, 16, 16, 64>}, {transform_indices = @transform_1, window_bounds = array<i64: 1, 8, 8, 64>}]} {
    %c0 = arith.constant 0 : index
    %c0_0 = arith.constant 0 : index
    %c0_1 = arith.constant 0 : index
    %c0_2 = arith.constant 0 : index
    %0 = vector.load %arg2[%c0, %c0_0, %c0_1, %c0_2] : memref<1x16x16x64xbf16, #tpu.memory_space<vmem>>, vector<1x16x16x64xbf16>
    %1 = vector.shape_cast %0 : vector<1x16x16x64xbf16> to vector<16x16x64xbf16>
    %2 = arith.extf %1 : vector<16x16x64xbf16> to vector<16x16x64xf32>
    %3 = vector.shape_cast %2 : vector<16x16x64xf32> to vector<8x2x16x64xf32>
    %4 = vector.extract_strided_slice %3 {offsets = [0, 0, 0, 0], sizes = [8, 1, 16, 64], strides = [1, 1, 1, 1]} : vector<8x2x16x64xf32> to vector<8x1x16x64xf32>
    %5 = vector.shape_cast %4 : vector<8x1x16x64xf32> to vector<8x16x64xf32>
    %6 = vector.extract_strided_slice %3 {offsets = [0, 1, 0, 0], sizes = [8, 1, 16, 64], strides = [1, 1, 1, 1]} : vector<8x2x16x64xf32> to vector<8x1x16x64xf32>
    %7 = vector.shape_cast %6 : vector<8x1x16x64xf32> to vector<8x16x64xf32>
    %8 = arith.maximumf %5, %7 : vector<8x16x64xf32>
    %9 = vector.shape_cast %8 : vector<8x16x64xf32> to vector<8x8x2x64xf32>
    %10 = vector.extract_strided_slice %9 {offsets = [0, 0, 0, 0], sizes = [8, 8, 1, 64], strides = [1, 1, 1, 1]} : vector<8x8x2x64xf32> to vector<8x8x1x64xf32>
    %11 = vector.shape_cast %10 : vector<8x8x1x64xf32> to vector<8x8x64xf32>
    %12 = vector.extract_strided_slice %9 {offsets = [0, 0, 1, 0], sizes = [8, 8, 1, 64], strides = [1, 1, 1, 1]} : vector<8x8x2x64xf32> to vector<8x8x1x64xf32>
    %13 = vector.shape_cast %12 : vector<8x8x1x64xf32> to vector<8x8x64xf32>
    %14 = arith.maximumf %11, %13 : vector<8x8x64xf32>
    %15 = arith.truncf %14 : vector<8x8x64xf32> to vector<8x8x64xbf16>
    %c0_3 = arith.constant 0 : index
    %c0_4 = arith.constant 0 : index
    %c0_5 = arith.constant 0 : index
    %c0_6 = arith.constant 0 : index
    %16 = vector.load %arg3[%c0_3, %c0_4, %c0_5, %c0_6] : memref<1x8x8x64xbf16, #tpu.memory_space<vmem>>, vector<1x8x8x64xbf16>
    %17 = vector.shape_cast %16 : vector<1x8x8x64xbf16> to vector<8x8x64xbf16>
    %18 = vector.shape_cast %15 : vector<8x8x64xbf16> to vector<1x8x8x64xbf16>
    tpu.vector_store %arg3[%c0_3, %c0_4, %c0_5, %c0_6], %18 {strides = array<i32>} : memref<1x8x8x64xbf16, #tpu.memory_space<vmem>>, vector<1x8x8x64xbf16>,
    return
  }
  func.func @transform_0(%arg0: i32, %arg1: i32) -> (i32, i32, i32, i32) {
    %c0_i32 = arith.constant 0 : i32
    %c0_i32_0 = arith.constant 0 : i32
    %c0_i32_1 = arith.constant 0 : i32
    return %arg0, %arg1, %c0_i32, %c0_i32_0 : i32, i32, i32, i32
  }
  func.func @transform_1(%arg0: i32, %arg1: i32) -> (i32, i32, i32, i32) {
    %c0_i32 = arith.constant 0 : i32
    %c0_i32_0 = arith.constant 0 : i32
    %c0_i32_1 = arith.constant 0 : i32
    return %arg0, %arg1, %c0_i32, %c0_i32_0 : i32, i32, i32, i32
  }
}

module attributes {stable_mosaic.version = 11 : i64} {
  func.func @_conv3x3_row_kernel(%arg0: i32, %arg1: i32, %arg2: i32, %arg3: memref<1x1x10x64xbf16, #tpu.memory_space<vmem>>, %arg4: memref<3x3x64x64xbf16, #tpu.memory_space<vmem>>, %arg5: memref<1x64xf32, #tpu.memory_space<vmem>>, %arg6: memref<1x64xf32, #tpu.memory_space<vmem>>, %arg7: memref<1x1x8x64xbf16, #tpu.memory_space<vmem>>, %arg8: memref<8x64xf32, #tpu.memory_space<vmem>>) attributes {dimension_semantics = [#tpu.dimension_semantics<parallel>, #tpu.dimension_semantics<parallel>, #tpu.dimension_semantics<arbitrary>], iteration_bounds = array<i64: 2, 8, 3>, scalar_prefetch = 0 : i64, scratch_operands = 1 : i64, tpu.core_type = #tpu.core_type<tc>, window_params = [{transform_indices = @transform_0, window_bounds = array<i64: 1, 1, 10, 64>}, {pipeline_mode = #tpu.pipeline_mode<synchronous>, transform_indices = @transform_1, window_bounds = array<i64: 3, 3, 64, 64>}, {pipeline_mode = #tpu.pipeline_mode<synchronous>, transform_indices = @transform_2, window_bounds = array<i64: 1, 64>}, {pipeline_mode = #tpu.pipeline_mode<synchronous>, transform_indices = @transform_3, window_bounds = array<i64: 1, 64>}, {transform_indices = @transform_4, window_bounds = array<i64: 1, 1, 8, 64>}]} {
    %c0_i32 = arith.constant 0 : i32
    %0 = arith.cmpi eq, %arg2, %c0_i32 : i32
    %1 = arith.extui %0 : i1 to i32
    %c0_i32_0 = arith.constant 0 : i32
    %2 = arith.cmpi ne, %1, %c0_i32_0 : i32
    scf.if %2 {
      %cst_14 = arith.constant 0.000000e+00 : f32
      %28 = vector.broadcast %cst_14 : f32 to vector<8x64xf32>
      %c0_15 = arith.constant 0 : index
      %c0_16 = arith.constant 0 : index
      %29 = vector.load %arg8[%c0_15, %c0_16] : memref<8x64xf32, #tpu.memory_space<vmem>>, vector<8x64xf32>
      tpu.vector_store %arg8[%c0_15, %c0_16], %28 {strides = array<i32>} : memref<8x64xf32, #tpu.memory_space<vmem>>, vector<8x64xf32>,
    } else {
    }
    %c0 = arith.constant 0 : index
    %c0_1 = arith.constant 0 : index
    %c0_2 = arith.constant 0 : index
    %c0_3 = arith.constant 0 : index
    %3 = vector.load %arg3[%c0, %c0_1, %c0_2, %c0_3] : memref<1x1x10x64xbf16, #tpu.memory_space<vmem>>, vector<1x1x10x64xbf16>
    %4 = vector.shape_cast %3 : vector<1x1x10x64xbf16> to vector<10x64xbf16>
    %5 = arith.index_cast %arg2 : i32 to index
    %c0_4 = arith.constant 0 : index
    %c0_5 = arith.constant 0 : index
    %c0_6 = arith.constant 0 : index
    %6 = vector.load %arg4[%5, %c0_4, %c0_5, %c0_6] : memref<3x3x64x64xbf16, #tpu.memory_space<vmem>>, vector<1x3x64x64xbf16>
    %7 = vector.shape_cast %6 : vector<1x3x64x64xbf16> to vector<3x64x64xbf16>
    %c0_7 = arith.constant 0 : index
    %c0_8 = arith.constant 0 : index
    %8 = vector.load %arg8[%c0_7, %c0_8] : memref<8x64xf32, #tpu.memory_space<vmem>>, vector<8x64xf32>
    %9 = vector.extract_strided_slice %4 {offsets = [0, 0], sizes = [8, 64], strides = [1, 1]} : vector<10x64xbf16> to vector<8x64xbf16>
    %10 = vector.extract_strided_slice %7 {offsets = [0, 0, 0], sizes = [1, 64, 64], strides = [1, 1, 1]} : vector<3x64x64xbf16> to vector<1x64x64xbf16>
    %11 = vector.shape_cast %10 : vector<1x64x64xbf16> to vector<64x64xbf16>
    %cst = arith.constant dense<0.000000e+00> : vector<8x64xf32>
    %12 = tpu.matmul %9, %11, %cst {dimension_numbers = #tpu.dot_dimension_numbers<[1], [0], [0], [1], [0, 0, 1, 1], [], []>} : vector<8x64xbf16>, vector<64x64xbf16>, vector<8x64xf32> -> vector<8x64xf32>
    %13 = arith.addf %8, %12 : vector<8x64xf32>
    %14 = vector.extract_strided_slice %4 {offsets = [1, 0], sizes = [8, 64], strides = [1, 1]} : vector<10x64xbf16> to vector<8x64xbf16>
    %15 = vector.extract_strided_slice %7 {offsets = [1, 0, 0], sizes = [1, 64, 64], strides = [1, 1, 1]} : vector<3x64x64xbf16> to vector<1x64x64xbf16>
    %16 = vector.shape_cast %15 : vector<1x64x64xbf16> to vector<64x64xbf16>
    %cst_9 = arith.constant dense<0.000000e+00> : vector<8x64xf32>
    %17 = tpu.matmul %14, %16, %cst_9 {dimension_numbers = #tpu.dot_dimension_numbers<[1], [0], [0], [1], [0, 0, 1, 1], [], []>} : vector<8x64xbf16>, vector<64x64xbf16>, vector<8x64xf32> -> vector<8x64xf32>
    %18 = arith.addf %13, %17 : vector<8x64xf32>
    %19 = vector.extract_strided_slice %4 {offsets = [2, 0], sizes = [8, 64], strides = [1, 1]} : vector<10x64xbf16> to vector<8x64xbf16>
    %20 = vector.extract_strided_slice %7 {offsets = [2, 0, 0], sizes = [1, 64, 64], strides = [1, 1, 1]} : vector<3x64x64xbf16> to vector<1x64x64xbf16>
    %21 = vector.shape_cast %20 : vector<1x64x64xbf16> to vector<64x64xbf16>
    %cst_10 = arith.constant dense<0.000000e+00> : vector<8x64xf32>
    %22 = tpu.matmul %19, %21, %cst_10 {dimension_numbers = #tpu.dot_dimension_numbers<[1], [0], [0], [1], [0, 0, 1, 1], [], []>} : vector<8x64xbf16>, vector<64x64xbf16>, vector<8x64xf32> -> vector<8x64xf32>
    %23 = arith.addf %18, %22 : vector<8x64xf32>
    %c0_11 = arith.constant 0 : index
    %c0_12 = arith.constant 0 : index
    %24 = vector.load %arg8[%c0_11, %c0_12] : memref<8x64xf32, #tpu.memory_space<vmem>>, vector<8x64xf32>
    tpu.vector_store %arg8[%c0_11, %c0_12], %23 {strides = array<i32>} : memref<8x64xf32, #tpu.memory_space<vmem>>, vector<8x64xf32>,
    %c2_i32 = arith.constant 2 : i32
    %25 = arith.cmpi eq, %arg2, %c2_i32 : i32
    %26 = arith.extui %25 : i1 to i32
    %c0_i32_13 = arith.constant 0 : i32
    %27 = arith.cmpi ne, %26, %c0_i32_13 : i32
    scf.if %27 {
      %c0_14 = arith.constant 0 : index
      %c0_15 = arith.constant 0 : index
      %28 = vector.load %arg8[%c0_14, %c0_15] : memref<8x64xf32, #tpu.memory_space<vmem>>, vector<8x64xf32>
      %c0_16 = arith.constant 0 : index
      %c0_17 = arith.constant 0 : index
      %29 = vector.load %arg5[%c0_16, %c0_17] : memref<1x64xf32, #tpu.memory_space<vmem>>, vector<1x64xf32>
      %30 = vector.broadcast %29 : vector<1x64xf32> to vector<8x64xf32>
      %31 = arith.mulf %28, %30 : vector<8x64xf32>
      %c0_18 = arith.constant 0 : index
      %c0_19 = arith.constant 0 : index
      %32 = vector.load %arg6[%c0_18, %c0_19] : memref<1x64xf32, #tpu.memory_space<vmem>>, vector<1x64xf32>
      %33 = vector.broadcast %32 : vector<1x64xf32> to vector<8x64xf32>
      %34 = arith.addf %31, %33 : vector<8x64xf32>
      %cst_20 = arith.constant 0.000000e+00 : f32
      %35 = vector.broadcast %cst_20 : f32 to vector<8x64xf32>
      %36 = arith.maximumf %34, %35 : vector<8x64xf32>
      %37 = arith.truncf %36 : vector<8x64xf32> to vector<8x64xbf16>
      %c0_21 = arith.constant 0 : index
      %c0_22 = arith.constant 0 : index
      %c0_23 = arith.constant 0 : index
      %c0_24 = arith.constant 0 : index
      %38 = vector.load %arg7[%c0_21, %c0_22, %c0_23, %c0_24] : memref<1x1x8x64xbf16, #tpu.memory_space<vmem>>, vector<1x1x8x64xbf16>
      %39 = vector.shape_cast %38 : vector<1x1x8x64xbf16> to vector<8x64xbf16>
      %40 = vector.shape_cast %37 : vector<8x64xbf16> to vector<1x1x8x64xbf16>
      tpu.vector_store %arg7[%c0_21, %c0_22, %c0_23, %c0_24], %40 {strides = array<i32>} : memref<1x1x8x64xbf16, #tpu.memory_space<vmem>>, vector<1x1x8x64xbf16>,
    } else {
    }
    return
  }
  func.func @transform_0(%arg0: i32, %arg1: i32, %arg2: i32) -> (i32, i32, i32, i32) {
    %0 = arith.addi %arg1, %arg2 : i32
    %c0_i32 = arith.constant 0 : i32
    %c0_i32_0 = arith.constant 0 : i32
    %c0_i32_1 = arith.constant 0 : i32
    return %arg0, %0, %c0_i32, %c0_i32_0 : i32, i32, i32, i32
  }
  func.func @transform_1(%arg0: i32, %arg1: i32, %arg2: i32) -> (i32, i32, i32, i32) {
    %c0_i32 = arith.constant 0 : i32
    %c0_i32_0 = arith.constant 0 : i32
    %c0_i32_1 = arith.constant 0 : i32
    %c0_i32_2 = arith.constant 0 : i32
    %c0_i32_3 = arith.constant 0 : i32
    return %c0_i32, %c0_i32_0, %c0_i32_1, %c0_i32_2 : i32, i32, i32, i32
  }
  func.func @transform_2(%arg0: i32, %arg1: i32, %arg2: i32) -> (i32, i32) {
    %c0_i32 = arith.constant 0 : i32
    %c0_i32_0 = arith.constant 0 : i32
    %c0_i32_1 = arith.constant 0 : i32
    return %c0_i32, %c0_i32_0 : i32, i32
  }
  func.func @transform_3(%arg0: i32, %arg1: i32, %arg2: i32) -> (i32, i32) {
    %c0_i32 = arith.constant 0 : i32
    %c0_i32_0 = arith.constant 0 : i32
    %c0_i32_1 = arith.constant 0 : i32
    return %c0_i32, %c0_i32_0 : i32, i32
  }
  func.func @transform_4(%arg0: i32, %arg1: i32, %arg2: i32) -> (i32, i32, i32, i32) {
    %c0_i32 = arith.constant 0 : i32
    %c0_i32_0 = arith.constant 0 : i32
    %c0_i32_1 = arith.constant 0 : i32
    return %arg0, %arg1, %c0_i32, %c0_i32_0 : i32, i32, i32, i32
  }
}

module attributes {stable_mosaic.version = 11 : i64} {
  func.func @_conv3x3_row_kernel(%arg0: i32, %arg1: i32, %arg2: i32, %arg3: memref<1x1x18x64xbf16, #tpu.memory_space<vmem>>, %arg4: memref<3x3x64x128xbf16, #tpu.memory_space<vmem>>, %arg5: memref<1x128xf32, #tpu.memory_space<vmem>>, %arg6: memref<1x128xf32, #tpu.memory_space<vmem>>, %arg7: memref<1x1x16x128xf32, #tpu.memory_space<vmem>>, %arg8: memref<16x128xf32, #tpu.memory_space<vmem>>) attributes {dimension_semantics = [#tpu.dimension_semantics<parallel>, #tpu.dimension_semantics<parallel>, #tpu.dimension_semantics<arbitrary>], iteration_bounds = array<i64: 2, 16, 3>, scalar_prefetch = 0 : i64, scratch_operands = 1 : i64, tpu.core_type = #tpu.core_type<tc>, window_params = [{transform_indices = @transform_0, window_bounds = array<i64: 1, 1, 18, 64>}, {pipeline_mode = #tpu.pipeline_mode<synchronous>, transform_indices = @transform_1, window_bounds = array<i64: 3, 3, 64, 128>}, {pipeline_mode = #tpu.pipeline_mode<synchronous>, transform_indices = @transform_2, window_bounds = array<i64: 1, 128>}, {pipeline_mode = #tpu.pipeline_mode<synchronous>, transform_indices = @transform_3, window_bounds = array<i64: 1, 128>}, {transform_indices = @transform_4, window_bounds = array<i64: 1, 1, 16, 128>}]} {
    %c0_i32 = arith.constant 0 : i32
    %0 = arith.cmpi eq, %arg2, %c0_i32 : i32
    %1 = arith.extui %0 : i1 to i32
    %c0_i32_0 = arith.constant 0 : i32
    %2 = arith.cmpi ne, %1, %c0_i32_0 : i32
    scf.if %2 {
      %cst_14 = arith.constant 0.000000e+00 : f32
      %28 = vector.broadcast %cst_14 : f32 to vector<16x128xf32>
      %c0_15 = arith.constant 0 : index
      %c0_16 = arith.constant 0 : index
      %29 = vector.load %arg8[%c0_15, %c0_16] : memref<16x128xf32, #tpu.memory_space<vmem>>, vector<16x128xf32>
      tpu.vector_store %arg8[%c0_15, %c0_16], %28 {strides = array<i32>} : memref<16x128xf32, #tpu.memory_space<vmem>>, vector<16x128xf32>,
    } else {
    }
    %c0 = arith.constant 0 : index
    %c0_1 = arith.constant 0 : index
    %c0_2 = arith.constant 0 : index
    %c0_3 = arith.constant 0 : index
    %3 = vector.load %arg3[%c0, %c0_1, %c0_2, %c0_3] : memref<1x1x18x64xbf16, #tpu.memory_space<vmem>>, vector<1x1x18x64xbf16>
    %4 = vector.shape_cast %3 : vector<1x1x18x64xbf16> to vector<18x64xbf16>
    %5 = arith.index_cast %arg2 : i32 to index
    %c0_4 = arith.constant 0 : index
    %c0_5 = arith.constant 0 : index
    %c0_6 = arith.constant 0 : index
    %6 = vector.load %arg4[%5, %c0_4, %c0_5, %c0_6] : memref<3x3x64x128xbf16, #tpu.memory_space<vmem>>, vector<1x3x64x128xbf16>
    %7 = vector.shape_cast %6 : vector<1x3x64x128xbf16> to vector<3x64x128xbf16>
    %c0_7 = arith.constant 0 : index
    %c0_8 = arith.constant 0 : index
    %8 = vector.load %arg8[%c0_7, %c0_8] : memref<16x128xf32, #tpu.memory_space<vmem>>, vector<16x128xf32>
    %9 = vector.extract_strided_slice %4 {offsets = [0, 0], sizes = [16, 64], strides = [1, 1]} : vector<18x64xbf16> to vector<16x64xbf16>
    %10 = vector.extract_strided_slice %7 {offsets = [0, 0, 0], sizes = [1, 64, 128], strides = [1, 1, 1]} : vector<3x64x128xbf16> to vector<1x64x128xbf16>
    %11 = vector.shape_cast %10 : vector<1x64x128xbf16> to vector<64x128xbf16>
    %cst = arith.constant dense<0.000000e+00> : vector<16x128xf32>
    %12 = tpu.matmul %9, %11, %cst {dimension_numbers = #tpu.dot_dimension_numbers<[1], [0], [0], [1], [0, 0, 1, 1], [], []>} : vector<16x64xbf16>, vector<64x128xbf16>, vector<16x128xf32> -> vector<16x128xf32>
    %13 = arith.addf %8, %12 : vector<16x128xf32>
    %14 = vector.extract_strided_slice %4 {offsets = [1, 0], sizes = [16, 64], strides = [1, 1]} : vector<18x64xbf16> to vector<16x64xbf16>
    %15 = vector.extract_strided_slice %7 {offsets = [1, 0, 0], sizes = [1, 64, 128], strides = [1, 1, 1]} : vector<3x64x128xbf16> to vector<1x64x128xbf16>
    %16 = vector.shape_cast %15 : vector<1x64x128xbf16> to vector<64x128xbf16>
    %cst_9 = arith.constant dense<0.000000e+00> : vector<16x128xf32>
    %17 = tpu.matmul %14, %16, %cst_9 {dimension_numbers = #tpu.dot_dimension_numbers<[1], [0], [0], [1], [0, 0, 1, 1], [], []>} : vector<16x64xbf16>, vector<64x128xbf16>, vector<16x128xf32> -> vector<16x128xf32>
    %18 = arith.addf %13, %17 : vector<16x128xf32>
    %19 = vector.extract_strided_slice %4 {offsets = [2, 0], sizes = [16, 64], strides = [1, 1]} : vector<18x64xbf16> to vector<16x64xbf16>
    %20 = vector.extract_strided_slice %7 {offsets = [2, 0, 0], sizes = [1, 64, 128], strides = [1, 1, 1]} : vector<3x64x128xbf16> to vector<1x64x128xbf16>
    %21 = vector.shape_cast %20 : vector<1x64x128xbf16> to vector<64x128xbf16>
    %cst_10 = arith.constant dense<0.000000e+00> : vector<16x128xf32>
    %22 = tpu.matmul %19, %21, %cst_10 {dimension_numbers = #tpu.dot_dimension_numbers<[1], [0], [0], [1], [0, 0, 1, 1], [], []>} : vector<16x64xbf16>, vector<64x128xbf16>, vector<16x128xf32> -> vector<16x128xf32>
    %23 = arith.addf %18, %22 : vector<16x128xf32>
    %c0_11 = arith.constant 0 : index
    %c0_12 = arith.constant 0 : index
    %24 = vector.load %arg8[%c0_11, %c0_12] : memref<16x128xf32, #tpu.memory_space<vmem>>, vector<16x128xf32>
    tpu.vector_store %arg8[%c0_11, %c0_12], %23 {strides = array<i32>} : memref<16x128xf32, #tpu.memory_space<vmem>>, vector<16x128xf32>,
    %c2_i32 = arith.constant 2 : i32
    %25 = arith.cmpi eq, %arg2, %c2_i32 : i32
    %26 = arith.extui %25 : i1 to i32
    %c0_i32_13 = arith.constant 0 : i32
    %27 = arith.cmpi ne, %26, %c0_i32_13 : i32
    scf.if %27 {
      %c0_14 = arith.constant 0 : index
      %c0_15 = arith.constant 0 : index
      %28 = vector.load %arg8[%c0_14, %c0_15] : memref<16x128xf32, #tpu.memory_space<vmem>>, vector<16x128xf32>
      %c0_16 = arith.constant 0 : index
      %c0_17 = arith.constant 0 : index
      %29 = vector.load %arg5[%c0_16, %c0_17] : memref<1x128xf32, #tpu.memory_space<vmem>>, vector<1x128xf32>
      %30 = vector.broadcast %29 : vector<1x128xf32> to vector<16x128xf32>
      %31 = arith.mulf %28, %30 : vector<16x128xf32>
      %c0_18 = arith.constant 0 : index
      %c0_19 = arith.constant 0 : index
      %32 = vector.load %arg6[%c0_18, %c0_19] : memref<1x128xf32, #tpu.memory_space<vmem>>, vector<1x128xf32>
      %33 = vector.broadcast %32 : vector<1x128xf32> to vector<16x128xf32>
      %34 = arith.addf %31, %33 : vector<16x128xf32>
      %35 = arith.negf %34 : vector<16x128xf32>
      %36 = math.exp %35 : vector<16x128xf32>
      %cst_20 = arith.constant 1.000000e+00 : f32
      %37 = vector.broadcast %cst_20 : f32 to vector<16x128xf32>
      %38 = arith.addf %37, %36 : vector<16x128xf32>
      %39 = arith.divf %37, %38 : vector<16x128xf32>
      %c0_21 = arith.constant 0 : index
      %c0_22 = arith.constant 0 : index
      %c0_23 = arith.constant 0 : index
      %c0_24 = arith.constant 0 : index
      %40 = vector.load %arg7[%c0_21, %c0_22, %c0_23, %c0_24] : memref<1x1x16x128xf32, #tpu.memory_space<vmem>>, vector<1x1x16x128xf32>
      %41 = vector.shape_cast %40 : vector<1x1x16x128xf32> to vector<16x128xf32>
      %42 = vector.shape_cast %39 : vector<16x128xf32> to vector<1x1x16x128xf32>
      tpu.vector_store %arg7[%c0_21, %c0_22, %c0_23, %c0_24], %42 {strides = array<i32>} : memref<1x1x16x128xf32, #tpu.memory_space<vmem>>, vector<1x1x16x128xf32>,
    } else {
    }
    return
  }
  func.func @transform_0(%arg0: i32, %arg1: i32, %arg2: i32) -> (i32, i32, i32, i32) {
    %0 = arith.addi %arg1, %arg2 : i32
    %c0_i32 = arith.constant 0 : i32
    %c0_i32_0 = arith.constant 0 : i32
    %c0_i32_1 = arith.constant 0 : i32
    return %arg0, %0, %c0_i32, %c0_i32_0 : i32, i32, i32, i32
  }
  func.func @transform_1(%arg0: i32, %arg1: i32, %arg2: i32) -> (i32, i32, i32, i32) {
    %c0_i32 = arith.constant 0 : i32
    %c0_i32_0 = arith.constant 0 : i32
    %c0_i32_1 = arith.constant 0 : i32
    %c0_i32_2 = arith.constant 0 : i32
    %c0_i32_3 = arith.constant 0 : i32
    return %c0_i32, %c0_i32_0, %c0_i32_1, %c0_i32_2 : i32, i32, i32, i32
  }
  func.func @transform_2(%arg0: i32, %arg1: i32, %arg2: i32) -> (i32, i32) {
    %c0_i32 = arith.constant 0 : i32
    %c0_i32_0 = arith.constant 0 : i32
    %c0_i32_1 = arith.constant 0 : i32
    return %c0_i32, %c0_i32_0 : i32, i32
  }
  func.func @transform_3(%arg0: i32, %arg1: i32, %arg2: i32) -> (i32, i32) {
    %c0_i32 = arith.constant 0 : i32
    %c0_i32_0 = arith.constant 0 : i32
    %c0_i32_1 = arith.constant 0 : i32
    return %c0_i32, %c0_i32_0 : i32, i32
  }
  func.func @transform_4(%arg0: i32, %arg1: i32, %arg2: i32) -> (i32, i32, i32, i32) {
    %c0_i32 = arith.constant 0 : i32
    %c0_i32_0 = arith.constant 0 : i32
    %c0_i32_1 = arith.constant 0 : i32
    return %arg0, %arg1, %c0_i32, %c0_i32_0 : i32, i32, i32, i32
  }
}

</mosaic_0001>

<llo_original>
// kernel: _lambda_.6
$region0: #{_lambda_.6}
  #allocation0 [shape = 'u32[]', space=smem, size = 0x4, offset = 0x4, fixed_abs, tag = 'smem constant byte address 0x4 - core index']
  #allocation1 [shape = 'u32[72,128]{1,0:T(1,128)}', space=vmem, size = 0x9000, scoped, tag = 'internal scratch']
  #allocation2 [shape = 'f32[16,64]{1,0:T(8,128)}', space=vmem, size = 0x2000, scoped, tag = 'scratch operand']
  %s0 = inlined_call_operand.vmem [shape: bf16[2,18,18,8], index: 0, kind: input, shape index: {}]
  %s1 = inlined_call_operand.vmem [shape: bf16[3,3,8,64], index: 1, kind: input, shape index: {}]
  %s2 = inlined_call_operand.vmem [shape: f32[1,64], index: 2, kind: input, shape index: {}]
  %s3 = inlined_call_operand.vmem [shape: f32[1,64], index: 3, kind: input, shape index: {}]
  %s4 = inlined_call_operand.vmem [shape: bf16[2,16,16,64], index: 4, kind: output, shape index: {}]
  %s5 = sld [smem:[#allocation0]]
  $region57: #{_lambda_.6} parent=0
    _
  %s7 = ssub.s32 1, %s5
  %s8 = scalar_select 0, %s7, %s5
  loop: start=0, step=1, limit=98
  $region2: #{_lambda_.6} parent=0 // loop_pre_header
    _
  $region3: #{_lambda_.6} parent=0 // loop_header
    %s10 = sphi 0, %s14
    %p11 = scmp.ge.s32.totalorder %s10, 98
    %s17 = sphi 0, %s36
    %s18 = sphi 0, %s32
    %s19 = sphi 0, %s28
    %s20 = sphi 0, %s17
    %s21 = sphi 0, %s18
    %s22 = sphi 0, %s19
    %s23 = sphi 0, %s20
    %s24 = sphi 0, %s21
    %s25 = sphi 0, %s22
    %s43 = sphi 0, %s45
    %s46 = sphi 0, %s43
    %s47 = sphi 0, %s46
    %s63 = sphi 0, %s47
    %s67 = sphi 0, %s67
    %s69 = sphi 0, %s67
    %s70 = sphi 0, %s69
    %s84 = sphi 0, %s70
    %s88 = sphi 0, %s88
    %s90 = sphi 0, %s88
    %s91 = sphi 0, %s90
    %s105 = sphi 0, %s91
    %s109 = sphi 0, %s109
    %s111 = sphi 0, %s109
    %s112 = sphi 0, %s111
    %s126 = sphi 0, %s112
    %s134 = sphi 0, %s136
    %s137 = sphi 0, %s134
    %s138 = sphi 0, %s137
    %s154 = sphi 0, %s138
  $region4: #{_lambda_.6} parent=0 // loop_header_branch
    %13 = sbr.rel (%p11) target = $region8
  $region5: #{_lambda_.6} parent=0 // loop_body
    %s15 = ssub.s32 %s10, 1
    %s16 = ssub.s32 %s10, 2
    %s26 = sadd.s32 1, %s19
    %p27 = scmp.ge.s32.totalorder %s26, 3
    %s28 = scalar_select %p27, 0, %s26
    %s29 = sadd.s32 1, %s18
    %s30 = scalar_select %p27, %s29, %s18
    %p31 = scmp.ge.s32.totalorder %s30, 16
    %s32 = scalar_select %p31, 0, %s30
    %s33 = sadd.s32 1, %s17
    %s34 = scalar_select %p31, %s33, %s17
    %p35 = scmp.ge.s32.totalorder %s34, 2
    %s36 = scalar_select %p35, 0, %s34
    %s37 = sadd.s32 %s18, %s19
    %s38 = sadd.s32 %s32, %s28
    %s39 = ssub.s32 %s17, %s36
    %s40 = ssub.s32 %s37, %s38
    %s41 = sor.u32 %s39, %s40
    %p42 = scmp.eq.s32.totalorder %s41, 0
    %s44 = sadd.s32 %s43, 1
    %s45 = scalar_select %p42, %s43, %s44
    %p48 = pneg %p42
    %p49 = scmp.eq.s32.totalorder %s10, 95
    %p50 = por %p48, %p49
    %p51 = scmp.ne.s32.totalorder %s43, %s46
    %p52 = scmp.eq.s32.totalorder %s10, 0
    %p53 = por %p51, %p52
    %p54 = scmp.ne.s32.totalorder %s43, %s46
    %p55 = scmp.eq.s32.totalorder %s15, 95
    %p56 = por %p54, %p55
    %p57 = scmp.ne.s32.totalorder %s46, %s47
    %p58 = scmp.eq.s32.totalorder %s15, 0
    %p59 = por %p57, %p58
    %p60 = scmp.ne.s32.totalorder %s46, %s47
    %p61 = scmp.eq.s32.totalorder %s16, 95
    %p62 = por %p60, %p61
    %p64 = scmp.ne.s32.totalorder %s47, %s63
    %p65 = scmp.eq.s32.totalorder %s16, 0
    %p66 = por %p64, %p65
    %s68 = sadd.s32 %s67, 1
    %p71 = scmp.eq.s32.totalorder %s10, 95
    %p72 = scmp.ne.s32.totalorder %s67, %s69
    %p73 = scmp.eq.s32.totalorder %s10, 0
    %p74 = por %p72, %p73
    %p75 = scmp.ne.s32.totalorder %s67, %s69
    %p76 = scmp.eq.s32.totalorder %s15, 95
    %p77 = por %p75, %p76
    %p78 = scmp.ne.s32.totalorder %s69, %s70
    %p79 = scmp.eq.s32.totalorder %s15, 0
    %p80 = por %p78, %p79
    %p81 = scmp.ne.s32.totalorder %s69, %s70
    %p82 = scmp.eq.s32.totalorder %s16, 95
    %p83 = por %p81, %p82
    %p85 = scmp.ne.s32.totalorder %s70, %s84
    %p86 = scmp.eq.s32.totalorder %s16, 0
    %p87 = por %p85, %p86
    %s89 = sadd.s32 %s88, 1
    %p92 = scmp.eq.s32.totalorder %s10, 95
    %p93 = scmp.ne.s32.totalorder %s88, %s90
    %p94 = scmp.eq.s32.totalorder %s10, 0
    %p95 = por %p93, %p94
    %p96 = scmp.ne.s32.totalorder %s88, %s90
    %p97 = scmp.eq.s32.totalorder %s15, 95
    %p98 = por %p96, %p97
    %p99 = scmp.ne.s32.totalorder %s90, %s91
    %p100 = scmp.eq.s32.totalorder %s15, 0
    %p101 = por %p99, %p100
    %p102 = scmp.ne.s32.totalorder %s90, %s91
    %p103 = scmp.eq.s32.totalorder %s16, 95
    %p104 = por %p102, %p103
    %p106 = scmp.ne.s32.totalorder %s91, %s105
    %p107 = scmp.eq.s32.totalorder %s16, 0
    %p108 = por %p106, %p107
    %s110 = sadd.s32 %s109, 1
    %p113 = scmp.eq.s32.totalorder %s10, 95
    %p114 = scmp.ne.s32.totalorder %s109, %s111
    %p115 = scmp.eq.s32.totalorder %s10, 0
    %p116 = por %p114, %p115
    %p117 = scmp.ne.s32.totalorder %s109, %s111
    %p118 = scmp.eq.s32.totalorder %s15, 95
    %p119 = por %p117, %p118
    %p120 = scmp.ne.s32.totalorder %s111, %s112
    %p121 = scmp.eq.s32.totalorder %s15, 0
    %p122 = por %p120, %p121
    %p123 = scmp.ne.s32.totalorder %s111, %s112
    %p124 = scmp.eq.s32.totalorder %s16, 95
    %p125 = por %p123, %p124
    %p127 = scmp.ne.s32.totalorder %s112, %s126
    %p128 = scmp.eq.s32.totalorder %s16, 0
    %p129 = por %p127, %p128
    %s130 = ssub.s32 %s17, %s36
    %s131 = ssub.s32 %s18, %s32
    %s132 = sor.u32 %s130, %s131
    %p133 = scmp.eq.s32.totalorder %s132, 0
    %s135 = sadd.s32 %s134, 1
    %s136 = scalar_select %p133, %s134, %s135
    %p139 = pneg %p133
    %p140 = scmp.eq.s32.totalorder %s10, 95
    %p141 = por %p139, %p140
    %p142 = scmp.ne.s32.totalorder %s134, %s137
    %p143 = scmp.eq.s32.totalorder %s10, 0
    %p144 = por %p142, %p143
    %p145 = scmp.ne.s32.totalorder %s134, %s137
    %p146 = scmp.eq.s32.totalorder %s15, 95
    %p147 = por %p145, %p146
    %p148 = scmp.ne.s32.totalorder %s137, %s138
    %p149 = scmp.eq.s32.totalorder %s15, 0
    %p150 = por %p148, %p149
    %p151 = scmp.ne.s32.totalorder %s137, %s138
    %p152 = scmp.eq.s32.totalorder %s16, 95
    %p153 = por %p151, %p152
    %p155 = scmp.ne.s32.totalorder %s138, %s154
    %p156 = scmp.eq.s32.totalorder %s16, 0
    %p157 = por %p155, %p156
    %p158 = scmp.le.s32.totalorder 1, %s10
    %p159 = scmp.lt.s32.totalorder %s10, 97
    %p160 = pnand %p158, %p159
    %p161 = pneg %p160
    // Predicated region
    $region9: #{_lambda_.6} parent=5 // pred_check
      _
    $region10: #{_lambda_.6} parent=5 // pred_check_branch
      %163 = sbr.rel (%p160) target = $region12
    $region11: #{_lambda_.6} parent=5 // pred_region
      %s164 = ssub.s32 %s10, 1
      // Predicated region
      $region13: #{_lambda_.6} parent=11 // pred_check
        %p165 = pneg %p80
      $region14: #{_lambda_.6} parent=11 // pred_check_branch
        %167 = sbr.rel (%p165) target = $region16
      $region15: #{_lambda_.6} parent=11 // pred_region
        _
      $region16: #{_lambda_.6} parent=11 // pred_fallthru
        _
      // Predicated region
      $region17: #{_lambda_.6} parent=11 // pred_check
        %p168 = pneg %p101
      $region18: #{_lambda_.6} parent=11 // pred_check_branch
        %170 = sbr.rel (%p168) target = $region20
      $region19: #{_lambda_.6} parent=11 // pred_region
        _
      $region20: #{_lambda_.6} parent=11 // pred_fallthru
        _
      // Predicated region
      $region21: #{_lambda_.6} parent=11 // pred_check
        %p171 = pneg %p122
      $region22: #{_lambda_.6} parent=11 // pred_check_branch
        %173 = sbr.rel (%p171) target = $region24
      $region23: #{_lambda_.6} parent=11 // pred_region
        _
      $region24: #{_lambda_.6} parent=11 // pred_fallthru
        _
    $region12: #{_lambda_.6} parent=5 // pred_fallthru
      _
    %p174 = scmp.lt.s32.totalorder %s10, 96
    // Predicated region
    $region25: #{_lambda_.6} parent=5 // pred_check
      %p175 = pneg %p174
    $region26: #{_lambda_.6} parent=5 // pred_check_branch
      %177 = sbr.rel (%p175) target = $region28
    $region27: #{_lambda_.6} parent=5 // pred_region
      // Predicated region
      $region29: #{_lambda_.6} parent=27 // pred_check
        %p178 = pneg %p53
      $region30: #{_lambda_.6} parent=27 // pred_check_branch
        %180 = sbr.rel (%p178) target = $region32
      $region31: #{_lambda_.6} parent=27 // pred_region
        %s181 = sadd.s32 %s18, %s19
        %p182 = scmp.lt.s32.totalorder %s17, 1
        %s183 = scalar_select %p182, %s17, 1
        %p184 = scmp.lt.s32.totalorder %s181, 17
        %s185 = scalar_select %p184, %s181, 17
        %s186 = smul.addr %s185, 3
        %s187 = smul.addr %s183, 54
        %s188 = sadd.s32 %s186, %s187
        %s189 = smul.addr %s188, 4
        %s190 = scalar_lea.vmem %s0, %s189
        %s191 = sadd.s32 %s18, %s19
      $region32: #{_lambda_.6} parent=27 // pred_fallthru
        _
    $region28: #{_lambda_.6} parent=5 // pred_fallthru
      _
    %p192 = scmp.le.s32.totalorder 1, %s10
    %p193 = scmp.lt.s32.totalorder %s10, 97
    %p194 = pnand %p192, %p193
    %p195 = pneg %p194
    // Predicated region
    $region33: #{_lambda_.6} parent=5 // pred_check
      _
    $region34: #{_lambda_.6} parent=5 // pred_check_branch
      %197 = sbr.rel (%p194) target = $region36
    $region35: #{_lambda_.6} parent=5 // pred_region
      %s198 = ssub.s32 %s10, 1
      %s199 = sadd.s32 %s21, %s22
      %p200 = scmp.lt.s32.totalorder %s20, 1
      %s201 = scalar_select %p200, %s20, 1
      %p202 = scmp.lt.s32.totalorder %s199, 17
      %s203 = scalar_select %p202, %s199, 17
      %s204 = smul.addr %s203, 3
      %s205 = smul.addr %s201, 54
      %s206 = sadd.s32 %s204, %s205
      %s207 = smul.addr %s206, 4
      %s208 = scalar_lea.vmem %s0, %s207
      %p209 = pneg %p59
      %p210 = pneg %p56
      %p211 = pneg %p80
      %p212 = pneg %p77
      %p213 = pneg %p101
      %p214 = pneg %p98
      %p215 = pneg %p122
      %p216 = pneg %p119
      %p217 = pneg %p150
      %p218 = pneg %p147
      %p219 = scmp.lt.s32.totalorder %s20, 1
      %s220 = scalar_select %p219, %s20, 1
      %p221 = scmp.lt.s32.totalorder %s21, 15
      %s222 = scalar_select %p221, %s21, 15
      %s223 = smul.addr %s222, 2
      %s224 = smul.addr %s220, 32
      %s225 = sadd.s32 %s223, %s224
      %s226 = smul.addr %s225, 4
      %s227 = scalar_lea.vmem %s4, %s226
      %s228 = sadd.s32 %s21, %s22
      %p229 = scmp.lt.s32.totalorder %s20, 1
      %s230 = scalar_select %p229, %s20, 1
      %p231 = scmp.lt.s32.totalorder %s228, 17
      %s232 = scalar_select %p231, %s228, 17
      %s233 = smul.addr %s232, 3
      %s234 = smul.addr %s230, 54
      %s235 = sadd.s32 %s233, %s234
      %s236 = smul.addr %s235, 4
      %s237 = scalar_lea.vmem %s0, %s236
      %s238 = sadd.s32 %s21, %s22
      %p239 = scmp.lt.s32.totalorder %s20, 1
      %s240 = scalar_select %p239, %s20, 1
      %p241 = scmp.lt.s32.totalorder %s21, 15
      %s242 = scalar_select %p241, %s21, 15
      %s243 = smul.addr %s242, 2
      %s244 = smul.addr %s240, 32
      %s245 = sadd.s32 %s243, %s244
      %s246 = smul.addr %s245, 4
      %s247 = scalar_lea.vmem %s4, %s246
      %p249 = scmp.eq.s32.totalorder %s22, 0
      // Predicated region
      $region37: #{_lambda_.6} parent=35 // pred_check
        %p250 = pneg %p249
      $region38: #{_lambda_.6} parent=35 // pred_check_branch
        %252 = sbr.rel (%p250) target = $region40
      $region39: #{_lambda_.6} parent=35 // pred_region
        %vm253 = vcmask 523264
        %254 = vst.msk [vmem:[#allocation2] sm:$0xff] %vm253, 0.0
        %255 = vst.msk [vmem:[#allocation2 + $0x8] sm:$0xff] %vm253, 0.0
      $region40: #{_lambda_.6} parent=35 // pred_fallthru
        _
      %v256 = vld [vmem:[%s237] sm:$0xf]
      %v257 = vld [vmem:[%s237 + $0x4] sm:$0xf]
      %v258 = vld [vmem:[%s237 + $0x8] sm:$0x1]
      %s259 = smul.u32 %s22, 3
      %s260 = smul.addr %s259, 4
      %s261 = scalar_lea.vmem %s1, %s260
      %v262 = vld [vmem:[%s261] sm:$0xf]
      %v263 = vld [vmem:[%s261 + $0x4] sm:$0xf]
      %v264 = vld [vmem:[%s261 + $0x8] sm:$0xf]
      %v265 = vld [vmem:[#allocation2] sm:$0xff]
      %v266 = vld [vmem:[#allocation2 + $0x8] sm:$0xff]
      %v269 = vunpack.c.l.b16 %v256
      %v270 = vunpack.c.l.b16 %v257
      %v271 = vpack.c.b16 %v270, %v269
      %vm272 = vcmask 64512
      %v274 = vsel %vm272, %v271, 0
      %vm276 = vcmask 1043456
      %v278 = vsel %vm276, %v262, 0
      %280 = vmatpush.bf16.msra.mxu0 0
      %281 = vmatpush.bf16.msra.mxu0 0
      %282 = vmatpush.bf16.msra.mxu0 0
      %283 = vmatpush.bf16.msra.mxu0 0
      %284 = vmatpush.bf16.msra.mxu0 0
      %285 = vmatpush.bf16.msra.mxu0 0
      %286 = vmatpush.bf16.msra.mxu0 0
      %287 = vmatpush.bf16.msra.mxu0 %v278
      %288 = vmatmul.bf16.gmra.mxu0 %v274
      %v289 = vpop.f32.mrf.mxu0
      %v290 = vadd.f32 0.0, %v289
      %v291 = vpop.f32.mrf.mxu0
      %v292 = vadd.f32 0.0, %v291
      %293 = vdwg.mxu0
      %v294 = vadd.f32 %v265, %v290
      %v295 = vadd.f32 %v266, %v292
      %v297 = vunpack.c.l.b16 %v258
      %v298 = vpack.c.b16 %v297, %v297
      %vm299 = vsmask.f32 7424
      %v300 = vshrl.u32 %v271, 16
      %v302 = vshll.u32 %v271, 16
      %v304 = vrot.slane %v302, 1
      %v305 = vor.u32 %v300, %v304
      %v307 = vshll.u32 %v298, 16
      %v309 = vrot.slane %v307, 1
      %v310 = vsel %vm299, %v305, %v309
      %v312 = vsel %vm272, %v310, 0
      %v315 = vsel %vm276, %v263, 0
      %317 = vmatpush.bf16.msra.mxu0 0
      %318 = vmatpush.bf16.msra.mxu0 0
      %319 = vmatpush.bf16.msra.mxu0 0
      %320 = vmatpush.bf16.msra.mxu0 0
      %321 = vmatpush.bf16.msra.mxu0 0
      %322 = vmatpush.bf16.msra.mxu0 0
      %323 = vmatpush.bf16.msra.mxu0 0
      %324 = vmatpush.bf16.msra.mxu0 %v315
      %325 = vmatmul.bf16.gmra.mxu0 %v312
      %v326 = vpop.f32.mrf.mxu0
      %v327 = vadd.f32 0.0, %v326
      %v328 = vpop.f32.mrf.mxu0
      %v329 = vadd.f32 0.0, %v328
      %330 = vdwg.mxu0
      %v331 = vadd.f32 %v294, %v327
      %v332 = vadd.f32 %v295, %v329
      %vm333 = vcmask 1046528
      %v334 = vrot.slane %v271, 1
      %v335 = vrot.slane %v298, 1
      %v336 = vsel %vm333, %v334, %v335
      %v338 = vsel %vm272, %v336, 0
      %v341 = vsel %vm276, %v264, 0
      %343 = vmatpush.bf16.msra.mxu0 0
      %344 = vmatpush.bf16.msra.mxu0 0
      %345 = vmatpush.bf16.msra.mxu0 0
      %346 = vmatpush.bf16.msra.mxu0 0
      %347 = vmatpush.bf16.msra.mxu0 0
      %348 = vmatpush.bf16.msra.mxu0 0
      %349 = vmatpush.bf16.msra.mxu0 0
      %350 = vmatpush.bf16.msra.mxu0 %v341
      %351 = vmatmul.bf16.gmra.mxu0 %v338
      %v352 = vpop.f32.mrf.mxu0
      %v353 = vadd.f32 0.0, %v352
      %v354 = vpop.f32.mrf.mxu0
      %v355 = vadd.f32 0.0, %v354
      %356 = vdwg.mxu0
      %v357 = vadd.f32 %v331, %v353
      %v358 = vadd.f32 %v332, %v355
      %vm359 = vcmask 523264
      %360 = vst.msk [vmem:[#allocation2] sm:$0xff] %vm359, %v357
      %361 = vst.msk [vmem:[#allocation2 + $0x8] sm:$0xff] %vm359, %v358
      %p362 = scmp.eq.s32.totalorder %s22, 2
      // Predicated region
      $region41: #{_lambda_.6} parent=35 // pred_check
        %p363 = pneg %p362
      $region42: #{_lambda_.6} parent=35 // pred_check_branch
        %365 = sbr.rel (%p363) target = $region44
      $region43: #{_lambda_.6} parent=35 // pred_region
        %v366 = vld [vmem:[#allocation2] sm:$0xff]
        %v367 = vld [vmem:[#allocation2 + $0x8] sm:$0xff]
        %v368 = vld [vmem:[%s2] sm:$0x1]
        %v370 = vperm.slane %v368, 0
        %v372 = vmul.f32 %v366, %v370
        %v373 = vmul.f32 %v367, %v370
        %v374 = vld [vmem:[%s3] sm:$0x1]
        %v376 = vperm.slane %v374, 0
        %v378 = vadd.f32 %v372, %v376
        %v379 = vadd.f32 %v373, %v376
        %v380 = vmax.f32 %v378, 0.0
        %v381 = vmax.f32 %v379, 0.0
        %v382 = vpack.c.bf16 %v380, %v380
        %v383 = vpack.c.bf16 %v381, %v381
        %vm384 = vcmask 519168
        %385 = vst.msk [vmem:[%s247] sm:$0xf] %vm384, %v382
        %386 = vst.msk [vmem:[%s247 + $0x4] sm:$0xf] %vm384, %v383
      $region44: #{_lambda_.6} parent=35 // pred_fallthru
        _
      %p387 = scmp.lt.s32.totalorder %s20, 1
      %s388 = scalar_select %p387, %s20, 1
      %p389 = scmp.lt.s32.totalorder %s21, 15
      %s390 = scalar_select %p389, %s21, 15
      %s391 = smul.addr %s390, 2
      %s392 = smul.addr %s388, 32
      %s393 = sadd.s32 %s391, %s392
      %s394 = smul.addr %s393, 4
      %s395 = scalar_lea.vmem %s4, %s394
      // Predicated region
      $region45: #{_lambda_.6} parent=35 // pred_check
        %p396 = pneg %p147
      $region46: #{_lambda_.6} parent=35 // pred_check_branch
        %398 = sbr.rel (%p396) target = $region48
      $region47: #{_lambda_.6} parent=35 // pred_region
        _
      $region48: #{_lambda_.6} parent=35 // pred_fallthru
        _
    $region36: #{_lambda_.6} parent=5 // pred_fallthru
      _
    %p399 = scmp.le.s32.totalorder 2, %s10
    // Predicated region
    $region49: #{_lambda_.6} parent=5 // pred_check
      %p400 = pneg %p399
    $region50: #{_lambda_.6} parent=5 // pred_check_branch
      %402 = sbr.rel (%p400) target = $region52
    $region51: #{_lambda_.6} parent=5 // pred_region
      %s403 = ssub.s32 %s10, 2
      // Predicated region
      $region53: #{_lambda_.6} parent=51 // pred_check
        %p404 = pneg %p153
      $region54: #{_lambda_.6} parent=51 // pred_check_branch
        %406 = sbr.rel (%p404) target = $region56
      $region55: #{_lambda_.6} parent=51 // pred_region
        %p407 = scmp.lt.s32.totalorder %s23, 1
        %s408 = scalar_select %p407, %s23, 1
        %p409 = scmp.lt.s32.totalorder %s24, 15
        %s410 = scalar_select %p409, %s24, 15
        %s411 = smul.addr %s410, 2
        %s412 = smul.addr %s408, 32
        %s413 = sadd.s32 %s411, %s412
        %s414 = smul.addr %s413, 4
        %s415 = scalar_lea.vmem %s4, %s414
      $region56: #{_lambda_.6} parent=51 // pred_fallthru
        _
    $region52: #{_lambda_.6} parent=5 // pred_fallthru
      _
  $region6: #{_lambda_.6} parent=0 // loop_footer
    %s14 = sadd.s32 1, %s10
  $region7: #{_lambda_.6} parent=0 // loop_footer_branch
    %9 = sbr.rel target = $region3
  $region8: #{_lambda_.6} parent=0 // loop_exit
    _

// kernel: _lambda_.10
$region0: #{_lambda_.10}
  #allocation0 [shape = 'u32[]', space=smem, size = 0x4, offset = 0x4, fixed_abs, tag = 'smem constant byte address 0x4 - core index']
  #allocation1 [shape = 'u32[72,128]{1,0:T(1,128)}', space=vmem, size = 0x9000, scoped, tag = 'internal scratch']
  %s0 = inlined_call_operand.vmem [shape: bf16[128,64], index: 0, kind: input, shape index: {}]
  %s1 = inlined_call_operand.vmem [shape: bf16[64,256], index: 1, kind: input, shape index: {}]
  %s2 = inlined_call_operand.vmem [shape: f32[1,256], index: 2, kind: input, shape index: {}]
  %s3 = inlined_call_operand.vmem [shape: f32[1,256], index: 3, kind: input, shape index: {}]
  %s4 = inlined_call_operand.vmem [shape: bf16[128,256], index: 4, kind: output, shape index: {}]
  %s5 = sld [smem:[#allocation0]]
  $region49: #{_lambda_.10} parent=0
    _
  %s7 = ssub.s32 1, %s5
  %s8 = scalar_select 0, %s7, %s5
  loop: start=0, step=1, limit=4
  $region2: #{_lambda_.10} parent=0 // loop_pre_header
    _
  $region3: #{_lambda_.10} parent=0 // loop_header
    %s10 = sphi 0, %s14
    %p11 = scmp.ge.s32.totalorder %s10, 4
    %s20 = sphi 0, %s22
    %s23 = sphi 0, %s20
    %s24 = sphi 0, %s23
    %s40 = sphi 0, %s24
    %s44 = sphi 0, %s44
    %s46 = sphi 0, %s44
    %s47 = sphi 0, %s46
    %s61 = sphi 0, %s47
    %s65 = sphi 0, %s65
    %s67 = sphi 0, %s65
    %s68 = sphi 0, %s67
    %s82 = sphi 0, %s68
    %s86 = sphi 0, %s86
    %s88 = sphi 0, %s86
    %s89 = sphi 0, %s88
    %s103 = sphi 0, %s89
    %s109 = sphi 0, %s111
    %s112 = sphi 0, %s109
    %s113 = sphi 0, %s112
    %s129 = sphi 0, %s113
  $region4: #{_lambda_.10} parent=0 // loop_header_branch
    %13 = sbr.rel (%p11) target = $region8
  $region5: #{_lambda_.10} parent=0 // loop_body
    %s15 = ssub.s32 %s10, 1
    %s16 = ssub.s32 %s10, 2
    %s17 = sadd.s32 %s10, 1
    %s18 = ssub.s32 %s10, %s17
    %p19 = scmp.eq.s32.totalorder %s18, 0
    %s21 = sadd.s32 %s20, 1
    %s22 = scalar_select %p19, %s20, %s21
    %p25 = pneg %p19
    %p26 = scmp.eq.s32.totalorder %s10, 1
    %p27 = por %p25, %p26
    %p28 = scmp.ne.s32.totalorder %s20, %s23
    %p29 = scmp.eq.s32.totalorder %s10, 0
    %p30 = por %p28, %p29
    %p31 = scmp.ne.s32.totalorder %s20, %s23
    %p32 = scmp.eq.s32.totalorder %s15, 1
    %p33 = por %p31, %p32
    %p34 = scmp.ne.s32.totalorder %s23, %s24
    %p35 = scmp.eq.s32.totalorder %s15, 0
    %p36 = por %p34, %p35
    %p37 = scmp.ne.s32.totalorder %s23, %s24
    %p38 = scmp.eq.s32.totalorder %s16, 1
    %p39 = por %p37, %p38
    %p41 = scmp.ne.s32.totalorder %s24, %s40
    %p42 = scmp.eq.s32.totalorder %s16, 0
    %p43 = por %p41, %p42
    %s45 = sadd.s32 %s44, 1
    %p48 = scmp.eq.s32.totalorder %s10, 1
    %p49 = scmp.ne.s32.totalorder %s44, %s46
    %p50 = scmp.eq.s32.totalorder %s10, 0
    %p51 = por %p49, %p50
    %p52 = scmp.ne.s32.totalorder %s44, %s46
    %p53 = scmp.eq.s32.totalorder %s15, 1
    %p54 = por %p52, %p53
    %p55 = scmp.ne.s32.totalorder %s46, %s47
    %p56 = scmp.eq.s32.totalorder %s15, 0
    %p57 = por %p55, %p56
    %p58 = scmp.ne.s32.totalorder %s46, %s47
    %p59 = scmp.eq.s32.totalorder %s16, 1
    %p60 = por %p58, %p59
    %p62 = scmp.ne.s32.totalorder %s47, %s61
    %p63 = scmp.eq.s32.totalorder %s16, 0
    %p64 = por %p62, %p63
    %s66 = sadd.s32 %s65, 1
    %p69 = scmp.eq.s32.totalorder %s10, 1
    %p70 = scmp.ne.s32.totalorder %s65, %s67
    %p71 = scmp.eq.s32.totalorder %s10, 0
    %p72 = por %p70, %p71
    %p73 = scmp.ne.s32.totalorder %s65, %s67
    %p74 = scmp.eq.s32.totalorder %s15, 1
    %p75 = por %p73, %p74
    %p76 = scmp.ne.s32.totalorder %s67, %s68
    %p77 = scmp.eq.s32.totalorder %s15, 0
    %p78 = por %p76, %p77
    %p79 = scmp.ne.s32.totalorder %s67, %s68
    %p80 = scmp.eq.s32.totalorder %s16, 1
    %p81 = por %p79, %p80
    %p83 = scmp.ne.s32.totalorder %s68, %s82
    %p84 = scmp.eq.s32.totalorder %s16, 0
    %p85 = por %p83, %p84
    %s87 = sadd.s32 %s86, 1
    %p90 = scmp.eq.s32.totalorder %s10, 1
    %p91 = scmp.ne.s32.totalorder %s86, %s88
    %p92 = scmp.eq.s32.totalorder %s10, 0
    %p93 = por %p91, %p92
    %p94 = scmp.ne.s32.totalorder %s86, %s88
    %p95 = scmp.eq.s32.totalorder %s15, 1
    %p96 = por %p94, %p95
    %p97 = scmp.ne.s32.totalorder %s88, %s89
    %p98 = scmp.eq.s32.totalorder %s15, 0
    %p99 = por %p97, %p98
    %p100 = scmp.ne.s32.totalorder %s88, %s89
    %p101 = scmp.eq.s32.totalorder %s16, 1
    %p102 = por %p100, %p101
    %p104 = scmp.ne.s32.totalorder %s89, %s103
    %p105 = scmp.eq.s32.totalorder %s16, 0
    %p106 = por %p104, %p105
    %s107 = ssub.s32 %s10, %s17
    %p108 = scmp.eq.s32.totalorder %s107, 0
    %s110 = sadd.s32 %s109, 1
    %s111 = scalar_select %p108, %s109, %s110
    %p114 = pneg %p108
    %p115 = scmp.eq.s32.totalorder %s10, 1
    %p116 = por %p114, %p115
    %p117 = scmp.ne.s32.totalorder %s109, %s112
    %p118 = scmp.eq.s32.totalorder %s10, 0
    %p119 = por %p117, %p118
    %p120 = scmp.ne.s32.totalorder %s109, %s112
    %p121 = scmp.eq.s32.totalorder %s15, 1
    %p122 = por %p120, %p121
    %p123 = scmp.ne.s32.totalorder %s112, %s113
    %p124 = scmp.eq.s32.totalorder %s15, 0
    %p125 = por %p123, %p124
    %p126 = scmp.ne.s32.totalorder %s112, %s113
    %p127 = scmp.eq.s32.totalorder %s16, 1
    %p128 = por %p126, %p127
    %p130 = scmp.ne.s32.totalorder %s113, %s129
    %p131 = scmp.eq.s32.totalorder %s16, 0
    %p132 = por %p130, %p131
    %p133 = scmp.le.s32.totalorder 1, %s10
    %p134 = scmp.lt.s32.totalorder %s10, 3
    %p135 = pnand %p133, %p134
    %p136 = pneg %p135
    // Predicated region
    $region9: #{_lambda_.10} parent=5 // pred_check
      _
    $region10: #{_lambda_.10} parent=5 // pred_check_branch
      %138 = sbr.rel (%p135) target = $region12
    $region11: #{_lambda_.10} parent=5 // pred_region
      %s139 = ssub.s32 %s10, 1
      // Predicated region
      $region13: #{_lambda_.10} parent=11 // pred_check
        %p140 = pneg %p57
      $region14: #{_lambda_.10} parent=11 // pred_check_branch
        %142 = sbr.rel (%p140) target = $region16
      $region15: #{_lambda_.10} parent=11 // pred_region
        _
      $region16: #{_lambda_.10} parent=11 // pred_fallthru
        _
      // Predicated region
      $region17: #{_lambda_.10} parent=11 // pred_check
        %p143 = pneg %p78
      $region18: #{_lambda_.10} parent=11 // pred_check_branch
        %145 = sbr.rel (%p143) target = $region20
      $region19: #{_lambda_.10} parent=11 // pred_region
        _
      $region20: #{_lambda_.10} parent=11 // pred_fallthru
        _
      // Predicated region
      $region21: #{_lambda_.10} parent=11 // pred_check
        %p146 = pneg %p99
      $region22: #{_lambda_.10} parent=11 // pred_check_branch
        %148 = sbr.rel (%p146) target = $region24
      $region23: #{_lambda_.10} parent=11 // pred_region
        _
      $region24: #{_lambda_.10} parent=11 // pred_fallthru
        _
    $region12: #{_lambda_.10} parent=5 // pred_fallthru
      _
    %p149 = scmp.lt.s32.totalorder %s10, 2
    // Predicated region
    $region25: #{_lambda_.10} parent=5 // pred_check
      %p150 = pneg %p149
    $region26: #{_lambda_.10} parent=5 // pred_check_branch
      %152 = sbr.rel (%p150) target = $region28
    $region27: #{_lambda_.10} parent=5 // pred_region
      // Predicated region
      $region29: #{_lambda_.10} parent=27 // pred_check
        %p153 = pneg %p30
      $region30: #{_lambda_.10} parent=27 // pred_check_branch
        %155 = sbr.rel (%p153) target = $region32
      $region31: #{_lambda_.10} parent=27 // pred_region
        %s156 = smul.u32 8, %s10
        %p157 = scmp.lt.s32.totalorder %s156, 15
        %s158 = scalar_select %p157, %s156, 15
        %s159 = smul.addr %s158, 4
        %s160 = scalar_lea.vmem %s0, %s159
        %s161 = smul.u32 8, %s10
      $region32: #{_lambda_.10} parent=27 // pred_fallthru
        _
    $region28: #{_lambda_.10} parent=5 // pred_fallthru
      _
    %p162 = scmp.le.s32.totalorder 1, %s10
    %p163 = scmp.lt.s32.totalorder %s10, 3
    %p164 = pnand %p162, %p163
    %p165 = pneg %p164
    // Predicated region
    $region33: #{_lambda_.10} parent=5 // pred_check
      _
    $region34: #{_lambda_.10} parent=5 // pred_check_branch
      %167 = sbr.rel (%p164) target = $region36
    $region35: #{_lambda_.10} parent=5 // pred_region
      %s168 = ssub.s32 %s10, 1
      %s169 = smul.u32 8, %s15
      %p170 = scmp.lt.s32.totalorder %s169, 15
      %s171 = scalar_select %p170, %s169, 15
      %s172 = smul.addr %s171, 4
      %s173 = scalar_lea.vmem %s0, %s172
      %p174 = pneg %p36
      %p175 = pneg %p33
      %p176 = pneg %p57
      %p177 = pneg %p54
      %p178 = pneg %p78
      %p179 = pneg %p75
      %p180 = pneg %p99
      %p181 = pneg %p96
      %p182 = pneg %p125
      %p183 = pneg %p122
      %s184 = smul.u32 8, %s15
      %p185 = scmp.lt.s32.totalorder %s184, 15
      %s186 = scalar_select %p185, %s184, 15
      %s187 = smul.addr %s186, 2
      %s188 = smul.addr %s187, 4
      %s189 = scalar_lea.vmem %s4, %s188
      %s190 = smul.u32 8, %s15
      %p191 = scmp.lt.s32.totalorder %s190, 15
      %s192 = scalar_select %p191, %s190, 15
      %s193 = smul.addr %s192, 4
      %s194 = scalar_lea.vmem %s0, %s193
      %s195 = smul.u32 8, %s15
      %s196 = smul.u32 8, %s15
      %p197 = scmp.lt.s32.totalorder %s196, 15
      %s198 = scalar_select %p197, %s196, 15
      %s199 = smul.addr %s198, 2
      %s200 = smul.addr %s199, 4
      %s201 = scalar_lea.vmem %s4, %s200
      %s202 = smul.u32 8, %s15
      %v204 = vld [vmem:[%s194] sm:$0xf]
      %v205 = vld [vmem:[%s194 + $0x4] sm:$0xf]
      %v206 = vld [vmem:[%s194 + $0x8] sm:$0xf]
      %v207 = vld [vmem:[%s194 + $0xc] sm:$0xf]
      %v208 = vld [vmem:[%s194 + $0x10] sm:$0xf]
      %v209 = vld [vmem:[%s194 + $0x14] sm:$0xf]
      %v210 = vld [vmem:[%s194 + $0x18] sm:$0xf]
      %v211 = vld [vmem:[%s194 + $0x1c] sm:$0xf]
      %v212 = vld [vmem:[%s1] sm:$0xff]
      %v213 = vld [vmem:[%s1 + $0x8] sm:$0xff]
      %v214 = vld [vmem:[%s1 + $0x10] sm:$0xff]
      %v215 = vld [vmem:[%s1 + $0x18] sm:$0xff]
      %v216 = vld [vmem:[%s1 + $0x20] sm:$0xff]
      %v217 = vld [vmem:[%s1 + $0x28] sm:$0xff]
      %v218 = vld [vmem:[%s1 + $0x30] sm:$0xff]
      %v219 = vld [vmem:[%s1 + $0x38] sm:$0xff]
      %v228 = vunpack.c.l.b16 %v204
      %v229 = vunpack.c.l.b16 %v205
      %v230 = vunpack.c.l.b16 %v206
      %v231 = vunpack.c.l.b16 %v207
      %v232 = vunpack.c.l.b16 %v208
      %v233 = vunpack.c.l.b16 %v209
      %v234 = vunpack.c.l.b16 %v210
      %v235 = vunpack.c.l.b16 %v211
      %v236 = vpack.c.b16 %v229, %v228
      %v237 = vpack.c.b16 %v231, %v230
      %v238 = vpack.c.b16 %v233, %v232
      %v239 = vpack.c.b16 %v235, %v234
      %v248 = vunpack.c.l.b16 %v212
      %v249 = vunpack.c.h.b16 %v212
      %v250 = vunpack.c.l.b16 %v213
      %v251 = vunpack.c.h.b16 %v213
      %v252 = vunpack.c.l.b16 %v214
      %v253 = vunpack.c.h.b16 %v214
      %v254 = vunpack.c.l.b16 %v215
      %v255 = vunpack.c.h.b16 %v215
      %v256 = vunpack.c.l.b16 %v216
      %v257 = vunpack.c.h.b16 %v216
      %v258 = vunpack.c.l.b16 %v217
      %v259 = vunpack.c.h.b16 %v217
      %v260 = vunpack.c.l.b16 %v218
      %v261 = vunpack.c.h.b16 %v218
      %v262 = vunpack.c.l.b16 %v219
      %v263 = vunpack.c.h.b16 %v219
      %v264 = vpack.c.b16 %v250, %v248
      %v265 = vpack.c.b16 %v251, %v249
      %v266 = vpack.c.b16 %v254, %v252
      %v267 = vpack.c.b16 %v255, %v253
      %v268 = vpack.c.b16 %v258, %v256
      %v269 = vpack.c.b16 %v259, %v257
      %v270 = vpack.c.b16 %v262, %v260
      %v271 = vpack.c.b16 %v263, %v261
      %vm280 = vcmask 523264
      %v282 = vsel %vm280, %v236, 0
      %v285 = vsel %vm280, %v237, 0
      %v288 = vsel %vm280, %v238, 0
      %v291 = vsel %vm280, %v239, 0
      %293 = vmatpush.bf16.msra.mxu0 0
      %294 = vmatpush.bf16.msra.mxu0 0
      %295 = vmatpush.bf16.msra.mxu0 0
      %296 = vmatpush.bf16.msra.mxu0 0
      %297 = vmatpush.bf16.msra.mxu0 %v270
      %298 = vmatpush.bf16.msra.mxu0 %v268
      %299 = vmatpush.bf16.msra.mxu0 %v266
      %300 = vmatpush.bf16.msra.mxu0 %v264
      %301 = vmatmul.bf16.gmra.mxu0 %v282
      %v302 = vpop.f32.mrf.mxu0
      %v303 = vadd.f32 0.0, %v302
      %v304 = vpop.f32.mrf.mxu0
      %v305 = vadd.f32 0.0, %v304
      %306 = vmatmul.bf16.gmra.mxu0 %v285
      %v307 = vpop.f32.mrf.mxu0
      %v308 = vadd.f32 0.0, %v307
      %v309 = vpop.f32.mrf.mxu0
      %v310 = vadd.f32 0.0, %v309
      %311 = vmatmul.bf16.gmra.mxu0 %v288
      %v312 = vpop.f32.mrf.mxu0
      %v313 = vadd.f32 0.0, %v312
      %v314 = vpop.f32.mrf.mxu0
      %v315 = vadd.f32 0.0, %v314
      %316 = vmatmul.bf16.gmra.mxu0 %v291
      %v317 = vpop.f32.mrf.mxu0
      %v318 = vadd.f32 0.0, %v317
      %v319 = vpop.f32.mrf.mxu0
      %v320 = vadd.f32 0.0, %v319
      %321 = vdwg.mxu0
      %322 = vmatpush.bf16.msra.mxu0 0
      %323 = vmatpush.bf16.msra.mxu0 0
      %324 = vmatpush.bf16.msra.mxu0 0
      %325 = vmatpush.bf16.msra.mxu0 0
      %326 = vmatpush.bf16.msra.mxu0 %v271
      %327 = vmatpush.bf16.msra.mxu0 %v269
      %328 = vmatpush.bf16.msra.mxu0 %v267
      %329 = vmatpush.bf16.msra.mxu0 %v265
      %330 = vmatmul.bf16.gmra.mxu0 %v282
      %v331 = vpop.f32.mrf.mxu0
      %v332 = vadd.f32 0.0, %v331
      %v333 = vpop.f32.mrf.mxu0
      %v334 = vadd.f32 0.0, %v333
      %335 = vmatmul.bf16.gmra.mxu0 %v285
      %v336 = vpop.f32.mrf.mxu0
      %v337 = vadd.f32 0.0, %v336
      %v338 = vpop.f32.mrf.mxu0
      %v339 = vadd.f32 0.0, %v338
      %340 = vmatmul.bf16.gmra.mxu0 %v288
      %v341 = vpop.f32.mrf.mxu0
      %v342 = vadd.f32 0.0, %v341
      %v343 = vpop.f32.mrf.mxu0
      %v344 = vadd.f32 0.0, %v343
      %345 = vmatmul.bf16.gmra.mxu0 %v291
      %v346 = vpop.f32.mrf.mxu0
      %v347 = vadd.f32 0.0, %v346
      %v348 = vpop.f32.mrf.mxu0
      %v349 = vadd.f32 0.0, %v348
      %350 = vdwg.mxu0
      %v351 = vld [vmem:[%s2] sm:$0x3]
      %v353 = vperm.slane %v351, 0
      %v354 = vperm.slane %v351, 1
      %v357 = vmul.f32 %v303, %v353
      %v358 = vmul.f32 %v332, %v354
      %v359 = vmul.f32 %v305, %v353
      %v360 = vmul.f32 %v334, %v354
      %v361 = vmul.f32 %v308, %v353
      %v362 = vmul.f32 %v337, %v354
      %v363 = vmul.f32 %v310, %v353
      %v364 = vmul.f32 %v339, %v354
      %v365 = vmul.f32 %v313, %v353
      %v366 = vmul.f32 %v342, %v354
      %v367 = vmul.f32 %v315, %v353
      %v368 = vmul.f32 %v344, %v354
      %v369 = vmul.f32 %v318, %v353
      %v370 = vmul.f32 %v347, %v354
      %v371 = vmul.f32 %v320, %v353
      %v372 = vmul.f32 %v349, %v354
      %v373 = vld [vmem:[%s3] sm:$0x3]
      %v375 = vperm.slane %v373, 0
      %v376 = vperm.slane %v373, 1
      %v379 = vadd.f32 %v357, %v375
      %v380 = vadd.f32 %v358, %v376
      %v381 = vadd.f32 %v359, %v375
      %v382 = vadd.f32 %v360, %v376
      %v383 = vadd.f32 %v361, %v375
      %v384 = vadd.f32 %v362, %v376
      %v385 = vadd.f32 %v363, %v375
      %v386 = vadd.f32 %v364, %v376
      %v387 = vadd.f32 %v365, %v375
      %v388 = vadd.f32 %v366, %v376
      %v389 = vadd.f32 %v367, %v375
      %v390 = vadd.f32 %v368, %v376
      %v391 = vadd.f32 %v369, %v375
      %v392 = vadd.f32 %v370, %v376
      %v393 = vadd.f32 %v371, %v375
      %v394 = vadd.f32 %v372, %v376
      %v395 = vmax.f32 %v379, 0.0
      %v396 = vmax.f32 %v380, 0.0
      %v397 = vmax.f32 %v381, 0.0
      %v398 = vmax.f32 %v382, 0.0
      %v399 = vmax.f32 %v383, 0.0
      %v400 = vmax.f32 %v384, 0.0
      %v401 = vmax.f32 %v385, 0.0
      %v402 = vmax.f32 %v386, 0.0
      %v403 = vmax.f32 %v387, 0.0
      %v404 = vmax.f32 %v388, 0.0
      %v405 = vmax.f32 %v389, 0.0
      %v406 = vmax.f32 %v390, 0.0
      %v407 = vmax.f32 %v391, 0.0
      %v408 = vmax.f32 %v392, 0.0
      %v409 = vmax.f32 %v393, 0.0
      %v410 = vmax.f32 %v394, 0.0
      %v411 = vpack.c.bf16 %v396, %v395
      %v412 = vpack.c.bf16 %v398, %v397
      %v413 = vpack.c.bf16 %v400, %v399
      %v414 = vpack.c.bf16 %v402, %v401
      %v415 = vpack.c.bf16 %v404, %v403
      %v416 = vpack.c.bf16 %v406, %v405
      %v417 = vpack.c.bf16 %v408, %v407
      %v418 = vpack.c.bf16 %v410, %v409
      %419 = vst [vmem:[%s201] sm:$0xff] %v411
      %420 = vst [vmem:[%s201 + $0x8] sm:$0xff] %v412
      %421 = vst [vmem:[%s201 + $0x10] sm:$0xff] %v413
      %422 = vst [vmem:[%s201 + $0x18] sm:$0xff] %v414
      %423 = vst [vmem:[%s201 + $0x20] sm:$0xff] %v415
      %424 = vst [vmem:[%s201 + $0x28] sm:$0xff] %v416
      %425 = vst [vmem:[%s201 + $0x30] sm:$0xff] %v417
      %426 = vst [vmem:[%s201 + $0x38] sm:$0xff] %v418
      %s427 = smul.u32 8, %s15
      %p428 = scmp.lt.s32.totalorder %s427, 15
      %s429 = scalar_select %p428, %s427, 15
      %s430 = smul.addr %s429, 2
      %s431 = smul.addr %s430, 4
      %s432 = scalar_lea.vmem %s4, %s431
      // Predicated region
      $region37: #{_lambda_.10} parent=35 // pred_check
        %p433 = pneg %p122
      $region38: #{_lambda_.10} parent=35 // pred_check_branch
        %435 = sbr.rel (%p433) target = $region40
      $region39: #{_lambda_.10} parent=35 // pred_region
        %s436 = smul.u32 8, %s15
      $region40: #{_lambda_.10} parent=35 // pred_fallthru
        _
    $region36: #{_lambda_.10} parent=5 // pred_fallthru
      _
    %p437 = scmp.le.s32.totalorder 2, %s10
    // Predicated region
    $region41: #{_lambda_.10} parent=5 // pred_check
      %p438 = pneg %p437
    $region42: #{_lambda_.10} parent=5 // pred_check_branch
      %440 = sbr.rel (%p438) target = $region44
    $region43: #{_lambda_.10} parent=5 // pred_region
      %s441 = ssub.s32 %s10, 2
      // Predicated region
      $region45: #{_lambda_.10} parent=43 // pred_check
        %p442 = pneg %p128
      $region46: #{_lambda_.10} parent=43 // pred_check_branch
        %444 = sbr.rel (%p442) target = $region48
      $region47: #{_lambda_.10} parent=43 // pred_region
        %s445 = smul.u32 8, %s16
        %p446 = scmp.lt.s32.totalorder %s445, 15
        %s447 = scalar_select %p446, %s445, 15
        %s448 = smul.addr %s447, 2
        %s449 = smul.addr %s448, 4
        %s450 = scalar_lea.vmem %s4, %s449
      $region48: #{_lambda_.10} parent=43 // pred_fallthru
        _
    $region44: #{_lambda_.10} parent=5 // pred_fallthru
      _
  $region6: #{_lambda_.10} parent=0 // loop_footer
    %s14 = sadd.s32 1, %s10
  $region7: #{_lambda_.10} parent=0 // loop_footer_branch
    %9 = sbr.rel target = $region3
  $region8: #{_lambda_.10} parent=0 // loop_exit
    _

// kernel: _lambda_.7
$region0: #{_lambda_.7}
  #allocation0 [shape = 'u32[]', space=smem, size = 0x4, offset = 0x4, fixed_abs, tag = 'smem constant byte address 0x4 - core index']
  #allocation1 [shape = 'u32[72,128]{1,0:T(1,128)}', space=vmem, size = 0x9000, scoped, tag = 'internal scratch']
  %s0 = inlined_call_operand.vmem [shape: bf16[2,16,16,64], index: 0, kind: input, shape index: {}]
  %s1 = inlined_call_operand.vmem [shape: bf16[2,8,8,64], index: 1, kind: output, shape index: {}]
  %s2 = sld [smem:[#allocation0]]
  $region37: #{_lambda_.7} parent=0
    _
  %s4 = ssub.s32 1, %s2
  %s5 = scalar_select 0, %s4, %s2
  loop: start=0, step=1, limit=4
  $region2: #{_lambda_.7} parent=0 // loop_pre_header
    _
  $region3: #{_lambda_.7} parent=0 // loop_header
    %s7 = sphi 0, %s11
    %p8 = scmp.ge.s32.totalorder %s7, 4
    %s14 = sphi 0, %s26
    %s15 = sphi 0, %s22
    %s16 = sphi 0, %s14
    %s17 = sphi 0, %s15
    %s18 = sphi 0, %s16
    %s19 = sphi 0, %s17
    %s31 = sphi 0, %s33
    %s34 = sphi 0, %s31
    %s35 = sphi 0, %s34
    %s51 = sphi 0, %s35
    %s59 = sphi 0, %s61
    %s62 = sphi 0, %s59
    %s63 = sphi 0, %s62
    %s79 = sphi 0, %s63
  $region4: #{_lambda_.7} parent=0 // loop_header_branch
    %10 = sbr.rel (%p8) target = $region8
  $region5: #{_lambda_.7} parent=0 // loop_body
    %s12 = ssub.s32 %s7, 1
    %s13 = ssub.s32 %s7, 2
    %s20 = sadd.s32 1, %s15
    %p21 = scmp.ge.s32.totalorder %s20, 1
    %s22 = scalar_select %p21, 0, %s20
    %s23 = sadd.s32 1, %s14
    %s24 = scalar_select %p21, %s23, %s14
    %p25 = scmp.ge.s32.totalorder %s24, 2
    %s26 = scalar_select %p25, 0, %s24
    %s27 = ssub.s32 %s14, %s26
    %s28 = ssub.s32 %s15, %s22
    %s29 = sor.u32 %s27, %s28
    %p30 = scmp.eq.s32.totalorder %s29, 0
    %s32 = sadd.s32 %s31, 1
    %s33 = scalar_select %p30, %s31, %s32
    %p36 = pneg %p30
    %p37 = scmp.eq.s32.totalorder %s7, 1
    %p38 = por %p36, %p37
    %p39 = scmp.ne.s32.totalorder %s31, %s34
    %p40 = scmp.eq.s32.totalorder %s7, 0
    %p41 = por %p39, %p40
    %p42 = scmp.ne.s32.totalorder %s31, %s34
    %p43 = scmp.eq.s32.totalorder %s12, 1
    %p44 = por %p42, %p43
    %p45 = scmp.ne.s32.totalorder %s34, %s35
    %p46 = scmp.eq.s32.totalorder %s12, 0
    %p47 = por %p45, %p46
    %p48 = scmp.ne.s32.totalorder %s34, %s35
    %p49 = scmp.eq.s32.totalorder %s13, 1
    %p50 = por %p48, %p49
    %p52 = scmp.ne.s32.totalorder %s35, %s51
    %p53 = scmp.eq.s32.totalorder %s13, 0
    %p54 = por %p52, %p53
    %s55 = ssub.s32 %s14, %s26
    %s56 = ssub.s32 %s15, %s22
    %s57 = sor.u32 %s55, %s56
    %p58 = scmp.eq.s32.totalorder %s57, 0
    %s60 = sadd.s32 %s59, 1
    %s61 = scalar_select %p58, %s59, %s60
    %p64 = pneg %p58
    %p65 = scmp.eq.s32.totalorder %s7, 1
    %p66 = por %p64, %p65
    %p67 = scmp.ne.s32.totalorder %s59, %s62
    %p68 = scmp.eq.s32.totalorder %s7, 0
    %p69 = por %p67, %p68
    %p70 = scmp.ne.s32.totalorder %s59, %s62
    %p71 = scmp.eq.s32.totalorder %s12, 1
    %p72 = por %p70, %p71
    %p73 = scmp.ne.s32.totalorder %s62, %s63
    %p74 = scmp.eq.s32.totalorder %s12, 0
    %p75 = por %p73, %p74
    %p76 = scmp.ne.s32.totalorder %s62, %s63
    %p77 = scmp.eq.s32.totalorder %s13, 1
    %p78 = por %p76, %p77
    %p80 = scmp.ne.s32.totalorder %s63, %s79
    %p81 = scmp.eq.s32.totalorder %s13, 0
    %p82 = por %p80, %p81
    %p83 = scmp.le.s32.totalorder 1, %s7
    %p84 = scmp.lt.s32.totalorder %s7, 3
    %p85 = pnand %p83, %p84
    %p86 = pneg %p85
    // Predicated region
    $region9: #{_lambda_.7} parent=5 // pred_check
      _
    $region10: #{_lambda_.7} parent=5 // pred_check_branch
      %88 = sbr.rel (%p85) target = $region12
    $region11: #{_lambda_.7} parent=5 // pred_region
      %s89 = ssub.s32 %s7, 1
    $region12: #{_lambda_.7} parent=5 // pred_fallthru
      _
    %p90 = scmp.lt.s32.totalorder %s7, 2
    // Predicated region
    $region13: #{_lambda_.7} parent=5 // pred_check
      %p91 = pneg %p90
    $region14: #{_lambda_.7} parent=5 // pred_check_branch
      %93 = sbr.rel (%p91) target = $region16
    $region15: #{_lambda_.7} parent=5 // pred_region
      // Predicated region
      $region17: #{_lambda_.7} parent=15 // pred_check
        %p94 = pneg %p41
      $region18: #{_lambda_.7} parent=15 // pred_check_branch
        %96 = sbr.rel (%p94) target = $region20
      $region19: #{_lambda_.7} parent=15 // pred_region
        %s97 = smul.u32 16, %s15
        %p98 = scmp.lt.s32.totalorder %s14, 1
        %s99 = scalar_select %p98, %s14, 1
        %p100 = scmp.lt.s32.totalorder %s97, 15
        %s101 = scalar_select %p100, %s97, 15
        %s102 = smul.addr %s101, 2
        %s103 = smul.addr %s99, 32
        %s104 = sadd.s32 %s102, %s103
        %s105 = smul.addr %s104, 4
        %s106 = scalar_lea.vmem %s0, %s105
        %s107 = smul.u32 16, %s15
      $region20: #{_lambda_.7} parent=15 // pred_fallthru
        _
    $region16: #{_lambda_.7} parent=5 // pred_fallthru
      _
    %p108 = scmp.le.s32.totalorder 1, %s7
    %p109 = scmp.lt.s32.totalorder %s7, 3
    %p110 = pnand %p108, %p109
    %p111 = pneg %p110
    // Predicated region
    $region21: #{_lambda_.7} parent=5 // pred_check
      _
    $region22: #{_lambda_.7} parent=5 // pred_check_branch
      %113 = sbr.rel (%p110) target = $region24
    $region23: #{_lambda_.7} parent=5 // pred_region
      %s114 = ssub.s32 %s7, 1
      %s115 = smul.u32 16, %s17
      %p116 = scmp.lt.s32.totalorder %s16, 1
      %s117 = scalar_select %p116, %s16, 1
      %p118 = scmp.lt.s32.totalorder %s115, 15
      %s119 = scalar_select %p118, %s115, 15
      %s120 = smul.addr %s119, 2
      %s121 = smul.addr %s117, 32
      %s122 = sadd.s32 %s120, %s121
      %s123 = smul.addr %s122, 4
      %s124 = scalar_lea.vmem %s0, %s123
      %p125 = pneg %p47
      %p126 = pneg %p44
      %p127 = pneg %p75
      %p128 = pneg %p72
      %s129 = smul.u32 8, %s17
      %p130 = scmp.lt.s32.totalorder %s16, 1
      %s131 = scalar_select %p130, %s16, 1
      %p132 = scmp.lt.s32.totalorder %s129, 7
      %s133 = scalar_select %p132, %s129, 7
      %s134 = smul.addr %s131, 8
      %s135 = sadd.s32 %s133, %s134
      %s136 = smul.addr %s135, 4
      %s137 = scalar_lea.vmem %s1, %s136
      %s138 = smul.u32 16, %s17
      %p139 = scmp.lt.s32.totalorder %s16, 1
      %s140 = scalar_select %p139, %s16, 1
      %p141 = scmp.lt.s32.totalorder %s138, 15
      %s142 = scalar_select %p141, %s138, 15
      %s143 = smul.addr %s142, 2
      %s144 = smul.addr %s140, 32
      %s145 = sadd.s32 %s143, %s144
      %s146 = smul.addr %s145, 4
      %s147 = scalar_lea.vmem %s0, %s146
      %s148 = smul.u32 16, %s17
      %s149 = smul.u32 8, %s17
      %p150 = scmp.lt.s32.totalorder %s16, 1
      %s151 = scalar_select %p150, %s16, 1
      %p152 = scmp.lt.s32.totalorder %s149, 7
      %s153 = scalar_select %p152, %s149, 7
      %s154 = smul.addr %s151, 8
      %s155 = sadd.s32 %s153, %s154
      %s156 = smul.addr %s155, 4
      %s157 = scalar_lea.vmem %s1, %s156
      %s158 = smul.u32 8, %s17
      %v159 = vld [vmem:[%s147] sm:$0xf]
      %v160 = vld [vmem:[%s147 + $0x4] sm:$0xf]
      %v161 = vld [vmem:[%s147 + $0x8] sm:$0xf]
      %v162 = vld [vmem:[%s147 + $0xc] sm:$0xf]
      %v163 = vld [vmem:[%s147 + $0x10] sm:$0xf]
      %v164 = vld [vmem:[%s147 + $0x14] sm:$0xf]
      %v165 = vld [vmem:[%s147 + $0x18] sm:$0xf]
      %v166 = vld [vmem:[%s147 + $0x1c] sm:$0xf]
      %v167 = vld [vmem:[%s147 + $0x20] sm:$0xf]
      %v168 = vld [vmem:[%s147 + $0x24] sm:$0xf]
      %v169 = vld [vmem:[%s147 + $0x28] sm:$0xf]
      %v170 = vld [vmem:[%s147 + $0x2c] sm:$0xf]
      %v171 = vld [vmem:[%s147 + $0x30] sm:$0xf]
      %v172 = vld [vmem:[%s147 + $0x34] sm:$0xf]
      %v173 = vld [vmem:[%s147 + $0x38] sm:$0xf]
      %v174 = vld [vmem:[%s147 + $0x3c] sm:$0xf]
      %v175 = vld [vmem:[%s147 + $0x40] sm:$0xf]
      %v176 = vld [vmem:[%s147 + $0x44] sm:$0xf]
      %v177 = vld [vmem:[%s147 + $0x48] sm:$0xf]
      %v178 = vld [vmem:[%s147 + $0x4c] sm:$0xf]
      %v179 = vld [vmem:[%s147 + $0x50] sm:$0xf]
      %v180 = vld [vmem:[%s147 + $0x54] sm:$0xf]
      %v181 = vld [vmem:[%s147 + $0x58] sm:$0xf]
      %v182 = vld [vmem:[%s147 + $0x5c] sm:$0xf]
      %v183 = vld [vmem:[%s147 + $0x60] sm:$0xf]
      %v184 = vld [vmem:[%s147 + $0x64] sm:$0xf]
      %v185 = vld [vmem:[%s147 + $0x68] sm:$0xf]
      %v186 = vld [vmem:[%s147 + $0x6c] sm:$0xf]
      %v187 = vld [vmem:[%s147 + $0x70] sm:$0xf]
      %v188 = vld [vmem:[%s147 + $0x74] sm:$0xf]
      %v189 = vld [vmem:[%s147 + $0x78] sm:$0xf]
      %v190 = vld [vmem:[%s147 + $0x7c] sm:$0xf]
      %v191 = vunpack.c.l.bf16 %v159
      %v192 = vunpack.c.l.bf16 %v160
      %v193 = vunpack.c.l.bf16 %v161
      %v194 = vunpack.c.l.bf16 %v162
      %v195 = vunpack.c.l.bf16 %v163
      %v196 = vunpack.c.l.bf16 %v164
      %v197 = vunpack.c.l.bf16 %v165
      %v198 = vunpack.c.l.bf16 %v166
      %v199 = vunpack.c.l.bf16 %v167
      %v200 = vunpack.c.l.bf16 %v168
      %v201 = vunpack.c.l.bf16 %v169
      %v202 = vunpack.c.l.bf16 %v170
      %v203 = vunpack.c.l.bf16 %v171
      %v204 = vunpack.c.l.bf16 %v172
      %v205 = vunpack.c.l.bf16 %v173
      %v206 = vunpack.c.l.bf16 %v174
      %v207 = vunpack.c.l.bf16 %v175
      %v208 = vunpack.c.l.bf16 %v176
      %v209 = vunpack.c.l.bf16 %v177
      %v210 = vunpack.c.l.bf16 %v178
      %v211 = vunpack.c.l.bf16 %v179
      %v212 = vunpack.c.l.bf16 %v180
      %v213 = vunpack.c.l.bf16 %v181
      %v214 = vunpack.c.l.bf16 %v182
      %v215 = vunpack.c.l.bf16 %v183
      %v216 = vunpack.c.l.bf16 %v184
      %v217 = vunpack.c.l.bf16 %v185
      %v218 = vunpack.c.l.bf16 %v186
      %v219 = vunpack.c.l.bf16 %v187
      %v220 = vunpack.c.l.bf16 %v188
      %v221 = vunpack.c.l.bf16 %v189
      %v222 = vunpack.c.l.bf16 %v190
      %v223 = vmax.f32 %v191, %v193
      %v224 = vmax.f32 %v192, %v194
      %v225 = vmax.f32 %v195, %v197
      %v226 = vmax.f32 %v196, %v198
      %v227 = vmax.f32 %v199, %v201
      %v228 = vmax.f32 %v200, %v202
      %v229 = vmax.f32 %v203, %v205
      %v230 = vmax.f32 %v204, %v206
      %v231 = vmax.f32 %v207, %v209
      %v232 = vmax.f32 %v208, %v210
      %v233 = vmax.f32 %v211, %v213
      %v234 = vmax.f32 %v212, %v214
      %v235 = vmax.f32 %v215, %v217
      %v236 = vmax.f32 %v216, %v218
      %v237 = vmax.f32 %v219, %v221
      %v238 = vmax.f32 %v220, %v222
      %v255 = vrot.slane %v223, 2
      %v256 = vrot.slane %v223, 4
      %v257 = vrot.slane %v223, 6
      %v258 = vrot.slane %v224, 2
      %v259 = vrot.slane %v224, 4
      %v260 = vrot.slane %v224, 6
      %v261 = vrot.slane %v225, 2
      %v262 = vrot.slane %v225, 4
      %v263 = vrot.slane %v225, 6
      %v264 = vrot.slane %v226, 2
      %v265 = vrot.slane %v226, 4
      %v266 = vrot.slane %v226, 6
      %v267 = vrot.slane %v227, 2
      %v268 = vrot.slane %v227, 4
      %v269 = vrot.slane %v227, 6
      %v270 = vrot.slane %v228, 2
      %v271 = vrot.slane %v228, 4
      %v272 = vrot.slane %v228, 6
      %v273 = vrot.slane %v229, 2
      %v274 = vrot.slane %v229, 4
      %v275 = vrot.slane %v229, 6
      %v276 = vrot.slane %v230, 2
      %v277 = vrot.slane %v230, 4
      %v278 = vrot.slane %v230, 6
      %v279 = vrot.slane %v231, 2
      %v280 = vrot.slane %v231, 4
      %v281 = vrot.slane %v231, 6
      %v282 = vrot.slane %v232, 2
      %v283 = vrot.slane %v232, 4
      %v284 = vrot.slane %v232, 6
      %v285 = vrot.slane %v233, 2
      %v286 = vrot.slane %v233, 4
      %v287 = vrot.slane %v233, 6
      %v288 = vrot.slane %v234, 2
      %v289 = vrot.slane %v234, 4
      %v290 = vrot.slane %v234, 6
      %v291 = vrot.slane %v235, 2
      %v292 = vrot.slane %v235, 4
      %v293 = vrot.slane %v235, 6
      %v294 = vrot.slane %v236, 2
      %v295 = vrot.slane %v236, 4
      %v296 = vrot.slane %v236, 6
      %v297 = vrot.slane %v237, 2
      %v298 = vrot.slane %v237, 4
      %v299 = vrot.slane %v237, 6
      %v300 = vrot.slane %v238, 2
      %v301 = vrot.slane %v238, 4
      %v302 = vrot.slane %v238, 6
      %v351 = vrot.slane %v223, 7
      %v352 = vrot.slane %v351, 2
      %v353 = vrot.slane %v255, 7
      %v354 = vrot.slane %v353, 2
      %v355 = vrot.slane %v256, 7
      %v356 = vrot.slane %v355, 2
      %v357 = vrot.slane %v257, 7
      %v358 = vrot.slane %v357, 2
      %v359 = vrot.slane %v224, 7
      %v360 = vrot.slane %v359, 2
      %v361 = vrot.slane %v258, 7
      %v362 = vrot.slane %v361, 2
      %v363 = vrot.slane %v259, 7
      %v364 = vrot.slane %v363, 2
      %v365 = vrot.slane %v260, 7
      %v366 = vrot.slane %v365, 2
      %v367 = vrot.slane %v225, 7
      %v368 = vrot.slane %v367, 2
      %v369 = vrot.slane %v261, 7
      %v370 = vrot.slane %v369, 2
      %v371 = vrot.slane %v262, 7
      %v372 = vrot.slane %v371, 2
      %v373 = vrot.slane %v263, 7
      %v374 = vrot.slane %v373, 2
      %v375 = vrot.slane %v226, 7
      %v376 = vrot.slane %v375, 2
      %v377 = vrot.slane %v264, 7
      %v378 = vrot.slane %v377, 2
      %v379 = vrot.slane %v265, 7
      %v380 = vrot.slane %v379, 2
      %v381 = vrot.slane %v266, 7
      %v382 = vrot.slane %v381, 2
      %v383 = vrot.slane %v227, 7
      %v384 = vrot.slane %v383, 2
      %v385 = vrot.slane %v267, 7
      %v386 = vrot.slane %v385, 2
      %v387 = vrot.slane %v268, 7
      %v388 = vrot.slane %v387, 2
      %v389 = vrot.slane %v269, 7
      %v390 = vrot.slane %v389, 2
      %v391 = vrot.slane %v228, 7
      %v392 = vrot.slane %v391, 2
      %v393 = vrot.slane %v270, 7
      %v394 = vrot.slane %v393, 2
      %v395 = vrot.slane %v271, 7
      %v396 = vrot.slane %v395, 2
      %v397 = vrot.slane %v272, 7
      %v398 = vrot.slane %v397, 2
      %v399 = vrot.slane %v229, 7
      %v400 = vrot.slane %v399, 2
      %v401 = vrot.slane %v273, 7
      %v402 = vrot.slane %v401, 2
      %v403 = vrot.slane %v274, 7
      %v404 = vrot.slane %v403, 2
      %v405 = vrot.slane %v275, 7
      %v406 = vrot.slane %v405, 2
      %v407 = vrot.slane %v230, 7
      %v408 = vrot.slane %v407, 2
      %v409 = vrot.slane %v276, 7
      %v410 = vrot.slane %v409, 2
      %v411 = vrot.slane %v277, 7
      %v412 = vrot.slane %v411, 2
      %v413 = vrot.slane %v278, 7
      %v414 = vrot.slane %v413, 2
      %v415 = vrot.slane %v231, 7
      %v416 = vrot.slane %v415, 2
      %v417 = vrot.slane %v279, 7
      %v418 = vrot.slane %v417, 2
      %v419 = vrot.slane %v280, 7
      %v420 = vrot.slane %v419, 2
      %v421 = vrot.slane %v281, 7
      %v422 = vrot.slane %v421, 2
      %v423 = vrot.slane %v232, 7
      %v424 = vrot.slane %v423, 2
      %v425 = vrot.slane %v282, 7
      %v426 = vrot.slane %v425, 2
      %v427 = vrot.slane %v283, 7
      %v428 = vrot.slane %v427, 2
      %v429 = vrot.slane %v284, 7
      %v430 = vrot.slane %v429, 2
      %v431 = vrot.slane %v233, 7
      %v432 = vrot.slane %v431, 2
      %v433 = vrot.slane %v285, 7
      %v434 = vrot.slane %v433, 2
      %v435 = vrot.slane %v286, 7
      %v436 = vrot.slane %v435, 2
      %v437 = vrot.slane %v287, 7
      %v438 = vrot.slane %v437, 2
      %v439 = vrot.slane %v234, 7
      %v440 = vrot.slane %v439, 2
      %v441 = vrot.slane %v288, 7
      %v442 = vrot.slane %v441, 2
      %v443 = vrot.slane %v289, 7
      %v444 = vrot.slane %v443, 2
      %v445 = vrot.slane %v290, 7
      %v446 = vrot.slane %v445, 2
      %v447 = vrot.slane %v235, 7
      %v448 = vrot.slane %v447, 2
      %v449 = vrot.slane %v291, 7
      %v450 = vrot.slane %v449, 2
      %v451 = vrot.slane %v292, 7
      %v452 = vrot.slane %v451, 2
      %v453 = vrot.slane %v293, 7
      %v454 = vrot.slane %v453, 2
      %v455 = vrot.slane %v236, 7
      %v456 = vrot.slane %v455, 2
      %v457 = vrot.slane %v294, 7
      %v458 = vrot.slane %v457, 2
      %v459 = vrot.slane %v295, 7
      %v460 = vrot.slane %v459, 2
      %v461 = vrot.slane %v296, 7
      %v462 = vrot.slane %v461, 2
      %v463 = vrot.slane %v237, 7
      %v464 = vrot.slane %v463, 2
      %v465 = vrot.slane %v297, 7
      %v466 = vrot.slane %v465, 2
      %v467 = vrot.slane %v298, 7
      %v468 = vrot.slane %v467, 2
      %v469 = vrot.slane %v299, 7
      %v470 = vrot.slane %v469, 2
      %v471 = vrot.slane %v238, 7
      %v472 = vrot.slane %v471, 2
      %v473 = vrot.slane %v300, 7
      %v474 = vrot.slane %v473, 2
      %v475 = vrot.slane %v301, 7
      %v476 = vrot.slane %v475, 2
      %v477 = vrot.slane %v302, 7
      %v478 = vrot.slane %v477, 2
      %v543 = vmax.f32 %v223, %v352
      %v544 = vmax.f32 %v255, %v354
      %v545 = vmax.f32 %v256, %v356
      %v546 = vmax.f32 %v257, %v358
      %v547 = vmax.f32 %v224, %v360
      %v548 = vmax.f32 %v258, %v362
      %v549 = vmax.f32 %v259, %v364
      %v550 = vmax.f32 %v260, %v366
      %v551 = vmax.f32 %v225, %v368
      %v552 = vmax.f32 %v261, %v370
      %v553 = vmax.f32 %v262, %v372
      %v554 = vmax.f32 %v263, %v374
      %v555 = vmax.f32 %v226, %v376
      %v556 = vmax.f32 %v264, %v378
      %v557 = vmax.f32 %v265, %v380
      %v558 = vmax.f32 %v266, %v382
      %v559 = vmax.f32 %v227, %v384
      %v560 = vmax.f32 %v267, %v386
      %v561 = vmax.f32 %v268, %v388
      %v562 = vmax.f32 %v269, %v390
      %v563 = vmax.f32 %v228, %v392
      %v564 = vmax.f32 %v270, %v394
      %v565 = vmax.f32 %v271, %v396
      %v566 = vmax.f32 %v272, %v398
      %v567 = vmax.f32 %v229, %v400
      %v568 = vmax.f32 %v273, %v402
      %v569 = vmax.f32 %v274, %v404
      %v570 = vmax.f32 %v275, %v406
      %v571 = vmax.f32 %v230, %v408
      %v572 = vmax.f32 %v276, %v410
      %v573 = vmax.f32 %v277, %v412
      %v574 = vmax.f32 %v278, %v414
      %v575 = vmax.f32 %v231, %v416
      %v576 = vmax.f32 %v279, %v418
      %v577 = vmax.f32 %v280, %v420
      %v578 = vmax.f32 %v281, %v422
      %v579 = vmax.f32 %v232, %v424
      %v580 = vmax.f32 %v282, %v426
      %v581 = vmax.f32 %v283, %v428
      %v582 = vmax.f32 %v284, %v430
      %v583 = vmax.f32 %v233, %v432
      %v584 = vmax.f32 %v285, %v434
      %v585 = vmax.f32 %v286, %v436
      %v586 = vmax.f32 %v287, %v438
      %v587 = vmax.f32 %v234, %v440
      %v588 = vmax.f32 %v288, %v442
      %v589 = vmax.f32 %v289, %v444
      %v590 = vmax.f32 %v290, %v446
      %v591 = vmax.f32 %v235, %v448
      %v592 = vmax.f32 %v291, %v450
      %v593 = vmax.f32 %v292, %v452
      %v594 = vmax.f32 %v293, %v454
      %v595 = vmax.f32 %v236, %v456
      %v596 = vmax.f32 %v294, %v458
      %v597 = vmax.f32 %v295, %v460
      %v598 = vmax.f32 %v296, %v462
      %v599 = vmax.f32 %v237, %v464
      %v600 = vmax.f32 %v297, %v466
      %v601 = vmax.f32 %v298, %v468
      %v602 = vmax.f32 %v299, %v470
      %v603 = vmax.f32 %v238, %v472
      %v604 = vmax.f32 %v300, %v474
      %v605 = vmax.f32 %v301, %v476
      %v606 = vmax.f32 %v302, %v478
      %v607 = vpack.c.bf16 %v543, %v543
      %v608 = vpack.c.bf16 %v544, %v544
      %v609 = vpack.c.bf16 %v545, %v545
      %v610 = vpack.c.bf16 %v546, %v546
      %v611 = vpack.c.bf16 %v547, %v547
      %v612 = vpack.c.bf16 %v548, %v548
      %v613 = vpack.c.bf16 %v549, %v549
      %v614 = vpack.c.bf16 %v550, %v550
      %v615 = vpack.c.bf16 %v551, %v551
      %v616 = vpack.c.bf16 %v552, %v552
      %v617 = vpack.c.bf16 %v553, %v553
      %v618 = vpack.c.bf16 %v554, %v554
      %v619 = vpack.c.bf16 %v555, %v555
      %v620 = vpack.c.bf16 %v556, %v556
      %v621 = vpack.c.bf16 %v557, %v557
      %v622 = vpack.c.bf16 %v558, %v558
      %v623 = vpack.c.bf16 %v559, %v559
      %v624 = vpack.c.bf16 %v560, %v560
      %v625 = vpack.c.bf16 %v561, %v561
      %v626 = vpack.c.bf16 %v562, %v562
      %v627 = vpack.c.bf16 %v563, %v563
      %v628 = vpack.c.bf16 %v564, %v564
      %v629 = vpack.c.bf16 %v565, %v565
      %v630 = vpack.c.bf16 %v566, %v566
      %v631 = vpack.c.bf16 %v567, %v567
      %v632 = vpack.c.bf16 %v568, %v568
      %v633 = vpack.c.bf16 %v569, %v569
      %v634 = vpack.c.bf16 %v570, %v570
      %v635 = vpack.c.bf16 %v571, %v571
      %v636 = vpack.c.bf16 %v572, %v572
      %v637 = vpack.c.bf16 %v573, %v573
      %v638 = vpack.c.bf16 %v574, %v574
      %v639 = vpack.c.bf16 %v575, %v575
      %v640 = vpack.c.bf16 %v576, %v576
      %v641 = vpack.c.bf16 %v577, %v577
      %v642 = vpack.c.bf16 %v578, %v578
      %v643 = vpack.c.bf16 %v579, %v579
      %v644 = vpack.c.bf16 %v580, %v580
      %v645 = vpack.c.bf16 %v581, %v581
      %v646 = vpack.c.bf16 %v582, %v582
      %v647 = vpack.c.bf16 %v583, %v583
      %v648 = vpack.c.bf16 %v584, %v584
      %v649 = vpack.c.bf16 %v585, %v585
      %v650 = vpack.c.bf16 %v586, %v586
      %v651 = vpack.c.bf16 %v587, %v587
      %v652 = vpack.c.bf16 %v588, %v588
      %v653 = vpack.c.bf16 %v589, %v589
      %v654 = vpack.c.bf16 %v590, %v590
      %v655 = vpack.c.bf16 %v591, %v591
      %v656 = vpack.c.bf16 %v592, %v592
      %v657 = vpack.c.bf16 %v593, %v593
      %v658 = vpack.c.bf16 %v594, %v594
      %v659 = vpack.c.bf16 %v595, %v595
      %v660 = vpack.c.bf16 %v596, %v596
      %v661 = vpack.c.bf16 %v597, %v597
      %v662 = vpack.c.bf16 %v598, %v598
      %v663 = vpack.c.bf16 %v599, %v599
      %v664 = vpack.c.bf16 %v600, %v600
      %v665 = vpack.c.bf16 %v601, %v601
      %v666 = vpack.c.bf16 %v602, %v602
      %v667 = vpack.c.bf16 %v603, %v603
      %v668 = vpack.c.bf16 %v604, %v604
      %v669 = vpack.c.bf16 %v605, %v605
      %v670 = vpack.c.bf16 %v606, %v606
      %v735 = vunpack.c.l.b16 %v607
      %v736 = vunpack.c.l.b16 %v608
      %v737 = vunpack.c.l.b16 %v609
      %v738 = vunpack.c.l.b16 %v610
      %v739 = vunpack.c.l.b16 %v611
      %v740 = vunpack.c.l.b16 %v612
      %v741 = vunpack.c.l.b16 %v613
      %v742 = vunpack.c.l.b16 %v614
      %v743 = vunpack.c.l.b16 %v615
      %v744 = vunpack.c.l.b16 %v616
      %v745 = vunpack.c.l.b16 %v617
      %v746 = vunpack.c.l.b16 %v618
      %v747 = vunpack.c.l.b16 %v619
      %v748 = vunpack.c.l.b16 %v620
      %v749 = vunpack.c.l.b16 %v621
      %v750 = vunpack.c.l.b16 %v622
      %v751 = vunpack.c.l.b16 %v623
      %v752 = vunpack.c.l.b16 %v624
      %v753 = vunpack.c.l.b16 %v625
      %v754 = vunpack.c.l.b16 %v626
      %v755 = vunpack.c.l.b16 %v627
      %v756 = vunpack.c.l.b16 %v628
      %v757 = vunpack.c.l.b16 %v629
      %v758 = vunpack.c.l.b16 %v630
      %v759 = vunpack.c.l.b16 %v631
      %v760 = vunpack.c.l.b16 %v632
      %v761 = vunpack.c.l.b16 %v633
      %v762 = vunpack.c.l.b16 %v634
      %v763 = vunpack.c.l.b16 %v635
      %v764 = vunpack.c.l.b16 %v636
      %v765 = vunpack.c.l.b16 %v637
      %v766 = vunpack.c.l.b16 %v638
      %v767 = vunpack.c.l.b16 %v639
      %v768 = vunpack.c.l.b16 %v640
      %v769 = vunpack.c.l.b16 %v641
      %v770 = vunpack.c.l.b16 %v642
      %v771 = vunpack.c.l.b16 %v643
      %v772 = vunpack.c.l.b16 %v644
      %v773 = vunpack.c.l.b16 %v645
      %v774 = vunpack.c.l.b16 %v646
      %v775 = vunpack.c.l.b16 %v647
      %v776 = vunpack.c.l.b16 %v648
      %v777 = vunpack.c.l.b16 %v649
      %v778 = vunpack.c.l.b16 %v650
      %v779 = vunpack.c.l.b16 %v651
      %v780 = vunpack.c.l.b16 %v652
      %v781 = vunpack.c.l.b16 %v653
      %v782 = vunpack.c.l.b16 %v654
      %v783 = vunpack.c.l.b16 %v655
      %v784 = vunpack.c.l.b16 %v656
      %v785 = vunpack.c.l.b16 %v657
      %v786 = vunpack.c.l.b16 %v658
      %v787 = vunpack.c.l.b16 %v659
      %v788 = vunpack.c.l.b16 %v660
      %v789 = vunpack.c.l.b16 %v661
      %v790 = vunpack.c.l.b16 %v662
      %v791 = vunpack.c.l.b16 %v663
      %v792 = vunpack.c.l.b16 %v664
      %v793 = vunpack.c.l.b16 %v665
      %v794 = vunpack.c.l.b16 %v666
      %v795 = vunpack.c.l.b16 %v667
      %v796 = vunpack.c.l.b16 %v668
      %v797 = vunpack.c.l.b16 %v669
      %v798 = vunpack.c.l.b16 %v670
      %v799 = vrot.slane %v736, 7
      %vm800 = vcmask 1041409
      %v801 = vsel %vm800, %v799, %v735
      %v802 = vrot.slane %v737, 6
      %vm803 = vcmask 1042434
      %v804 = vsel %vm803, %v802, %v801
      %v805 = vrot.slane %v738, 5
      %vm806 = vcmask 1043459
      %v807 = vsel %vm806, %v805, %v804
      %v808 = vrot.slane %v739, 4
      %vm809 = vcmask 1044484
      %v810 = vsel %vm809, %v808, %v807
      %v811 = vrot.slane %v740, 3
      %vm812 = vcmask 1045509
      %v813 = vsel %vm812, %v811, %v810
      %v814 = vrot.slane %v741, 2
      %vm815 = vcmask 1046534
      %v816 = vsel %vm815, %v814, %v813
      %v817 = vrot.slane %v742, 1
      %vm818 = vcmask 1047559
      %v819 = vsel %vm818, %v817, %v816
      %v820 = vrot.slane %v744, 7
      %v821 = vsel %vm800, %v820, %v743
      %v822 = vrot.slane %v745, 6
      %v823 = vsel %vm803, %v822, %v821
      %v824 = vrot.slane %v746, 5
      %v825 = vsel %vm806, %v824, %v823
      %v826 = vrot.slane %v747, 4
      %v827 = vsel %vm809, %v826, %v825
      %v828 = vrot.slane %v748, 3
      %v829 = vsel %vm812, %v828, %v827
      %v830 = vrot.slane %v749, 2
      %v831 = vsel %vm815, %v830, %v829
      %v832 = vrot.slane %v750, 1
      %v833 = vsel %vm818, %v832, %v831
      %v834 = vrot.slane %v752, 7
      %v835 = vsel %vm800, %v834, %v751
      %v836 = vrot.slane %v753, 6
      %v837 = vsel %vm803, %v836, %v835
      %v838 = vrot.slane %v754, 5
      %v839 = vsel %vm806, %v838, %v837
      %v840 = vrot.slane %v755, 4
      %v841 = vsel %vm809, %v840, %v839
      %v842 = vrot.slane %v756, 3
      %v843 = vsel %vm812, %v842, %v841
      %v844 = vrot.slane %v757, 2
      %v845 = vsel %vm815, %v844, %v843
      %v846 = vrot.slane %v758, 1
      %v847 = vsel %vm818, %v846, %v845
      %v848 = vrot.slane %v760, 7
      %v849 = vsel %vm800, %v848, %v759
      %v850 = vrot.slane %v761, 6
      %v851 = vsel %vm803, %v850, %v849
      %v852 = vrot.slane %v762, 5
      %v853 = vsel %vm806, %v852, %v851
      %v854 = vrot.slane %v763, 4
      %v855 = vsel %vm809, %v854, %v853
      %v856 = vrot.slane %v764, 3
      %v857 = vsel %vm812, %v856, %v855
      %v858 = vrot.slane %v765, 2
      %v859 = vsel %vm815, %v858, %v857
      %v860 = vrot.slane %v766, 1
      %v861 = vsel %vm818, %v860, %v859
      %v862 = vrot.slane %v768, 7
      %v863 = vsel %vm800, %v862, %v767
      %v864 = vrot.slane %v769, 6
      %v865 = vsel %vm803, %v864, %v863
      %v866 = vrot.slane %v770, 5
      %v867 = vsel %vm806, %v866, %v865
      %v868 = vrot.slane %v771, 4
      %v869 = vsel %vm809, %v868, %v867
      %v870 = vrot.slane %v772, 3
      %v871 = vsel %vm812, %v870, %v869
      %v872 = vrot.slane %v773, 2
      %v873 = vsel %vm815, %v872, %v871
      %v874 = vrot.slane %v774, 1
      %v875 = vsel %vm818, %v874, %v873
      %v876 = vrot.slane %v776, 7
      %v877 = vsel %vm800, %v876, %v775
      %v878 = vrot.slane %v777, 6
      %v879 = vsel %vm803, %v878, %v877
      %v880 = vrot.slane %v778, 5
      %v881 = vsel %vm806, %v880, %v879
      %v882 = vrot.slane %v779, 4
      %v883 = vsel %vm809, %v882, %v881
      %v884 = vrot.slane %v780, 3
      %v885 = vsel %vm812, %v884, %v883
      %v886 = vrot.slane %v781, 2
      %v887 = vsel %vm815, %v886, %v885
      %v888 = vrot.slane %v782, 1
      %v889 = vsel %vm818, %v888, %v887
      %v890 = vrot.slane %v784, 7
      %v891 = vsel %vm800, %v890, %v783
      %v892 = vrot.slane %v785, 6
      %v893 = vsel %vm803, %v892, %v891
      %v894 = vrot.slane %v786, 5
      %v895 = vsel %vm806, %v894, %v893
      %v896 = vrot.slane %v787, 4
      %v897 = vsel %vm809, %v896, %v895
      %v898 = vrot.slane %v788, 3
      %v899 = vsel %vm812, %v898, %v897
      %v900 = vrot.slane %v789, 2
      %v901 = vsel %vm815, %v900, %v899
      %v902 = vrot.slane %v790, 1
      %v903 = vsel %vm818, %v902, %v901
      %v904 = vrot.slane %v792, 7
      %v905 = vsel %vm800, %v904, %v791
      %v906 = vrot.slane %v793, 6
      %v907 = vsel %vm803, %v906, %v905
      %v908 = vrot.slane %v794, 5
      %v909 = vsel %vm806, %v908, %v907
      %v910 = vrot.slane %v795, 4
      %v911 = vsel %vm809, %v910, %v909
      %v912 = vrot.slane %v796, 3
      %v913 = vsel %vm812, %v912, %v911
      %v914 = vrot.slane %v797, 2
      %v915 = vsel %vm815, %v914, %v913
      %v916 = vrot.slane %v798, 1
      %v917 = vsel %vm818, %v916, %v915
      %v918 = vpack.c.b16 %v819, %v819
      %v919 = vpack.c.b16 %v833, %v833
      %v920 = vpack.c.b16 %v847, %v847
      %v921 = vpack.c.b16 %v861, %v861
      %v922 = vpack.c.b16 %v875, %v875
      %v923 = vpack.c.b16 %v889, %v889
      %v924 = vpack.c.b16 %v903, %v903
      %v925 = vpack.c.b16 %v917, %v917
      %vm934 = vcmask 519168
      %935 = vst.msk [vmem:[%s157] sm:$0xf] %vm934, %v918
      %936 = vst.msk [vmem:[%s157 + $0x4] sm:$0xf] %vm934, %v919
      %937 = vst.msk [vmem:[%s157 + $0x8] sm:$0xf] %vm934, %v920
      %938 = vst.msk [vmem:[%s157 + $0xc] sm:$0xf] %vm934, %v921
      %939 = vst.msk [vmem:[%s157 + $0x10] sm:$0xf] %vm934, %v922
      %940 = vst.msk [vmem:[%s157 + $0x14] sm:$0xf] %vm934, %v923
      %941 = vst.msk [vmem:[%s157 + $0x18] sm:$0xf] %vm934, %v924
      %942 = vst.msk [vmem:[%s157 + $0x1c] sm:$0xf] %vm934, %v925
      %s943 = smul.u32 8, %s17
      %p944 = scmp.lt.s32.totalorder %s16, 1
      %s945 = scalar_select %p944, %s16, 1
      %p946 = scmp.lt.s32.totalorder %s943, 7
      %s947 = scalar_select %p946, %s943, 7
      %s948 = smul.addr %s945, 8
      %s949 = sadd.s32 %s947, %s948
      %s950 = smul.addr %s949, 4
      %s951 = scalar_lea.vmem %s1, %s950
      // Predicated region
      $region25: #{_lambda_.7} parent=23 // pred_check
        %p952 = pneg %p72
      $region26: #{_lambda_.7} parent=23 // pred_check_branch
        %954 = sbr.rel (%p952) target = $region28
      $region27: #{_lambda_.7} parent=23 // pred_region
        %s955 = smul.u32 8, %s17
      $region28: #{_lambda_.7} parent=23 // pred_fallthru
        _
    $region24: #{_lambda_.7} parent=5 // pred_fallthru
      _
    %p956 = scmp.le.s32.totalorder 2, %s7
    // Predicated region
    $region29: #{_lambda_.7} parent=5 // pred_check
      %p957 = pneg %p956
    $region30: #{_lambda_.7} parent=5 // pred_check_branch
      %959 = sbr.rel (%p957) target = $region32
    $region31: #{_lambda_.7} parent=5 // pred_region
      %s960 = ssub.s32 %s7, 2
      // Predicated region
      $region33: #{_lambda_.7} parent=31 // pred_check
        %p961 = pneg %p78
      $region34: #{_lambda_.7} parent=31 // pred_check_branch
        %963 = sbr.rel (%p961) target = $region36
      $region35: #{_lambda_.7} parent=31 // pred_region
        %s964 = smul.u32 8, %s19
        %p965 = scmp.lt.s32.totalorder %s18, 1
        %s966 = scalar_select %p965, %s18, 1
        %p967 = scmp.lt.s32.totalorder %s964, 7
        %s968 = scalar_select %p967, %s964, 7
        %s969 = smul.addr %s966, 8
        %s970 = sadd.s32 %s968, %s969
        %s971 = smul.addr %s970, 4
        %s972 = scalar_lea.vmem %s1, %s971
      $region36: #{_lambda_.7} parent=31 // pred_fallthru
        _
    $region32: #{_lambda_.7} parent=5 // pred_fallthru
      _
  $region6: #{_lambda_.7} parent=0 // loop_footer
    %s11 = sadd.s32 1, %s7
  $region7: #{_lambda_.7} parent=0 // loop_footer_branch
    %6 = sbr.rel target = $region3
  $region8: #{_lambda_.7} parent=0 // loop_exit
    _

// kernel: _lambda_.8
$region0: #{_lambda_.8}
  #allocation0 [shape = 'u32[]', space=smem, size = 0x4, offset = 0x4, fixed_abs, tag = 'smem constant byte address 0x4 - core index']
  #allocation1 [shape = 'u32[72,128]{1,0:T(1,128)}', space=vmem, size = 0x9000, scoped, tag = 'internal scratch']
  #allocation2 [shape = 'f32[8,64]{1,0:T(8,128)}', space=vmem, size = 0x1000, scoped, tag = 'scratch operand']
  %s0 = inlined_call_operand.vmem [shape: bf16[2,10,10,64], index: 0, kind: input, shape index: {}]
  %s1 = inlined_call_operand.vmem [shape: bf16[3,3,64,64], index: 1, kind: input, shape index: {}]
  %s2 = inlined_call_operand.vmem [shape: f32[1,64], index: 2, kind: input, shape index: {}]
  %s3 = inlined_call_operand.vmem [shape: f32[1,64], index: 3, kind: input, shape index: {}]
  %s4 = inlined_call_operand.vmem [shape: bf16[2,8,8,64], index: 4, kind: output, shape index: {}]
  %s5 = sld [smem:[#allocation0]]
  $region57: #{_lambda_.8} parent=0
    _
  %s7 = ssub.s32 1, %s5
  %s8 = scalar_select 0, %s7, %s5
  loop: start=0, step=1, limit=50
  $region2: #{_lambda_.8} parent=0 // loop_pre_header
    _
  $region3: #{_lambda_.8} parent=0 // loop_header
    %s10 = sphi 0, %s14
    %p11 = scmp.ge.s32.totalorder %s10, 50
    %s17 = sphi 0, %s36
    %s18 = sphi 0, %s32
    %s19 = sphi 0, %s28
    %s20 = sphi 0, %s17
    %s21 = sphi 0, %s18
    %s22 = sphi 0, %s19
    %s23 = sphi 0, %s20
    %s24 = sphi 0, %s21
    %s25 = sphi 0, %s22
    %s43 = sphi 0, %s45
    %s46 = sphi 0, %s43
    %s47 = sphi 0, %s46
    %s63 = sphi 0, %s47
    %s67 = sphi 0, %s67
    %s69 = sphi 0, %s67
    %s70 = sphi 0, %s69
    %s84 = sphi 0, %s70
    %s88 = sphi 0, %s88
    %s90 = sphi 0, %s88
    %s91 = sphi 0, %s90
    %s105 = sphi 0, %s91
    %s109 = sphi 0, %s109
    %s111 = sphi 0, %s109
    %s112 = sphi 0, %s111
    %s126 = sphi 0, %s112
    %s134 = sphi 0, %s136
    %s137 = sphi 0, %s134
    %s138 = sphi 0, %s137
    %s154 = sphi 0, %s138
  $region4: #{_lambda_.8} parent=0 // loop_header_branch
    %13 = sbr.rel (%p11) target = $region8
  $region5: #{_lambda_.8} parent=0 // loop_body
    %s15 = ssub.s32 %s10, 1
    %s16 = ssub.s32 %s10, 2
    %s26 = sadd.s32 1, %s19
    %p27 = scmp.ge.s32.totalorder %s26, 3
    %s28 = scalar_select %p27, 0, %s26
    %s29 = sadd.s32 1, %s18
    %s30 = scalar_select %p27, %s29, %s18
    %p31 = scmp.ge.s32.totalorder %s30, 8
    %s32 = scalar_select %p31, 0, %s30
    %s33 = sadd.s32 1, %s17
    %s34 = scalar_select %p31, %s33, %s17
    %p35 = scmp.ge.s32.totalorder %s34, 2
    %s36 = scalar_select %p35, 0, %s34
    %s37 = sadd.s32 %s18, %s19
    %s38 = sadd.s32 %s32, %s28
    %s39 = ssub.s32 %s17, %s36
    %s40 = ssub.s32 %s37, %s38
    %s41 = sor.u32 %s39, %s40
    %p42 = scmp.eq.s32.totalorder %s41, 0
    %s44 = sadd.s32 %s43, 1
    %s45 = scalar_select %p42, %s43, %s44
    %p48 = pneg %p42
    %p49 = scmp.eq.s32.totalorder %s10, 47
    %p50 = por %p48, %p49
    %p51 = scmp.ne.s32.totalorder %s43, %s46
    %p52 = scmp.eq.s32.totalorder %s10, 0
    %p53 = por %p51, %p52
    %p54 = scmp.ne.s32.totalorder %s43, %s46
    %p55 = scmp.eq.s32.totalorder %s15, 47
    %p56 = por %p54, %p55
    %p57 = scmp.ne.s32.totalorder %s46, %s47
    %p58 = scmp.eq.s32.totalorder %s15, 0
    %p59 = por %p57, %p58
    %p60 = scmp.ne.s32.totalorder %s46, %s47
    %p61 = scmp.eq.s32.totalorder %s16, 47
    %p62 = por %p60, %p61
    %p64 = scmp.ne.s32.totalorder %s47, %s63
    %p65 = scmp.eq.s32.totalorder %s16, 0
    %p66 = por %p64, %p65
    %s68 = sadd.s32 %s67, 1
    %p71 = scmp.eq.s32.totalorder %s10, 47
    %p72 = scmp.ne.s32.totalorder %s67, %s69
    %p73 = scmp.eq.s32.totalorder %s10, 0
    %p74 = por %p72, %p73
    %p75 = scmp.ne.s32.totalorder %s67, %s69
    %p76 = scmp.eq.s32.totalorder %s15, 47
    %p77 = por %p75, %p76
    %p78 = scmp.ne.s32.totalorder %s69, %s70
    %p79 = scmp.eq.s32.totalorder %s15, 0
    %p80 = por %p78, %p79
    %p81 = scmp.ne.s32.totalorder %s69, %s70
    %p82 = scmp.eq.s32.totalorder %s16, 47
    %p83 = por %p81, %p82
    %p85 = scmp.ne.s32.totalorder %s70, %s84
    %p86 = scmp.eq.s32.totalorder %s16, 0
    %p87 = por %p85, %p86
    %s89 = sadd.s32 %s88, 1
    %p92 = scmp.eq.s32.totalorder %s10, 47
    %p93 = scmp.ne.s32.totalorder %s88, %s90
    %p94 = scmp.eq.s32.totalorder %s10, 0
    %p95 = por %p93, %p94
    %p96 = scmp.ne.s32.totalorder %s88, %s90
    %p97 = scmp.eq.s32.totalorder %s15, 47
    %p98 = por %p96, %p97
    %p99 = scmp.ne.s32.totalorder %s90, %s91
    %p100 = scmp.eq.s32.totalorder %s15, 0
    %p101 = por %p99, %p100
    %p102 = scmp.ne.s32.totalorder %s90, %s91
    %p103 = scmp.eq.s32.totalorder %s16, 47
    %p104 = por %p102, %p103
    %p106 = scmp.ne.s32.totalorder %s91, %s105
    %p107 = scmp.eq.s32.totalorder %s16, 0
    %p108 = por %p106, %p107
    %s110 = sadd.s32 %s109, 1
    %p113 = scmp.eq.s32.totalorder %s10, 47
    %p114 = scmp.ne.s32.totalorder %s109, %s111
    %p115 = scmp.eq.s32.totalorder %s10, 0
    %p116 = por %p114, %p115
    %p117 = scmp.ne.s32.totalorder %s109, %s111
    %p118 = scmp.eq.s32.totalorder %s15, 47
    %p119 = por %p117, %p118
    %p120 = scmp.ne.s32.totalorder %s111, %s112
    %p121 = scmp.eq.s32.totalorder %s15, 0
    %p122 = por %p120, %p121
    %p123 = scmp.ne.s32.totalorder %s111, %s112
    %p124 = scmp.eq.s32.totalorder %s16, 47
    %p125 = por %p123, %p124
    %p127 = scmp.ne.s32.totalorder %s112, %s126
    %p128 = scmp.eq.s32.totalorder %s16, 0
    %p129 = por %p127, %p128
    %s130 = ssub.s32 %s17, %s36
    %s131 = ssub.s32 %s18, %s32
    %s132 = sor.u32 %s130, %s131
    %p133 = scmp.eq.s32.totalorder %s132, 0
    %s135 = sadd.s32 %s134, 1
    %s136 = scalar_select %p133, %s134, %s135
    %p139 = pneg %p133
    %p140 = scmp.eq.s32.totalorder %s10, 47
    %p141 = por %p139, %p140
    %p142 = scmp.ne.s32.totalorder %s134, %s137
    %p143 = scmp.eq.s32.totalorder %s10, 0
    %p144 = por %p142, %p143
    %p145 = scmp.ne.s32.totalorder %s134, %s137
    %p146 = scmp.eq.s32.totalorder %s15, 47
    %p147 = por %p145, %p146
    %p148 = scmp.ne.s32.totalorder %s137, %s138
    %p149 = scmp.eq.s32.totalorder %s15, 0
    %p150 = por %p148, %p149
    %p151 = scmp.ne.s32.totalorder %s137, %s138
    %p152 = scmp.eq.s32.totalorder %s16, 47
    %p153 = por %p151, %p152
    %p155 = scmp.ne.s32.totalorder %s138, %s154
    %p156 = scmp.eq.s32.totalorder %s16, 0
    %p157 = por %p155, %p156
    %p158 = scmp.le.s32.totalorder 1, %s10
    %p159 = scmp.lt.s32.totalorder %s10, 49
    %p160 = pnand %p158, %p159
    %p161 = pneg %p160
    // Predicated region
    $region9: #{_lambda_.8} parent=5 // pred_check
      _
    $region10: #{_lambda_.8} parent=5 // pred_check_branch
      %163 = sbr.rel (%p160) target = $region12
    $region11: #{_lambda_.8} parent=5 // pred_region
      %s164 = ssub.s32 %s10, 1
      // Predicated region
      $region13: #{_lambda_.8} parent=11 // pred_check
        %p165 = pneg %p80
      $region14: #{_lambda_.8} parent=11 // pred_check_branch
        %167 = sbr.rel (%p165) target = $region16
      $region15: #{_lambda_.8} parent=11 // pred_region
        _
      $region16: #{_lambda_.8} parent=11 // pred_fallthru
        _
      // Predicated region
      $region17: #{_lambda_.8} parent=11 // pred_check
        %p168 = pneg %p101
      $region18: #{_lambda_.8} parent=11 // pred_check_branch
        %170 = sbr.rel (%p168) target = $region20
      $region19: #{_lambda_.8} parent=11 // pred_region
        _
      $region20: #{_lambda_.8} parent=11 // pred_fallthru
        _
      // Predicated region
      $region21: #{_lambda_.8} parent=11 // pred_check
        %p171 = pneg %p122
      $region22: #{_lambda_.8} parent=11 // pred_check_branch
        %173 = sbr.rel (%p171) target = $region24
      $region23: #{_lambda_.8} parent=11 // pred_region
        _
      $region24: #{_lambda_.8} parent=11 // pred_fallthru
        _
    $region12: #{_lambda_.8} parent=5 // pred_fallthru
      _
    %p174 = scmp.lt.s32.totalorder %s10, 48
    // Predicated region
    $region25: #{_lambda_.8} parent=5 // pred_check
      %p175 = pneg %p174
    $region26: #{_lambda_.8} parent=5 // pred_check_branch
      %177 = sbr.rel (%p175) target = $region28
    $region27: #{_lambda_.8} parent=5 // pred_region
      // Predicated region
      $region29: #{_lambda_.8} parent=27 // pred_check
        %p178 = pneg %p53
      $region30: #{_lambda_.8} parent=27 // pred_check_branch
        %180 = sbr.rel (%p178) target = $region32
      $region31: #{_lambda_.8} parent=27 // pred_region
        %s181 = sadd.s32 %s18, %s19
        %p182 = scmp.lt.s32.totalorder %s17, 1
        %s183 = scalar_select %p182, %s17, 1
        %p184 = scmp.lt.s32.totalorder %s181, 9
        %s185 = scalar_select %p184, %s181, 9
        %s186 = smul.addr %s185, 2
        %s187 = smul.addr %s183, 20
        %s188 = sadd.s32 %s186, %s187
        %s189 = smul.addr %s188, 4
        %s190 = scalar_lea.vmem %s0, %s189
        %s191 = sadd.s32 %s18, %s19
      $region32: #{_lambda_.8} parent=27 // pred_fallthru
        _
    $region28: #{_lambda_.8} parent=5 // pred_fallthru
      _
    %p192 = scmp.le.s32.totalorder 1, %s10
    %p193 = scmp.lt.s32.totalorder %s10, 49
    %p194 = pnand %p192, %p193
    %p195 = pneg %p194
    // Predicated region
    $region33: #{_lambda_.8} parent=5 // pred_check
      _
    $region34: #{_lambda_.8} parent=5 // pred_check_branch
      %197 = sbr.rel (%p194) target = $region36
    $region35: #{_lambda_.8} parent=5 // pred_region
      %s198 = ssub.s32 %s10, 1
      %s199 = sadd.s32 %s21, %s22
      %p200 = scmp.lt.s32.totalorder %s20, 1
      %s201 = scalar_select %p200, %s20, 1
      %p202 = scmp.lt.s32.totalorder %s199, 9
      %s203 = scalar_select %p202, %s199, 9
      %s204 = smul.addr %s203, 2
      %s205 = smul.addr %s201, 20
      %s206 = sadd.s32 %s204, %s205
      %s207 = smul.addr %s206, 4
      %s208 = scalar_lea.vmem %s0, %s207
      %p209 = pneg %p59
      %p210 = pneg %p56
      %p211 = pneg %p80
      %p212 = pneg %p77
      %p213 = pneg %p101
      %p214 = pneg %p98
      %p215 = pneg %p122
      %p216 = pneg %p119
      %p217 = pneg %p150
      %p218 = pneg %p147
      %p219 = scmp.lt.s32.totalorder %s20, 1
      %s220 = scalar_select %p219, %s20, 1
      %p221 = scmp.lt.s32.totalorder %s21, 7
      %s222 = scalar_select %p221, %s21, 7
      %s223 = smul.addr %s220, 8
      %s224 = sadd.s32 %s222, %s223
      %s225 = smul.addr %s224, 4
      %s226 = scalar_lea.vmem %s4, %s225
      %s227 = sadd.s32 %s21, %s22
      %p228 = scmp.lt.s32.totalorder %s20, 1
      %s229 = scalar_select %p228, %s20, 1
      %p230 = scmp.lt.s32.totalorder %s227, 9
      %s231 = scalar_select %p230, %s227, 9
      %s232 = smul.addr %s231, 2
      %s233 = smul.addr %s229, 20
      %s234 = sadd.s32 %s232, %s233
      %s235 = smul.addr %s234, 4
      %s236 = scalar_lea.vmem %s0, %s235
      %s237 = sadd.s32 %s21, %s22
      %p238 = scmp.lt.s32.totalorder %s20, 1
      %s239 = scalar_select %p238, %s20, 1
      %p240 = scmp.lt.s32.totalorder %s21, 7
      %s241 = scalar_select %p240, %s21, 7
      %s242 = smul.addr %s239, 8
      %s243 = sadd.s32 %s241, %s242
      %s244 = smul.addr %s243, 4
      %s245 = scalar_lea.vmem %s4, %s244
      %p247 = scmp.eq.s32.totalorder %s22, 0
      // Predicated region
      $region37: #{_lambda_.8} parent=35 // pred_check
        %p248 = pneg %p247
      $region38: #{_lambda_.8} parent=35 // pred_check_branch
        %250 = sbr.rel (%p248) target = $region40
      $region39: #{_lambda_.8} parent=35 // pred_region
        %vm251 = vcmask 523264
        %252 = vst.msk [vmem:[#allocation2] sm:$0xff] %vm251, 0.0
      $region40: #{_lambda_.8} parent=35 // pred_fallthru
        _
      %v253 = vld [vmem:[%s236] sm:$0xf]
      %v254 = vld [vmem:[%s236 + $0x4] sm:$0x1]
      %s255 = smul.u32 %s22, 24
      %s256 = smul.addr %s255, 4
      %s257 = scalar_lea.vmem %s1, %s256
      %v258 = vld [vmem:[%s257] sm:$0xf]
      %v259 = vld [vmem:[%s257 + $0x4] sm:$0xf]
      %v260 = vld [vmem:[%s257 + $0x8] sm:$0xf]
      %v261 = vld [vmem:[%s257 + $0xc] sm:$0xf]
      %v262 = vld [vmem:[%s257 + $0x10] sm:$0xf]
      %v263 = vld [vmem:[%s257 + $0x14] sm:$0xf]
      %v264 = vld [vmem:[%s257 + $0x18] sm:$0xf]
      %v265 = vld [vmem:[%s257 + $0x1c] sm:$0xf]
      %v266 = vld [vmem:[%s257 + $0x20] sm:$0xf]
      %v267 = vld [vmem:[%s257 + $0x24] sm:$0xf]
      %v268 = vld [vmem:[%s257 + $0x28] sm:$0xf]
      %v269 = vld [vmem:[%s257 + $0x2c] sm:$0xf]
      %v270 = vld [vmem:[%s257 + $0x30] sm:$0xf]
      %v271 = vld [vmem:[%s257 + $0x34] sm:$0xf]
      %v272 = vld [vmem:[%s257 + $0x38] sm:$0xf]
      %v273 = vld [vmem:[%s257 + $0x3c] sm:$0xf]
      %v274 = vld [vmem:[%s257 + $0x40] sm:$0xf]
      %v275 = vld [vmem:[%s257 + $0x44] sm:$0xf]
      %v276 = vld [vmem:[%s257 + $0x48] sm:$0xf]
      %v277 = vld [vmem:[%s257 + $0x4c] sm:$0xf]
      %v278 = vld [vmem:[%s257 + $0x50] sm:$0xf]
      %v279 = vld [vmem:[%s257 + $0x54] sm:$0xf]
      %v280 = vld [vmem:[%s257 + $0x58] sm:$0xf]
      %v281 = vld [vmem:[%s257 + $0x5c] sm:$0xf]
      %v282 = vld [vmem:[#allocation2] sm:$0xff]
      %v291 = vunpack.c.l.b16 %v258
      %v292 = vunpack.c.l.b16 %v259
      %v293 = vunpack.c.l.b16 %v260
      %v294 = vunpack.c.l.b16 %v261
      %v295 = vunpack.c.l.b16 %v262
      %v296 = vunpack.c.l.b16 %v263
      %v297 = vunpack.c.l.b16 %v264
      %v298 = vunpack.c.l.b16 %v265
      %v299 = vpack.c.b16 %v292, %v291
      %v300 = vpack.c.b16 %v294, %v293
      %v301 = vpack.c.b16 %v296, %v295
      %v302 = vpack.c.b16 %v298, %v297
      %vm307 = vcmask 523264
      %v309 = vsel %vm307, %v253, 0
      %311 = vmatpush.bf16.msra.mxu0 0
      %312 = vmatpush.bf16.msra.mxu0 0
      %313 = vmatpush.bf16.msra.mxu0 0
      %314 = vmatpush.bf16.msra.mxu0 0
      %315 = vmatpush.bf16.msra.mxu0 %v302
      %316 = vmatpush.bf16.msra.mxu0 %v301
      %317 = vmatpush.bf16.msra.mxu0 %v300
      %318 = vmatpush.bf16.msra.mxu0 %v299
      %319 = vmatmul.bf16.gmra.mxu0 %v309
      %v320 = vpop.f32.mrf.mxu0
      %v321 = vadd.f32 0.0, %v320
      %v322 = vpop.f32.mrf.mxu0
      %323 = vdwg.mxu0
      %v324 = vadd.f32 %v282, %v321
      %v327 = vunpack.c.l.b16 %v253
      %v328 = vunpack.c.l.b16 %v254
      %v329 = vpack.c.b16 %v328, %v327
      %v331 = vshrl.u32 %v329, 16
      %v333 = vshll.u32 %v329, 16
      %v335 = vrot.slane %v333, 1
      %v336 = vor.u32 %v331, %v335
      %v345 = vunpack.c.l.b16 %v266
      %v346 = vunpack.c.l.b16 %v267
      %v347 = vunpack.c.l.b16 %v268
      %v348 = vunpack.c.l.b16 %v269
      %v349 = vunpack.c.l.b16 %v270
      %v350 = vunpack.c.l.b16 %v271
      %v351 = vunpack.c.l.b16 %v272
      %v352 = vunpack.c.l.b16 %v273
      %v353 = vpack.c.b16 %v346, %v345
      %v354 = vpack.c.b16 %v348, %v347
      %v355 = vpack.c.b16 %v350, %v349
      %v356 = vpack.c.b16 %v352, %v351
      %v362 = vsel %vm307, %v336, 0
      %364 = vmatpush.bf16.msra.mxu0 0
      %365 = vmatpush.bf16.msra.mxu0 0
      %366 = vmatpush.bf16.msra.mxu0 0
      %367 = vmatpush.bf16.msra.mxu0 0
      %368 = vmatpush.bf16.msra.mxu0 %v356
      %369 = vmatpush.bf16.msra.mxu0 %v355
      %370 = vmatpush.bf16.msra.mxu0 %v354
      %371 = vmatpush.bf16.msra.mxu0 %v353
      %372 = vmatmul.bf16.gmra.mxu0 %v362
      %v373 = vpop.f32.mrf.mxu0
      %v374 = vadd.f32 0.0, %v373
      %v375 = vpop.f32.mrf.mxu0
      %376 = vdwg.mxu0
      %v377 = vadd.f32 %v324, %v374
      %v378 = vrot.slane %v329, 1
      %v387 = vunpack.c.l.b16 %v274
      %v388 = vunpack.c.l.b16 %v275
      %v389 = vunpack.c.l.b16 %v276
      %v390 = vunpack.c.l.b16 %v277
      %v391 = vunpack.c.l.b16 %v278
      %v392 = vunpack.c.l.b16 %v279
      %v393 = vunpack.c.l.b16 %v280
      %v394 = vunpack.c.l.b16 %v281
      %v395 = vpack.c.b16 %v388, %v387
      %v396 = vpack.c.b16 %v390, %v389
      %v397 = vpack.c.b16 %v392, %v391
      %v398 = vpack.c.b16 %v394, %v393
      %v404 = vsel %vm307, %v378, 0
      %406 = vmatpush.bf16.msra.mxu0 0
      %407 = vmatpush.bf16.msra.mxu0 0
      %408 = vmatpush.bf16.msra.mxu0 0
      %409 = vmatpush.bf16.msra.mxu0 0
      %410 = vmatpush.bf16.msra.mxu0 %v398
      %411 = vmatpush.bf16.msra.mxu0 %v397
      %412 = vmatpush.bf16.msra.mxu0 %v396
      %413 = vmatpush.bf16.msra.mxu0 %v395
      %414 = vmatmul.bf16.gmra.mxu0 %v404
      %v415 = vpop.f32.mrf.mxu0
      %v416 = vadd.f32 0.0, %v415
      %v417 = vpop.f32.mrf.mxu0
      %418 = vdwg.mxu0
      %v419 = vadd.f32 %v377, %v416
      %420 = vst.msk [vmem:[#allocation2] sm:$0xff] %vm307, %v419
      %p421 = scmp.eq.s32.totalorder %s22, 2
      // Predicated region
      $region41: #{_lambda_.8} parent=35 // pred_check
        %p422 = pneg %p421
      $region42: #{_lambda_.8} parent=35 // pred_check_branch
        %424 = sbr.rel (%p422) target = $region44
      $region43: #{_lambda_.8} parent=35 // pred_region
        %v425 = vld [vmem:[#allocation2] sm:$0xff]
        %v426 = vld [vmem:[%s2] sm:$0x1]
        %v428 = vperm.slane %v426, 0
        %v430 = vmul.f32 %v425, %v428
        %v431 = vld [vmem:[%s3] sm:$0x1]
        %v433 = vperm.slane %v431, 0
        %v435 = vadd.f32 %v430, %v433
        %v436 = vmax.f32 %v435, 0.0
        %v437 = vpack.c.bf16 %v436, %v436
        %vm438 = vcmask 519168
        %439 = vst.msk [vmem:[%s245] sm:$0xf] %vm438, %v437
      $region44: #{_lambda_.8} parent=35 // pred_fallthru
        _
      %p440 = scmp.lt.s32.totalorder %s20, 1
      %s441 = scalar_select %p440, %s20, 1
      %p442 = scmp.lt.s32.totalorder %s21, 7
      %s443 = scalar_select %p442, %s21, 7
      %s444 = smul.addr %s441, 8
      %s445 = sadd.s32 %s443, %s444
      %s446 = smul.addr %s445, 4
      %s447 = scalar_lea.vmem %s4, %s446
      // Predicated region
      $region45: #{_lambda_.8} parent=35 // pred_check
        %p448 = pneg %p147
      $region46: #{_lambda_.8} parent=35 // pred_check_branch
        %450 = sbr.rel (%p448) target = $region48
      $region47: #{_lambda_.8} parent=35 // pred_region
        _
      $region48: #{_lambda_.8} parent=35 // pred_fallthru
        _
    $region36: #{_lambda_.8} parent=5 // pred_fallthru
      _
    %p451 = scmp.le.s32.totalorder 2, %s10
    // Predicated region
    $region49: #{_lambda_.8} parent=5 // pred_check
      %p452 = pneg %p451
    $region50: #{_lambda_.8} parent=5 // pred_check_branch
      %454 = sbr.rel (%p452) target = $region52
    $region51: #{_lambda_.8} parent=5 // pred_region
      %s455 = ssub.s32 %s10, 2
      // Predicated region
      $region53: #{_lambda_.8} parent=51 // pred_check
        %p456 = pneg %p153
      $region54: #{_lambda_.8} parent=51 // pred_check_branch
        %458 = sbr.rel (%p456) target = $region56
      $region55: #{_lambda_.8} parent=51 // pred_region
        %p459 = scmp.lt.s32.totalorder %s23, 1
        %s460 = scalar_select %p459, %s23, 1
        %p461 = scmp.lt.s32.totalorder %s24, 7
        %s462 = scalar_select %p461, %s24, 7
        %s463 = smul.addr %s460, 8
        %s464 = sadd.s32 %s462, %s463
        %s465 = smul.addr %s464, 4
        %s466 = scalar_lea.vmem %s4, %s465
      $region56: #{_lambda_.8} parent=51 // pred_fallthru
        _
    $region52: #{_lambda_.8} parent=5 // pred_fallthru
      _
  $region6: #{_lambda_.8} parent=0 // loop_footer
    %s14 = sadd.s32 1, %s10
  $region7: #{_lambda_.8} parent=0 // loop_footer_branch
    %9 = sbr.rel target = $region3
  $region8: #{_lambda_.8} parent=0 // loop_exit
    _

// kernel: _lambda_.11
$region0: #{_lambda_.11}
  #allocation0 [shape = 'u32[]', space=smem, size = 0x4, offset = 0x4, fixed_abs, tag = 'smem constant byte address 0x4 - core index']
  #allocation1 [shape = 'u32[72,128]{1,0:T(1,128)}', space=vmem, size = 0x9000, scoped, tag = 'internal scratch']
  #allocation2 [shape = 'f32[16,128]{1,0:T(8,128)}', space=vmem, size = 0x2000, scoped, tag = 'scratch operand']
  %s0 = inlined_call_operand.vmem [shape: bf16[2,18,18,64], index: 0, kind: input, shape index: {}]
  %s1 = inlined_call_operand.vmem [shape: bf16[3,3,64,128], index: 1, kind: input, shape index: {}]
  %s2 = inlined_call_operand.vmem [shape: f32[1,128], index: 2, kind: input, shape index: {}]
  %s3 = inlined_call_operand.vmem [shape: f32[1,128], index: 3, kind: input, shape index: {}]
  %s4 = inlined_call_operand.vmem [shape: f32[2,16,16,128], index: 4, kind: output, shape index: {}]
  %s5 = sld [smem:[#allocation0]]
  $region57: #{_lambda_.11} parent=0
    _
  %s7 = ssub.s32 1, %s5
  %s8 = scalar_select 0, %s7, %s5
  loop: start=0, step=1, limit=98
  $region2: #{_lambda_.11} parent=0 // loop_pre_header
    _
  $region3: #{_lambda_.11} parent=0 // loop_header
    %s10 = sphi 0, %s14
    %p11 = scmp.ge.s32.totalorder %s10, 98
    %s17 = sphi 0, %s36
    %s18 = sphi 0, %s32
    %s19 = sphi 0, %s28
    %s20 = sphi 0, %s17
    %s21 = sphi 0, %s18
    %s22 = sphi 0, %s19
    %s23 = sphi 0, %s20
    %s24 = sphi 0, %s21
    %s25 = sphi 0, %s22
    %s43 = sphi 0, %s45
    %s46 = sphi 0, %s43
    %s47 = sphi 0, %s46
    %s63 = sphi 0, %s47
    %s67 = sphi 0, %s67
    %s69 = sphi 0, %s67
    %s70 = sphi 0, %s69
    %s84 = sphi 0, %s70
    %s88 = sphi 0, %s88
    %s90 = sphi 0, %s88
    %s91 = sphi 0, %s90
    %s105 = sphi 0, %s91
    %s109 = sphi 0, %s109
    %s111 = sphi 0, %s109
    %s112 = sphi 0, %s111
    %s126 = sphi 0, %s112
    %s134 = sphi 0, %s136
    %s137 = sphi 0, %s134
    %s138 = sphi 0, %s137
    %s154 = sphi 0, %s138
  $region4: #{_lambda_.11} parent=0 // loop_header_branch
    %13 = sbr.rel (%p11) target = $region8
  $region5: #{_lambda_.11} parent=0 // loop_body
    %s15 = ssub.s32 %s10, 1
    %s16 = ssub.s32 %s10, 2
    %s26 = sadd.s32 1, %s19
    %p27 = scmp.ge.s32.totalorder %s26, 3
    %s28 = scalar_select %p27, 0, %s26
    %s29 = sadd.s32 1, %s18
    %s30 = scalar_select %p27, %s29, %s18
    %p31 = scmp.ge.s32.totalorder %s30, 16
    %s32 = scalar_select %p31, 0, %s30
    %s33 = sadd.s32 1, %s17
    %s34 = scalar_select %p31, %s33, %s17
    %p35 = scmp.ge.s32.totalorder %s34, 2
    %s36 = scalar_select %p35, 0, %s34
    %s37 = sadd.s32 %s18, %s19
    %s38 = sadd.s32 %s32, %s28
    %s39 = ssub.s32 %s17, %s36
    %s40 = ssub.s32 %s37, %s38
    %s41 = sor.u32 %s39, %s40
    %p42 = scmp.eq.s32.totalorder %s41, 0
    %s44 = sadd.s32 %s43, 1
    %s45 = scalar_select %p42, %s43, %s44
    %p48 = pneg %p42
    %p49 = scmp.eq.s32.totalorder %s10, 95
    %p50 = por %p48, %p49
    %p51 = scmp.ne.s32.totalorder %s43, %s46
    %p52 = scmp.eq.s32.totalorder %s10, 0
    %p53 = por %p51, %p52
    %p54 = scmp.ne.s32.totalorder %s43, %s46
    %p55 = scmp.eq.s32.totalorder %s15, 95
    %p56 = por %p54, %p55
    %p57 = scmp.ne.s32.totalorder %s46, %s47
    %p58 = scmp.eq.s32.totalorder %s15, 0
    %p59 = por %p57, %p58
    %p60 = scmp.ne.s32.totalorder %s46, %s47
    %p61 = scmp.eq.s32.totalorder %s16, 95
    %p62 = por %p60, %p61
    %p64 = scmp.ne.s32.totalorder %s47, %s63
    %p65 = scmp.eq.s32.totalorder %s16, 0
    %p66 = por %p64, %p65
    %s68 = sadd.s32 %s67, 1
    %p71 = scmp.eq.s32.totalorder %s10, 95
    %p72 = scmp.ne.s32.totalorder %s67, %s69
    %p73 = scmp.eq.s32.totalorder %s10, 0
    %p74 = por %p72, %p73
    %p75 = scmp.ne.s32.totalorder %s67, %s69
    %p76 = scmp.eq.s32.totalorder %s15, 95
    %p77 = por %p75, %p76
    %p78 = scmp.ne.s32.totalorder %s69, %s70
    %p79 = scmp.eq.s32.totalorder %s15, 0
    %p80 = por %p78, %p79
    %p81 = scmp.ne.s32.totalorder %s69, %s70
    %p82 = scmp.eq.s32.totalorder %s16, 95
    %p83 = por %p81, %p82
    %p85 = scmp.ne.s32.totalorder %s70, %s84
    %p86 = scmp.eq.s32.totalorder %s16, 0
    %p87 = por %p85, %p86
    %s89 = sadd.s32 %s88, 1
    %p92 = scmp.eq.s32.totalorder %s10, 95
    %p93 = scmp.ne.s32.totalorder %s88, %s90
    %p94 = scmp.eq.s32.totalorder %s10, 0
    %p95 = por %p93, %p94
    %p96 = scmp.ne.s32.totalorder %s88, %s90
    %p97 = scmp.eq.s32.totalorder %s15, 95
    %p98 = por %p96, %p97
    %p99 = scmp.ne.s32.totalorder %s90, %s91
    %p100 = scmp.eq.s32.totalorder %s15, 0
    %p101 = por %p99, %p100
    %p102 = scmp.ne.s32.totalorder %s90, %s91
    %p103 = scmp.eq.s32.totalorder %s16, 95
    %p104 = por %p102, %p103
    %p106 = scmp.ne.s32.totalorder %s91, %s105
    %p107 = scmp.eq.s32.totalorder %s16, 0
    %p108 = por %p106, %p107
    %s110 = sadd.s32 %s109, 1
    %p113 = scmp.eq.s32.totalorder %s10, 95
    %p114 = scmp.ne.s32.totalorder %s109, %s111
    %p115 = scmp.eq.s32.totalorder %s10, 0
    %p116 = por %p114, %p115
    %p117 = scmp.ne.s32.totalorder %s109, %s111
    %p118 = scmp.eq.s32.totalorder %s15, 95
    %p119 = por %p117, %p118
    %p120 = scmp.ne.s32.totalorder %s111, %s112
    %p121 = scmp.eq.s32.totalorder %s15, 0
    %p122 = por %p120, %p121
    %p123 = scmp.ne.s32.totalorder %s111, %s112
    %p124 = scmp.eq.s32.totalorder %s16, 95
    %p125 = por %p123, %p124
    %p127 = scmp.ne.s32.totalorder %s112, %s126
    %p128 = scmp.eq.s32.totalorder %s16, 0
    %p129 = por %p127, %p128
    %s130 = ssub.s32 %s17, %s36
    %s131 = ssub.s32 %s18, %s32
    %s132 = sor.u32 %s130, %s131
    %p133 = scmp.eq.s32.totalorder %s132, 0
    %s135 = sadd.s32 %s134, 1
    %s136 = scalar_select %p133, %s134, %s135
    %p139 = pneg %p133
    %p140 = scmp.eq.s32.totalorder %s10, 95
    %p141 = por %p139, %p140
    %p142 = scmp.ne.s32.totalorder %s134, %s137
    %p143 = scmp.eq.s32.totalorder %s10, 0
    %p144 = por %p142, %p143
    %p145 = scmp.ne.s32.totalorder %s134, %s137
    %p146 = scmp.eq.s32.totalorder %s15, 95
    %p147 = por %p145, %p146
    %p148 = scmp.ne.s32.totalorder %s137, %s138
    %p149 = scmp.eq.s32.totalorder %s15, 0
    %p150 = por %p148, %p149
    %p151 = scmp.ne.s32.totalorder %s137, %s138
    %p152 = scmp.eq.s32.totalorder %s16, 95
    %p153 = por %p151, %p152
    %p155 = scmp.ne.s32.totalorder %s138, %s154
    %p156 = scmp.eq.s32.totalorder %s16, 0
    %p157 = por %p155, %p156
    %p158 = scmp.le.s32.totalorder 1, %s10
    %p159 = scmp.lt.s32.totalorder %s10, 97
    %p160 = pnand %p158, %p159
    %p161 = pneg %p160
    // Predicated region
    $region9: #{_lambda_.11} parent=5 // pred_check
      _
    $region10: #{_lambda_.11} parent=5 // pred_check_branch
      %163 = sbr.rel (%p160) target = $region12
    $region11: #{_lambda_.11} parent=5 // pred_region
      %s164 = ssub.s32 %s10, 1
      // Predicated region
      $region13: #{_lambda_.11} parent=11 // pred_check
        %p165 = pneg %p80
      $region14: #{_lambda_.11} parent=11 // pred_check_branch
        %167 = sbr.rel (%p165) target = $region16
      $region15: #{_lambda_.11} parent=11 // pred_region
        _
      $region16: #{_lambda_.11} parent=11 // pred_fallthru
        _
      // Predicated region
      $region17: #{_lambda_.11} parent=11 // pred_check
        %p168 = pneg %p101
      $region18: #{_lambda_.11} parent=11 // pred_check_branch
        %170 = sbr.rel (%p168) target = $region20
      $region19: #{_lambda_.11} parent=11 // pred_region
        _
      $region20: #{_lambda_.11} parent=11 // pred_fallthru
        _
      // Predicated region
      $region21: #{_lambda_.11} parent=11 // pred_check
        %p171 = pneg %p122
      $region22: #{_lambda_.11} parent=11 // pred_check_branch
        %173 = sbr.rel (%p171) target = $region24
      $region23: #{_lambda_.11} parent=11 // pred_region
        _
      $region24: #{_lambda_.11} parent=11 // pred_fallthru
        _
    $region12: #{_lambda_.11} parent=5 // pred_fallthru
      _
    %p174 = scmp.lt.s32.totalorder %s10, 96
    // Predicated region
    $region25: #{_lambda_.11} parent=5 // pred_check
      %p175 = pneg %p174
    $region26: #{_lambda_.11} parent=5 // pred_check_branch
      %177 = sbr.rel (%p175) target = $region28
    $region27: #{_lambda_.11} parent=5 // pred_region
      // Predicated region
      $region29: #{_lambda_.11} parent=27 // pred_check
        %p178 = pneg %p53
      $region30: #{_lambda_.11} parent=27 // pred_check_branch
        %180 = sbr.rel (%p178) target = $region32
      $region31: #{_lambda_.11} parent=27 // pred_region
        %s181 = sadd.s32 %s18, %s19
        %p182 = scmp.lt.s32.totalorder %s17, 1
        %s183 = scalar_select %p182, %s17, 1
        %p184 = scmp.lt.s32.totalorder %s181, 17
        %s185 = scalar_select %p184, %s181, 17
        %s186 = smul.addr %s185, 3
        %s187 = smul.addr %s183, 54
        %s188 = sadd.s32 %s186, %s187
        %s189 = smul.addr %s188, 4
        %s190 = scalar_lea.vmem %s0, %s189
        %s191 = sadd.s32 %s18, %s19
      $region32: #{_lambda_.11} parent=27 // pred_fallthru
        _
    $region28: #{_lambda_.11} parent=5 // pred_fallthru
      _
    %p192 = scmp.le.s32.totalorder 1, %s10
    %p193 = scmp.lt.s32.totalorder %s10, 97
    %p194 = pnand %p192, %p193
    %p195 = pneg %p194
    // Predicated region
    $region33: #{_lambda_.11} parent=5 // pred_check
      _
    $region34: #{_lambda_.11} parent=5 // pred_check_branch
      %197 = sbr.rel (%p194) target = $region36
    $region35: #{_lambda_.11} parent=5 // pred_region
      %s198 = ssub.s32 %s10, 1
      %s199 = sadd.s32 %s21, %s22
      %p200 = scmp.lt.s32.totalorder %s20, 1
      %s201 = scalar_select %p200, %s20, 1
      %p202 = scmp.lt.s32.totalorder %s199, 17
      %s203 = scalar_select %p202, %s199, 17
      %s204 = smul.addr %s203, 3
      %s205 = smul.addr %s201, 54
      %s206 = sadd.s32 %s204, %s205
      %s207 = smul.addr %s206, 4
      %s208 = scalar_lea.vmem %s0, %s207
      %p209 = pneg %p59
      %p210 = pneg %p56
      %p211 = pneg %p80
      %p212 = pneg %p77
      %p213 = pneg %p101
      %p214 = pneg %p98
      %p215 = pneg %p122
      %p216 = pneg %p119
      %p217 = pneg %p150
      %p218 = pneg %p147
      %p219 = scmp.lt.s32.totalorder %s20, 1
      %s220 = scalar_select %p219, %s20, 1
      %p221 = scmp.lt.s32.totalorder %s21, 15
      %s222 = scalar_select %p221, %s21, 15
      %s223 = smul.addr %s222, 2
      %s224 = smul.addr %s220, 32
      %s225 = sadd.s32 %s223, %s224
      %s226 = smul.addr %s225, 8
      %s227 = scalar_lea.vmem %s4, %s226
      %s228 = sadd.s32 %s21, %s22
      %p229 = scmp.lt.s32.totalorder %s20, 1
      %s230 = scalar_select %p229, %s20, 1
      %p231 = scmp.lt.s32.totalorder %s228, 17
      %s232 = scalar_select %p231, %s228, 17
      %s233 = smul.addr %s232, 3
      %s234 = smul.addr %s230, 54
      %s235 = sadd.s32 %s233, %s234
      %s236 = smul.addr %s235, 4
      %s237 = scalar_lea.vmem %s0, %s236
      %s238 = sadd.s32 %s21, %s22
      %p239 = scmp.lt.s32.totalorder %s20, 1
      %s240 = scalar_select %p239, %s20, 1
      %p241 = scmp.lt.s32.totalorder %s21, 15
      %s242 = scalar_select %p241, %s21, 15
      %s243 = smul.addr %s242, 2
      %s244 = smul.addr %s240, 32
      %s245 = sadd.s32 %s243, %s244
      %s246 = smul.addr %s245, 8
      %s247 = scalar_lea.vmem %s4, %s246
      %p249 = scmp.eq.s32.totalorder %s22, 0
      // Predicated region
      $region37: #{_lambda_.11} parent=35 // pred_check
        %p250 = pneg %p249
      $region38: #{_lambda_.11} parent=35 // pred_check_branch
        %252 = sbr.rel (%p250) target = $region40
      $region39: #{_lambda_.11} parent=35 // pred_region
        %253 = vst [vmem:[#allocation2] sm:$0xff] 0.0
        %254 = vst [vmem:[#allocation2 + $0x8] sm:$0xff] 0.0
      $region40: #{_lambda_.11} parent=35 // pred_fallthru
        _
      %v255 = vld [vmem:[%s237] sm:$0xf]
      %v256 = vld [vmem:[%s237 + $0x4] sm:$0xf]
      %v257 = vld [vmem:[%s237 + $0x8] sm:$0x1]
      %s258 = smul.u32 %s22, 24
      %s259 = smul.addr %s258, 4
      %s260 = scalar_lea.vmem %s1, %s259
      %v261 = vld [vmem:[%s260] sm:$0xf]
      %v262 = vld [vmem:[%s260 + $0x4] sm:$0xf]
      %v263 = vld [vmem:[%s260 + $0x8] sm:$0xf]
      %v264 = vld [vmem:[%s260 + $0xc] sm:$0xf]
      %v265 = vld [vmem:[%s260 + $0x10] sm:$0xf]
      %v266 = vld [vmem:[%s260 + $0x14] sm:$0xf]
      %v267 = vld [vmem:[%s260 + $0x18] sm:$0xf]
      %v268 = vld [vmem:[%s260 + $0x1c] sm:$0xf]
      %v269 = vld [vmem:[%s260 + $0x20] sm:$0xf]
      %v270 = vld [vmem:[%s260 + $0x24] sm:$0xf]
      %v271 = vld [vmem:[%s260 + $0x28] sm:$0xf]
      %v272 = vld [vmem:[%s260 + $0x2c] sm:$0xf]
      %v273 = vld [vmem:[%s260 + $0x30] sm:$0xf]
      %v274 = vld [vmem:[%s260 + $0x34] sm:$0xf]
      %v275 = vld [vmem:[%s260 + $0x38] sm:$0xf]
      %v276 = vld [vmem:[%s260 + $0x3c] sm:$0xf]
      %v277 = vld [vmem:[%s260 + $0x40] sm:$0xf]
      %v278 = vld [vmem:[%s260 + $0x44] sm:$0xf]
      %v279 = vld [vmem:[%s260 + $0x48] sm:$0xf]
      %v280 = vld [vmem:[%s260 + $0x4c] sm:$0xf]
      %v281 = vld [vmem:[%s260 + $0x50] sm:$0xf]
      %v282 = vld [vmem:[%s260 + $0x54] sm:$0xf]
      %v283 = vld [vmem:[%s260 + $0x58] sm:$0xf]
      %v284 = vld [vmem:[%s260 + $0x5c] sm:$0xf]
      %v285 = vld [vmem:[#allocation2] sm:$0xff]
      %v286 = vld [vmem:[#allocation2 + $0x8] sm:$0xff]
      %v289 = vunpack.c.l.b16 %v255
      %v290 = vunpack.c.l.b16 %v256
      %v291 = vpack.c.b16 %v290, %v289
      %v300 = vunpack.c.l.b16 %v261
      %v301 = vunpack.c.l.b16 %v262
      %v302 = vunpack.c.l.b16 %v263
      %v303 = vunpack.c.l.b16 %v264
      %v304 = vunpack.c.l.b16 %v265
      %v305 = vunpack.c.l.b16 %v266
      %v306 = vunpack.c.l.b16 %v267
      %v307 = vunpack.c.l.b16 %v268
      %v308 = vpack.c.b16 %v301, %v300
      %v309 = vpack.c.b16 %v303, %v302
      %v310 = vpack.c.b16 %v305, %v304
      %v311 = vpack.c.b16 %v307, %v306
      %vm316 = vcmask 523264
      %v318 = vsel %vm316, %v291, 0
      %320 = vmatpush.bf16.msra.mxu0 0
      %321 = vmatpush.bf16.msra.mxu0 0
      %322 = vmatpush.bf16.msra.mxu0 0
      %323 = vmatpush.bf16.msra.mxu0 0
      %324 = vmatpush.bf16.msra.mxu0 %v311
      %325 = vmatpush.bf16.msra.mxu0 %v310
      %326 = vmatpush.bf16.msra.mxu0 %v309
      %327 = vmatpush.bf16.msra.mxu0 %v308
      %328 = vmatmul.bf16.gmra.mxu0 %v318
      %v329 = vpop.f32.mrf.mxu0
      %v330 = vadd.f32 0.0, %v329
      %v331 = vpop.f32.mrf.mxu0
      %v332 = vadd.f32 0.0, %v331
      %333 = vdwg.mxu0
      %v334 = vadd.f32 %v285, %v330
      %v335 = vadd.f32 %v286, %v332
      %v337 = vunpack.c.l.b16 %v257
      %v338 = vpack.c.b16 %v337, %v337
      %vm339 = vsmask.f32 7424
      %v340 = vshrl.u32 %v291, 16
      %v342 = vshll.u32 %v291, 16
      %v344 = vrot.slane %v342, 1
      %v345 = vor.u32 %v340, %v344
      %v347 = vshll.u32 %v338, 16
      %v349 = vrot.slane %v347, 1
      %v350 = vsel %vm339, %v345, %v349
      %v359 = vunpack.c.l.b16 %v269
      %v360 = vunpack.c.l.b16 %v270
      %v361 = vunpack.c.l.b16 %v271
      %v362 = vunpack.c.l.b16 %v272
      %v363 = vunpack.c.l.b16 %v273
      %v364 = vunpack.c.l.b16 %v274
      %v365 = vunpack.c.l.b16 %v275
      %v366 = vunpack.c.l.b16 %v276
      %v367 = vpack.c.b16 %v360, %v359
      %v368 = vpack.c.b16 %v362, %v361
      %v369 = vpack.c.b16 %v364, %v363
      %v370 = vpack.c.b16 %v366, %v365
      %v376 = vsel %vm316, %v350, 0
      %378 = vmatpush.bf16.msra.mxu0 0
      %379 = vmatpush.bf16.msra.mxu0 0
      %380 = vmatpush.bf16.msra.mxu0 0
      %381 = vmatpush.bf16.msra.mxu0 0
      %382 = vmatpush.bf16.msra.mxu0 %v370
      %383 = vmatpush.bf16.msra.mxu0 %v369
      %384 = vmatpush.bf16.msra.mxu0 %v368
      %385 = vmatpush.bf16.msra.mxu0 %v367
      %386 = vmatmul.bf16.gmra.mxu0 %v376
      %v387 = vpop.f32.mrf.mxu0
      %v388 = vadd.f32 0.0, %v387
      %v389 = vpop.f32.mrf.mxu0
      %v390 = vadd.f32 0.0, %v389
      %391 = vdwg.mxu0
      %v392 = vadd.f32 %v334, %v388
      %v393 = vadd.f32 %v335, %v390
      %vm394 = vcmask 1046528
      %v395 = vrot.slane %v291, 1
      %v396 = vrot.slane %v338, 1
      %v397 = vsel %vm394, %v395, %v396
      %v406 = vunpack.c.l.b16 %v277
      %v407 = vunpack.c.l.b16 %v278
      %v408 = vunpack.c.l.b16 %v279
      %v409 = vunpack.c.l.b16 %v280
      %v410 = vunpack.c.l.b16 %v281
      %v411 = vunpack.c.l.b16 %v282
      %v412 = vunpack.c.l.b16 %v283
      %v413 = vunpack.c.l.b16 %v284
      %v414 = vpack.c.b16 %v407, %v406
      %v415 = vpack.c.b16 %v409, %v408
      %v416 = vpack.c.b16 %v411, %v410
      %v417 = vpack.c.b16 %v413, %v412
      %v423 = vsel %vm316, %v397, 0
      %425 = vmatpush.bf16.msra.mxu0 0
      %426 = vmatpush.bf16.msra.mxu0 0
      %427 = vmatpush.bf16.msra.mxu0 0
      %428 = vmatpush.bf16.msra.mxu0 0
      %429 = vmatpush.bf16.msra.mxu0 %v417
      %430 = vmatpush.bf16.msra.mxu0 %v416
      %431 = vmatpush.bf16.msra.mxu0 %v415
      %432 = vmatpush.bf16.msra.mxu0 %v414
      %433 = vmatmul.bf16.gmra.mxu0 %v423
      %v434 = vpop.f32.mrf.mxu0
      %v435 = vadd.f32 0.0, %v434
      %v436 = vpop.f32.mrf.mxu0
      %v437 = vadd.f32 0.0, %v436
      %438 = vdwg.mxu0
      %v439 = vadd.f32 %v392, %v435
      %v440 = vadd.f32 %v393, %v437
      %441 = vst [vmem:[#allocation2] sm:$0xff] %v439
      %442 = vst [vmem:[#allocation2 + $0x8] sm:$0xff] %v440
      %p443 = scmp.eq.s32.totalorder %s22, 2
      // Predicated region
      $region41: #{_lambda_.11} parent=35 // pred_check
        %p444 = pneg %p443
      $region42: #{_lambda_.11} parent=35 // pred_check_branch
        %446 = sbr.rel (%p444) target = $region44
      $region43: #{_lambda_.11} parent=35 // pred_region
        %v447 = vld [vmem:[#allocation2] sm:$0xff]
        %v448 = vld [vmem:[#allocation2 + $0x8] sm:$0xff]
        %v449 = vld [vmem:[%s2] sm:$0x1]
        %v451 = vperm.slane %v449, 0
        %v453 = vmul.f32 %v447, %v451
        %v454 = vmul.f32 %v448, %v451
        %v455 = vld [vmem:[%s3] sm:$0x1]
        %v457 = vperm.slane %v455, 0
        %v459 = vadd.f32 %v453, %v457
        %v460 = vadd.f32 %v454, %v457
        %v461 = vxor.u32 %v459, 2147483648
        %v462 = vxor.u32 %v460, 2147483648
        %v463 = vmul.f32 %v461, 1.442695
        %v464 = vpow.pop %v463
        %v465 = vmul.f32 %v462, 1.442695
        %v466 = vpow.pop %v465
        %v467 = vadd.f32 %v464, 1.0
        %v468 = vadd.f32 %v466, 1.0
        %v469 = vrcp.pop %v467
        %v470 = vmul.f32 %v467, %v469
        %v471 = vsub.f32 1.0, %v470
        %v472 = vmul.f32 %v469, %v471
        %v473 = vadd.f32 %v469, %v472
        %vm474 = vweird.f32 %v467
        %vm475 = vweird.f32 %v469
        %vm476 = vmor %vm474, %vm475
        %v477 = vsel %vm476, %v469, %v473
        %v478 = vand.u32 2147483647, %v467
        %vm479 = vcmp.eq.f32.partialorder %v478, 8.507059e+37
        %v480 = vand.u32 %v467, 2147483648
        %v481 = vor.u32 1.1754944e-38, %v480
        %v482 = vsel %vm479, %v481, %v477
        %v483 = vmul.f32 1.0, %v482
        %v484 = vrcp.pop %v468
        %v485 = vmul.f32 %v468, %v484
        %v486 = vsub.f32 1.0, %v485
        %v487 = vmul.f32 %v484, %v486
        %v488 = vadd.f32 %v484, %v487
        %vm489 = vweird.f32 %v468
        %vm490 = vweird.f32 %v484
        %vm491 = vmor %vm489, %vm490
        %v492 = vsel %vm491, %v484, %v488
        %v493 = vand.u32 2147483647, %v468
        %vm494 = vcmp.eq.f32.partialorder %v493, 8.507059e+37
        %v495 = vand.u32 %v468, 2147483648
        %v496 = vor.u32 1.1754944e-38, %v495
        %v497 = vsel %vm494, %v496, %v492
        %v498 = vmul.f32 1.0, %v497
        %499 = vst [vmem:[%s247] sm:$0xff] %v483
        %500 = vst [vmem:[%s247 + $0x8] sm:$0xff] %v498
      $region44: #{_lambda_.11} parent=35 // pred_fallthru
        _
      %p501 = scmp.lt.s32.totalorder %s20, 1
      %s502 = scalar_select %p501, %s20, 1
      %p503 = scmp.lt.s32.totalorder %s21, 15
      %s504 = scalar_select %p503, %s21, 15
      %s505 = smul.addr %s504, 2
      %s506 = smul.addr %s502, 32
      %s507 = sadd.s32 %s505, %s506
      %s508 = smul.addr %s507, 8
      %s509 = scalar_lea.vmem %s4, %s508
      // Predicated region
      $region45: #{_lambda_.11} parent=35 // pred_check
        %p510 = pneg %p147
      $region46: #{_lambda_.11} parent=35 // pred_check_branch
        %512 = sbr.rel (%p510) target = $region48
      $region47: #{_lambda_.11} parent=35 // pred_region
        _
      $region48: #{_lambda_.11} parent=35 // pred_fallthru
        _
    $region36: #{_lambda_.11} parent=5 // pred_fallthru
      _
    %p513 = scmp.le.s32.totalorder 2, %s10
    // Predicated region
    $region49: #{_lambda_.11} parent=5 // pred_check
      %p514 = pneg %p513
    $region50: #{_lambda_.11} parent=5 // pred_check_branch
      %516 = sbr.rel (%p514) target = $region52
    $region51: #{_lambda_.11} parent=5 // pred_region
      %s517 = ssub.s32 %s10, 2
      // Predicated region
      $region53: #{_lambda_.11} parent=51 // pred_check
        %p518 = pneg %p153
      $region54: #{_lambda_.11} parent=51 // pred_check_branch
        %520 = sbr.rel (%p518) target = $region56
      $region55: #{_lambda_.11} parent=51 // pred_region
        %p521 = scmp.lt.s32.totalorder %s23, 1
        %s522 = scalar_select %p521, %s23, 1
        %p523 = scmp.lt.s32.totalorder %s24, 15
        %s524 = scalar_select %p523, %s24, 15
        %s525 = smul.addr %s524, 2
        %s526 = smul.addr %s522, 32
        %s527 = sadd.s32 %s525, %s526
        %s528 = smul.addr %s527, 8
        %s529 = scalar_lea.vmem %s4, %s528
      $region56: #{_lambda_.11} parent=51 // pred_fallthru
        _
    $region52: #{_lambda_.11} parent=5 // pred_fallthru
      _
  $region6: #{_lambda_.11} parent=0 // loop_footer
    %s14 = sadd.s32 1, %s10
  $region7: #{_lambda_.11} parent=0 // loop_footer_branch
    %9 = sbr.rel target = $region3
  $region8: #{_lambda_.11} parent=0 // loop_exit
    _

</llo_original>
